<compile_context>
chip_gen: v6e
topology: v6e:2x2x1
jax: 0.10.0
libtpu: 0.0.40
codegen_flags: <defaults>
</compile_context>

<pallas_src>
import functools

import jax
import jax.numpy as jnp
from jax.experimental import pallas as pl
from jax.experimental.pallas import tpu as pltpu

# Module constants from the PyTorch file.
n_embd = 384
block_size = 256


# ----------------------------------------------------------------------------
# Fused multi-head-attention kernel: one batch element per grid step.
# ----------------------------------------------------------------------------
def _mha_kernel(x_ref, wqkv_ref, wproj_ref, bproj_ref, y_ref, *,
                num_heads, head_size):
    x = x_ref[0]                              # (T, C) float32
    T, C = x.shape
    scale = C ** (-0.5)                       # faithful: scales by n_embd

    # Fused Q/K/V projection: one (T,C)@(C,3C) bf16 MXU matmul, f32 accumulation.
    xb = x.astype(jnp.bfloat16)
    qkv = jnp.dot(xb, wqkv_ref[...], preferred_element_type=jnp.float32)  # (T, 3C)

    # Causal mask (built once per grid step; single layer so nothing to hoist).
    rows = jax.lax.broadcasted_iota(jnp.int32, (T, T), 0)
    cols = jax.lax.broadcasted_iota(jnp.int32, (T, T), 1)
    causal = cols <= rows                     # (T, T) bool

    # Per-head attention, statically unrolled (all plain 2-D MXU/VPU ops).
    # The head concat is folded into the output projection:
    #   y = concat_h(att_h) @ Wp == sum_h att_h @ Wp[h*hs:(h+1)*hs, :]
    y = jnp.zeros((T, C), jnp.float32)
    for h in range(num_heads):
        lo = h * head_size
        q_h = qkv[:, lo:lo + head_size]                       # (T, hs) f32
        k_h = qkv[:, C + lo:C + lo + head_size]               # (T, hs) f32
        v_h = qkv[:, 2 * C + lo:2 * C + lo + head_size]       # (T, hs) f32

        # Attention scores: contract the head dim of both operands (no transpose).
        wei = jax.lax.dot_general(
            q_h.astype(jnp.bfloat16), k_h.astype(jnp.bfloat16),
            (((1,), (1,)), ((), ())),
            preferred_element_type=jnp.float32) * scale       # (T, T) f32
        wei = jnp.where(causal, wei, -jnp.inf)

        # Numerically-stable softmax in f32; divide -> EUP approx reciprocal.
        wei = wei - jnp.max(wei, axis=-1, keepdims=True)
        p = jnp.exp(wei)
        p = p * pl.reciprocal(jnp.sum(p, axis=-1, keepdims=True), approx=True)

        # Attention-weighted values (bf16 MXU, f32 accumulation).
        att_h = jnp.dot(p.astype(jnp.bfloat16), v_h.astype(jnp.bfloat16),
                        preferred_element_type=jnp.float32)   # (T, hs)

        # Partial output projection for this head.
        w_h = wproj_ref[lo:lo + head_size, :]                 # (hs, C) bf16
        y = y + jnp.dot(att_h.astype(jnp.bfloat16), w_h,
                        preferred_element_type=jnp.float32)

    y_ref[0] = y + bproj_ref[...]             # (T, C), lane-dense (C = 3*128)


# ----------------------------------------------------------------------------
# Wrapper
# ----------------------------------------------------------------------------
def multi_head_attention(x, params, *, num_heads, head_size):
    B, T, C = x.shape
    assert C == num_heads * head_size == n_embd
    assert T <= block_size

    # bf16 weights for the MXU (f32 accumulation inside the kernel).
    w_qkv = jnp.concatenate(
        [params["w_q"], params["w_k"], params["w_v"]], axis=1
    ).astype(jnp.bfloat16)                                    # (C, 3C)
    w_proj = params["w_proj"].astype(jnp.bfloat16)            # (C, C)
    b_proj = params["b_proj"].astype(jnp.float32)             # (1, C)

    kernel = functools.partial(_mha_kernel, num_heads=num_heads,
                               head_size=head_size)

    return pl.pallas_call(
        kernel,
        out_shape=jax.ShapeDtypeStruct((B, T, C), jnp.float32),
        grid=(B,),
        in_specs=[
            pl.BlockSpec((1, T, C), lambda b: (b, 0, 0)),     # x: one batch slab/step
            pl.BlockSpec((C, 3 * C), lambda b: (0, 0)),       # fused QKV weight (constant)
            pl.BlockSpec((C, C), lambda b: (0, 0)),           # output proj weight (constant)
            pl.BlockSpec((1, C), lambda b: (0, 0)),           # output proj bias
        ],
        out_specs=pl.BlockSpec((1, T, C), lambda b: (b, 0, 0)),
        # "parallel" lets v7x put the two batch slabs on its two TensorCores;
        # on v5e/v6e the 2-step grid is a negligible serial loop.
        compiler_params=pltpu.CompilerParams(
            dimension_semantics=("parallel",)),
    )(x, w_qkv, w_proj, b_proj)


# ----------------------------------------------------------------------------
# Deterministic parameter init (synthetic; no checkpoint load)
# ----------------------------------------------------------------------------
def init_params(key, C):
    ks = jax.random.split(key, 5)

    def nrm(k, shape, s=0.02):
        return (s * jax.random.normal(k, shape)).astype(jnp.float32)

    # Per-head key/query/value projections are bias-free Linear(n_embd, head_size);
    # stacking the heads column-wise gives (C, C) matrices (head-major columns).
    return {
        "w_q": nrm(ks[0], (C, C)),
        "w_k": nrm(ks[1], (C, C)),
        "w_v": nrm(ks[2], (C, C)),
        "w_proj": nrm(ks[3], (C, C)),          # Linear(n_embd, n_embd), (in, out) layout
        "b_proj": nrm(ks[4], (1, C)),
    }


# ----------------------------------------------------------------------------
# Pure-JAX f32 reference (numerical sanity check)
# ----------------------------------------------------------------------------
def reference_mha(x, params, *, num_heads, head_size):
    hp = jax.lax.Precision.HIGHEST
    B, T, C = x.shape
    q = jnp.dot(x, params["w_q"], precision=hp)
    k = jnp.dot(x, params["w_k"], precision=hp)
    v = jnp.dot(x, params["w_v"], precision=hp)

    def split(t):  # (B,T,C) -> (B,H,T,hs)
        return t.reshape(B, T, num_heads, head_size).transpose(0, 2, 1, 3)

    q, k, v = split(q), split(k), split(v)
    wei = jnp.einsum("bhqd,bhkd->bhqk", q, k, precision=hp) * (C ** -0.5)
    mask = jnp.tril(jnp.ones((T, T), dtype=bool))
    wei = jnp.where(mask[None, None], wei, -jnp.inf)
    wei = jax.nn.softmax(wei, axis=-1)
    out = jnp.einsum("bhqk,bhkd->bhqd", wei, v, precision=hp)
    out = out.transpose(0, 2, 1, 3).reshape(B, T, C)
    return jnp.dot(out, params["w_proj"], precision=hp) + params["b_proj"]


if __name__ == "__main__":
    # Small shapes consistent with the module: n_embd = 384 (fixed by the file),
    # num_heads * head_size must equal n_embd for the proj Linear to typecheck.
    num_heads, head_size = 6, 64
    B, T = 2, 16

    key = jax.random.PRNGKey(0)
    kp, kx = jax.random.split(key)
    params = init_params(kp, n_embd)
    x = jax.random.normal(kx, (B, T, n_embd), dtype=jnp.float32)

    out = multi_head_attention(x, params, num_heads=num_heads, head_size=head_size)
    out = jax.block_until_ready(out)
    assert out.shape == (B, T, n_embd)

    ref = reference_mha(x, params, num_heads=num_heads, head_size=head_size)
    max_err = float(jnp.max(jnp.abs(out - ref)))
    assert jnp.allclose(out, ref, atol=1e-2, rtol=1e-2), max_err

    print("KERNEL_OK")
</pallas_src>

<mosaic_0001>
module attributes {stable_mosaic.version = 11 : i64} {
  func.func @_mha_kernel(%arg0: i32, %arg1: memref<1x16x384xf32, #tpu.memory_space<vmem>>, %arg2: memref<384x1152xbf16, #tpu.memory_space<vmem>>, %arg3: memref<384x384xbf16, #tpu.memory_space<vmem>>, %arg4: memref<1x384xf32, #tpu.memory_space<vmem>>, %arg5: memref<1x16x384xf32, #tpu.memory_space<vmem>>) attributes {dimension_semantics = [#tpu.dimension_semantics<parallel>], iteration_bounds = array<i64: 2>, scalar_prefetch = 0 : i64, scratch_operands = 0 : i64, tpu.core_type = #tpu.core_type<tc>, window_params = [{transform_indices = @transform_0, window_bounds = array<i64: 1, 16, 384>}, {pipeline_mode = #tpu.pipeline_mode<synchronous>, transform_indices = @transform_1, window_bounds = array<i64: 384, 1152>}, {pipeline_mode = #tpu.pipeline_mode<synchronous>, transform_indices = @transform_2, window_bounds = array<i64: 384, 384>}, {pipeline_mode = #tpu.pipeline_mode<synchronous>, transform_indices = @transform_3, window_bounds = array<i64: 1, 384>}, {transform_indices = @transform_4, window_bounds = array<i64: 1, 16, 384>}]} {
    %c0 = arith.constant 0 : index
    %c0_0 = arith.constant 0 : index
    %c0_1 = arith.constant 0 : index
    %0 = vector.load %arg1[%c0, %c0_0, %c0_1] : memref<1x16x384xf32, #tpu.memory_space<vmem>>, vector<1x16x384xf32>
    %1 = vector.shape_cast %0 : vector<1x16x384xf32> to vector<16x384xf32>
    %2 = arith.truncf %1 : vector<16x384xf32> to vector<16x384xbf16>
    %c0_2 = arith.constant 0 : index
    %c0_3 = arith.constant 0 : index
    %3 = vector.load %arg2[%c0_2, %c0_3] : memref<384x1152xbf16, #tpu.memory_space<vmem>>, vector<384x1152xbf16>
    %cst = arith.constant dense<0.000000e+00> : vector<16x1152xf32>
    %4 = tpu.matmul %2, %3, %cst {dimension_numbers = #tpu.dot_dimension_numbers<[1], [0], [0], [1], [0, 0, 1, 1], [], []>} : vector<16x384xbf16>, vector<384x1152xbf16>, vector<16x1152xf32> -> vector<16x1152xf32>
    %5 = tpu.iota {dimensions = array<i32: 0>} : vector<16x16xi32>
    %6 = tpu.iota {dimensions = array<i32: 1>} : vector<16x16xi32>
    %7 = arith.cmpi sle, %6, %5 : vector<16x16xi32>
    %cst_4 = arith.constant 0.000000e+00 : f32
    %8 = vector.broadcast %cst_4 : f32 to vector<16x384xf32>
    %9 = vector.extract_strided_slice %4 {offsets = [0, 0], sizes = [16, 64], strides = [1, 1]} : vector<16x1152xf32> to vector<16x64xf32>
    %10 = vector.extract_strided_slice %4 {offsets = [0, 384], sizes = [16, 64], strides = [1, 1]} : vector<16x1152xf32> to vector<16x64xf32>
    %11 = vector.extract_strided_slice %4 {offsets = [0, 768], sizes = [16, 64], strides = [1, 1]} : vector<16x1152xf32> to vector<16x64xf32>
    %12 = arith.truncf %9 : vector<16x64xf32> to vector<16x64xbf16>
    %13 = arith.truncf %10 : vector<16x64xf32> to vector<16x64xbf16>
    %cst_5 = arith.constant dense<0.000000e+00> : vector<16x16xf32>
    %14 = tpu.matmul %12, %13, %cst_5 {dimension_numbers = #tpu.dot_dimension_numbers<[1], [1], [0], [0], [0, 0, 1, 0], [], []>} : vector<16x64xbf16>, vector<16x64xbf16>, vector<16x16xf32> -> vector<16x16xf32>
    %cst_6 = arith.constant 0.0510310382 : f32
    %15 = vector.broadcast %cst_6 : f32 to vector<16x16xf32>
    %16 = arith.mulf %14, %15 : vector<16x16xf32>
    %cst_7 = arith.constant 0xFF800000 : f32
    %17 = vector.broadcast %cst_7 : f32 to vector<16x16xf32>
    %18 = arith.select %7, %16, %17 : vector<16x16xi1>, vector<16x16xf32>
    %cst_8 = arith.constant dense<0xFF800000> : vector<16xf32>
    %19 = vector.multi_reduction <maximumf>, %18, %cst_8 [1] : vector<16x16xf32> to vector<16xf32>
    %20 = vector.shape_cast %19 : vector<16xf32> to vector<16x1xf32>
    %21 = vector.broadcast %20 : vector<16x1xf32> to vector<16x16xf32>
    %22 = arith.subf %18, %21 : vector<16x16xf32>
    %23 = math.exp %22 : vector<16x16xf32>
    %cst_9 = arith.constant dense<0.000000e+00> : vector<16xf32>
    %24 = vector.multi_reduction <add>, %23, %cst_9 [1] : vector<16x16xf32> to vector<16xf32>
    %25 = vector.shape_cast %24 : vector<16xf32> to vector<16x1xf32>
    %26 = tpu.reciprocal %25 {approx = true} : vector<16x1xf32> -> vector<16x1xf32>
    %27 = vector.broadcast %26 : vector<16x1xf32> to vector<16x16xf32>
    %28 = arith.mulf %23, %27 : vector<16x16xf32>
    %29 = arith.truncf %28 : vector<16x16xf32> to vector<16x16xbf16>
    %30 = arith.truncf %11 : vector<16x64xf32> to vector<16x64xbf16>
    %cst_10 = arith.constant dense<0.000000e+00> : vector<16x64xf32>
    %31 = tpu.matmul %29, %30, %cst_10 {dimension_numbers = #tpu.dot_dimension_numbers<[1], [0], [0], [1], [0, 0, 1, 1], [], []>} : vector<16x16xbf16>, vector<16x64xbf16>, vector<16x64xf32> -> vector<16x64xf32>
    %c0_11 = arith.constant 0 : index
    %c0_12 = arith.constant 0 : index
    %32 = vector.load %arg3[%c0_11, %c0_12] : memref<384x384xbf16, #tpu.memory_space<vmem>>, vector<64x384xbf16>
    %33 = arith.truncf %31 : vector<16x64xf32> to vector<16x64xbf16>
    %cst_13 = arith.constant dense<0.000000e+00> : vector<16x384xf32>
    %34 = tpu.matmul %33, %32, %cst_13 {dimension_numbers = #tpu.dot_dimension_numbers<[1], [0], [0], [1], [0, 0, 1, 1], [], []>} : vector<16x64xbf16>, vector<64x384xbf16>, vector<16x384xf32> -> vector<16x384xf32>
    %35 = arith.addf %8, %34 : vector<16x384xf32>
    %36 = vector.extract_strided_slice %4 {offsets = [0, 64], sizes = [16, 64], strides = [1, 1]} : vector<16x1152xf32> to vector<16x64xf32>
    %37 = vector.extract_strided_slice %4 {offsets = [0, 448], sizes = [16, 64], strides = [1, 1]} : vector<16x1152xf32> to vector<16x64xf32>
    %38 = vector.extract_strided_slice %4 {offsets = [0, 832], sizes = [16, 64], strides = [1, 1]} : vector<16x1152xf32> to vector<16x64xf32>
    %39 = arith.truncf %36 : vector<16x64xf32> to vector<16x64xbf16>
    %40 = arith.truncf %37 : vector<16x64xf32> to vector<16x64xbf16>
    %cst_14 = arith.constant dense<0.000000e+00> : vector<16x16xf32>
    %41 = tpu.matmul %39, %40, %cst_14 {dimension_numbers = #tpu.dot_dimension_numbers<[1], [1], [0], [0], [0, 0, 1, 0], [], []>} : vector<16x64xbf16>, vector<16x64xbf16>, vector<16x16xf32> -> vector<16x16xf32>
    %cst_15 = arith.constant 0.0510310382 : f32
    %42 = vector.broadcast %cst_15 : f32 to vector<16x16xf32>
    %43 = arith.mulf %41, %42 : vector<16x16xf32>
    %cst_16 = arith.constant 0xFF800000 : f32
    %44 = vector.broadcast %cst_16 : f32 to vector<16x16xf32>
    %45 = arith.select %7, %43, %44 : vector<16x16xi1>, vector<16x16xf32>
    %cst_17 = arith.constant dense<0xFF800000> : vector<16xf32>
    %46 = vector.multi_reduction <maximumf>, %45, %cst_17 [1] : vector<16x16xf32> to vector<16xf32>
    %47 = vector.shape_cast %46 : vector<16xf32> to vector<16x1xf32>
    %48 = vector.broadcast %47 : vector<16x1xf32> to vector<16x16xf32>
    %49 = arith.subf %45, %48 : vector<16x16xf32>
    %50 = math.exp %49 : vector<16x16xf32>
    %cst_18 = arith.constant dense<0.000000e+00> : vector<16xf32>
    %51 = vector.multi_reduction <add>, %50, %cst_18 [1] : vector<16x16xf32> to vector<16xf32>
    %52 = vector.shape_cast %51 : vector<16xf32> to vector<16x1xf32>
    %53 = tpu.reciprocal %52 {approx = true} : vector<16x1xf32> -> vector<16x1xf32>
    %54 = vector.broadcast %53 : vector<16x1xf32> to vector<16x16xf32>
    %55 = arith.mulf %50, %54 : vector<16x16xf32>
    %56 = arith.truncf %55 : vector<16x16xf32> to vector<16x16xbf16>
    %57 = arith.truncf %38 : vector<16x64xf32> to vector<16x64xbf16>
    %cst_19 = arith.constant dense<0.000000e+00> : vector<16x64xf32>
    %58 = tpu.matmul %56, %57, %cst_19 {dimension_numbers = #tpu.dot_dimension_numbers<[1], [0], [0], [1], [0, 0, 1, 1], [], []>} : vector<16x16xbf16>, vector<16x64xbf16>, vector<16x64xf32> -> vector<16x64xf32>
    %c64 = arith.constant 64 : index
    %c0_20 = arith.constant 0 : index
    %59 = vector.load %arg3[%c64, %c0_20] : memref<384x384xbf16, #tpu.memory_space<vmem>>, vector<64x384xbf16>
    %60 = arith.truncf %58 : vector<16x64xf32> to vector<16x64xbf16>
    %cst_21 = arith.constant dense<0.000000e+00> : vector<16x384xf32>
    %61 = tpu.matmul %60, %59, %cst_21 {dimension_numbers = #tpu.dot_dimension_numbers<[1], [0], [0], [1], [0, 0, 1, 1], [], []>} : vector<16x64xbf16>, vector<64x384xbf16>, vector<16x384xf32> -> vector<16x384xf32>
    %62 = arith.addf %35, %61 : vector<16x384xf32>
    %63 = vector.extract_strided_slice %4 {offsets = [0, 128], sizes = [16, 64], strides = [1, 1]} : vector<16x1152xf32> to vector<16x64xf32>
    %64 = vector.extract_strided_slice %4 {offsets = [0, 512], sizes = [16, 64], strides = [1, 1]} : vector<16x1152xf32> to vector<16x64xf32>
    %65 = vector.extract_strided_slice %4 {offsets = [0, 896], sizes = [16, 64], strides = [1, 1]} : vector<16x1152xf32> to vector<16x64xf32>
    %66 = arith.truncf %63 : vector<16x64xf32> to vector<16x64xbf16>
    %67 = arith.truncf %64 : vector<16x64xf32> to vector<16x64xbf16>
    %cst_22 = arith.constant dense<0.000000e+00> : vector<16x16xf32>
    %68 = tpu.matmul %66, %67, %cst_22 {dimension_numbers = #tpu.dot_dimension_numbers<[1], [1], [0], [0], [0, 0, 1, 0], [], []>} : vector<16x64xbf16>, vector<16x64xbf16>, vector<16x16xf32> -> vector<16x16xf32>
    %cst_23 = arith.constant 0.0510310382 : f32
    %69 = vector.broadcast %cst_23 : f32 to vector<16x16xf32>
    %70 = arith.mulf %68, %69 : vector<16x16xf32>
    %cst_24 = arith.constant 0xFF800000 : f32
    %71 = vector.broadcast %cst_24 : f32 to vector<16x16xf32>
    %72 = arith.select %7, %70, %71 : vector<16x16xi1>, vector<16x16xf32>
    %cst_25 = arith.constant dense<0xFF800000> : vector<16xf32>
    %73 = vector.multi_reduction <maximumf>, %72, %cst_25 [1] : vector<16x16xf32> to vector<16xf32>
    %74 = vector.shape_cast %73 : vector<16xf32> to vector<16x1xf32>
    %75 = vector.broadcast %74 : vector<16x1xf32> to vector<16x16xf32>
    %76 = arith.subf %72, %75 : vector<16x16xf32>
    %77 = math.exp %76 : vector<16x16xf32>
    %cst_26 = arith.constant dense<0.000000e+00> : vector<16xf32>
    %78 = vector.multi_reduction <add>, %77, %cst_26 [1] : vector<16x16xf32> to vector<16xf32>
    %79 = vector.shape_cast %78 : vector<16xf32> to vector<16x1xf32>
    %80 = tpu.reciprocal %79 {approx = true} : vector<16x1xf32> -> vector<16x1xf32>
    %81 = vector.broadcast %80 : vector<16x1xf32> to vector<16x16xf32>
    %82 = arith.mulf %77, %81 : vector<16x16xf32>
    %83 = arith.truncf %82 : vector<16x16xf32> to vector<16x16xbf16>
    %84 = arith.truncf %65 : vector<16x64xf32> to vector<16x64xbf16>
    %cst_27 = arith.constant dense<0.000000e+00> : vector<16x64xf32>
    %85 = tpu.matmul %83, %84, %cst_27 {dimension_numbers = #tpu.dot_dimension_numbers<[1], [0], [0], [1], [0, 0, 1, 1], [], []>} : vector<16x16xbf16>, vector<16x64xbf16>, vector<16x64xf32> -> vector<16x64xf32>
    %c128 = arith.constant 128 : index
    %c0_28 = arith.constant 0 : index
    %86 = vector.load %arg3[%c128, %c0_28] : memref<384x384xbf16, #tpu.memory_space<vmem>>, vector<64x384xbf16>
    %87 = arith.truncf %85 : vector<16x64xf32> to vector<16x64xbf16>
    %cst_29 = arith.constant dense<0.000000e+00> : vector<16x384xf32>
    %88 = tpu.matmul %87, %86, %cst_29 {dimension_numbers = #tpu.dot_dimension_numbers<[1], [0], [0], [1], [0, 0, 1, 1], [], []>} : vector<16x64xbf16>, vector<64x384xbf16>, vector<16x384xf32> -> vector<16x384xf32>
    %89 = arith.addf %62, %88 : vector<16x384xf32>
    %90 = vector.extract_strided_slice %4 {offsets = [0, 192], sizes = [16, 64], strides = [1, 1]} : vector<16x1152xf32> to vector<16x64xf32>
    %91 = vector.extract_strided_slice %4 {offsets = [0, 576], sizes = [16, 64], strides = [1, 1]} : vector<16x1152xf32> to vector<16x64xf32>
    %92 = vector.extract_strided_slice %4 {offsets = [0, 960], sizes = [16, 64], strides = [1, 1]} : vector<16x1152xf32> to vector<16x64xf32>
    %93 = arith.truncf %90 : vector<16x64xf32> to vector<16x64xbf16>
    %94 = arith.truncf %91 : vector<16x64xf32> to vector<16x64xbf16>
    %cst_30 = arith.constant dense<0.000000e+00> : vector<16x16xf32>
    %95 = tpu.matmul %93, %94, %cst_30 {dimension_numbers = #tpu.dot_dimension_numbers<[1], [1], [0], [0], [0, 0, 1, 0], [], []>} : vector<16x64xbf16>, vector<16x64xbf16>, vector<16x16xf32> -> vector<16x16xf32>
    %cst_31 = arith.constant 0.0510310382 : f32
    %96 = vector.broadcast %cst_31 : f32 to vector<16x16xf32>
    %97 = arith.mulf %95, %96 : vector<16x16xf32>
    %cst_32 = arith.constant 0xFF800000 : f32
    %98 = vector.broadcast %cst_32 : f32 to vector<16x16xf32>
    %99 = arith.select %7, %97, %98 : vector<16x16xi1>, vector<16x16xf32>
    %cst_33 = arith.constant dense<0xFF800000> : vector<16xf32>
    %100 = vector.multi_reduction <maximumf>, %99, %cst_33 [1] : vector<16x16xf32> to vector<16xf32>
    %101 = vector.shape_cast %100 : vector<16xf32> to vector<16x1xf32>
    %102 = vector.broadcast %101 : vector<16x1xf32> to vector<16x16xf32>
    %103 = arith.subf %99, %102 : vector<16x16xf32>
    %104 = math.exp %103 : vector<16x16xf32>
    %cst_34 = arith.constant dense<0.000000e+00> : vector<16xf32>
    %105 = vector.multi_reduction <add>, %104, %cst_34 [1] : vector<16x16xf32> to vector<16xf32>
    %106 = vector.shape_cast %105 : vector<16xf32> to vector<16x1xf32>
    %107 = tpu.reciprocal %106 {approx = true} : vector<16x1xf32> -> vector<16x1xf32>
    %108 = vector.broadcast %107 : vector<16x1xf32> to vector<16x16xf32>
    %109 = arith.mulf %104, %108 : vector<16x16xf32>
    %110 = arith.truncf %109 : vector<16x16xf32> to vector<16x16xbf16>
    %111 = arith.truncf %92 : vector<16x64xf32> to vector<16x64xbf16>
    %cst_35 = arith.constant dense<0.000000e+00> : vector<16x64xf32>
    %112 = tpu.matmul %110, %111, %cst_35 {dimension_numbers = #tpu.dot_dimension_numbers<[1], [0], [0], [1], [0, 0, 1, 1], [], []>} : vector<16x16xbf16>, vector<16x64xbf16>, vector<16x64xf32> -> vector<16x64xf32>
    %c192 = arith.constant 192 : index
    %c0_36 = arith.constant 0 : index
    %113 = vector.load %arg3[%c192, %c0_36] : memref<384x384xbf16, #tpu.memory_space<vmem>>, vector<64x384xbf16>
    %114 = arith.truncf %112 : vector<16x64xf32> to vector<16x64xbf16>
    %cst_37 = arith.constant dense<0.000000e+00> : vector<16x384xf32>
    %115 = tpu.matmul %114, %113, %cst_37 {dimension_numbers = #tpu.dot_dimension_numbers<[1], [0], [0], [1], [0, 0, 1, 1], [], []>} : vector<16x64xbf16>, vector<64x384xbf16>, vector<16x384xf32> -> vector<16x384xf32>
    %116 = arith.addf %89, %115 : vector<16x384xf32>
    %117 = vector.extract_strided_slice %4 {offsets = [0, 256], sizes = [16, 64], strides = [1, 1]} : vector<16x1152xf32> to vector<16x64xf32>
    %118 = vector.extract_strided_slice %4 {offsets = [0, 640], sizes = [16, 64], strides = [1, 1]} : vector<16x1152xf32> to vector<16x64xf32>
    %119 = vector.extract_strided_slice %4 {offsets = [0, 1024], sizes = [16, 64], strides = [1, 1]} : vector<16x1152xf32> to vector<16x64xf32>
    %120 = arith.truncf %117 : vector<16x64xf32> to vector<16x64xbf16>
    %121 = arith.truncf %118 : vector<16x64xf32> to vector<16x64xbf16>
    %cst_38 = arith.constant dense<0.000000e+00> : vector<16x16xf32>
    %122 = tpu.matmul %120, %121, %cst_38 {dimension_numbers = #tpu.dot_dimension_numbers<[1], [1], [0], [0], [0, 0, 1, 0], [], []>} : vector<16x64xbf16>, vector<16x64xbf16>, vector<16x16xf32> -> vector<16x16xf32>
    %cst_39 = arith.constant 0.0510310382 : f32
    %123 = vector.broadcast %cst_39 : f32 to vector<16x16xf32>
    %124 = arith.mulf %122, %123 : vector<16x16xf32>
    %cst_40 = arith.constant 0xFF800000 : f32
    %125 = vector.broadcast %cst_40 : f32 to vector<16x16xf32>
    %126 = arith.select %7, %124, %125 : vector<16x16xi1>, vector<16x16xf32>
    %cst_41 = arith.constant dense<0xFF800000> : vector<16xf32>
    %127 = vector.multi_reduction <maximumf>, %126, %cst_41 [1] : vector<16x16xf32> to vector<16xf32>
    %128 = vector.shape_cast %127 : vector<16xf32> to vector<16x1xf32>
    %129 = vector.broadcast %128 : vector<16x1xf32> to vector<16x16xf32>
    %130 = arith.subf %126, %129 : vector<16x16xf32>
    %131 = math.exp %130 : vector<16x16xf32>
    %cst_42 = arith.constant dense<0.000000e+00> : vector<16xf32>
    %132 = vector.multi_reduction <add>, %131, %cst_42 [1] : vector<16x16xf32> to vector<16xf32>
    %133 = vector.shape_cast %132 : vector<16xf32> to vector<16x1xf32>
    %134 = tpu.reciprocal %133 {approx = true} : vector<16x1xf32> -> vector<16x1xf32>
    %135 = vector.broadcast %134 : vector<16x1xf32> to vector<16x16xf32>
    %136 = arith.mulf %131, %135 : vector<16x16xf32>
    %137 = arith.truncf %136 : vector<16x16xf32> to vector<16x16xbf16>
    %138 = arith.truncf %119 : vector<16x64xf32> to vector<16x64xbf16>
    %cst_43 = arith.constant dense<0.000000e+00> : vector<16x64xf32>
    %139 = tpu.matmul %137, %138, %cst_43 {dimension_numbers = #tpu.dot_dimension_numbers<[1], [0], [0], [1], [0, 0, 1, 1], [], []>} : vector<16x16xbf16>, vector<16x64xbf16>, vector<16x64xf32> -> vector<16x64xf32>
    %c256 = arith.constant 256 : index
    %c0_44 = arith.constant 0 : index
    %140 = vector.load %arg3[%c256, %c0_44] : memref<384x384xbf16, #tpu.memory_space<vmem>>, vector<64x384xbf16>
    %141 = arith.truncf %139 : vector<16x64xf32> to vector<16x64xbf16>
    %cst_45 = arith.constant dense<0.000000e+00> : vector<16x384xf32>
    %142 = tpu.matmul %141, %140, %cst_45 {dimension_numbers = #tpu.dot_dimension_numbers<[1], [0], [0], [1], [0, 0, 1, 1], [], []>} : vector<16x64xbf16>, vector<64x384xbf16>, vector<16x384xf32> -> vector<16x384xf32>
    %143 = arith.addf %116, %142 : vector<16x384xf32>
    %144 = vector.extract_strided_slice %4 {offsets = [0, 320], sizes = [16, 64], strides = [1, 1]} : vector<16x1152xf32> to vector<16x64xf32>
    %145 = vector.extract_strided_slice %4 {offsets = [0, 704], sizes = [16, 64], strides = [1, 1]} : vector<16x1152xf32> to vector<16x64xf32>
    %146 = vector.extract_strided_slice %4 {offsets = [0, 1088], sizes = [16, 64], strides = [1, 1]} : vector<16x1152xf32> to vector<16x64xf32>
    %147 = arith.truncf %144 : vector<16x64xf32> to vector<16x64xbf16>
    %148 = arith.truncf %145 : vector<16x64xf32> to vector<16x64xbf16>
    %cst_46 = arith.constant dense<0.000000e+00> : vector<16x16xf32>
    %149 = tpu.matmul %147, %148, %cst_46 {dimension_numbers = #tpu.dot_dimension_numbers<[1], [1], [0], [0], [0, 0, 1, 0], [], []>} : vector<16x64xbf16>, vector<16x64xbf16>, vector<16x16xf32> -> vector<16x16xf32>
    %cst_47 = arith.constant 0.0510310382 : f32
    %150 = vector.broadcast %cst_47 : f32 to vector<16x16xf32>
    %151 = arith.mulf %149, %150 : vector<16x16xf32>
    %cst_48 = arith.constant 0xFF800000 : f32
    %152 = vector.broadcast %cst_48 : f32 to vector<16x16xf32>
    %153 = arith.select %7, %151, %152 : vector<16x16xi1>, vector<16x16xf32>
    %cst_49 = arith.constant dense<0xFF800000> : vector<16xf32>
    %154 = vector.multi_reduction <maximumf>, %153, %cst_49 [1] : vector<16x16xf32> to vector<16xf32>
    %155 = vector.shape_cast %154 : vector<16xf32> to vector<16x1xf32>
    %156 = vector.broadcast %155 : vector<16x1xf32> to vector<16x16xf32>
    %157 = arith.subf %153, %156 : vector<16x16xf32>
    %158 = math.exp %157 : vector<16x16xf32>
    %cst_50 = arith.constant dense<0.000000e+00> : vector<16xf32>
    %159 = vector.multi_reduction <add>, %158, %cst_50 [1] : vector<16x16xf32> to vector<16xf32>
    %160 = vector.shape_cast %159 : vector<16xf32> to vector<16x1xf32>
    %161 = tpu.reciprocal %160 {approx = true} : vector<16x1xf32> -> vector<16x1xf32>
    %162 = vector.broadcast %161 : vector<16x1xf32> to vector<16x16xf32>
    %163 = arith.mulf %158, %162 : vector<16x16xf32>
    %164 = arith.truncf %163 : vector<16x16xf32> to vector<16x16xbf16>
    %165 = arith.truncf %146 : vector<16x64xf32> to vector<16x64xbf16>
    %cst_51 = arith.constant dense<0.000000e+00> : vector<16x64xf32>
    %166 = tpu.matmul %164, %165, %cst_51 {dimension_numbers = #tpu.dot_dimension_numbers<[1], [0], [0], [1], [0, 0, 1, 1], [], []>} : vector<16x16xbf16>, vector<16x64xbf16>, vector<16x64xf32> -> vector<16x64xf32>
    %c320 = arith.constant 320 : index
    %c0_52 = arith.constant 0 : index
    %167 = vector.load %arg3[%c320, %c0_52] : memref<384x384xbf16, #tpu.memory_space<vmem>>, vector<64x384xbf16>
    %168 = arith.truncf %166 : vector<16x64xf32> to vector<16x64xbf16>
    %cst_53 = arith.constant dense<0.000000e+00> : vector<16x384xf32>
    %169 = tpu.matmul %168, %167, %cst_53 {dimension_numbers = #tpu.dot_dimension_numbers<[1], [0], [0], [1], [0, 0, 1, 1], [], []>} : vector<16x64xbf16>, vector<64x384xbf16>, vector<16x384xf32> -> vector<16x384xf32>
    %170 = arith.addf %143, %169 : vector<16x384xf32>
    %c0_54 = arith.constant 0 : index
    %c0_55 = arith.constant 0 : index
    %171 = vector.load %arg4[%c0_54, %c0_55] : memref<1x384xf32, #tpu.memory_space<vmem>>, vector<1x384xf32>
    %172 = vector.broadcast %171 : vector<1x384xf32> to vector<16x384xf32>
    %173 = arith.addf %170, %172 : vector<16x384xf32>
    %c0_56 = arith.constant 0 : index
    %c0_57 = arith.constant 0 : index
    %c0_58 = arith.constant 0 : index
    %174 = vector.load %arg5[%c0_56, %c0_57, %c0_58] : memref<1x16x384xf32, #tpu.memory_space<vmem>>, vector<1x16x384xf32>
    %175 = vector.shape_cast %174 : vector<1x16x384xf32> to vector<16x384xf32>
    %176 = vector.shape_cast %173 : vector<16x384xf32> to vector<1x16x384xf32>
    tpu.vector_store %arg5[%c0_56, %c0_57, %c0_58], %176 {strides = array<i32>} : memref<1x16x384xf32, #tpu.memory_space<vmem>>, vector<1x16x384xf32>,
    return
  }
  func.func @transform_0(%arg0: i32) -> (i32, i32, i32) {
    %c0_i32 = arith.constant 0 : i32
    %c0_i32_0 = arith.constant 0 : i32
    %c0_i32_1 = arith.constant 0 : i32
    return %arg0, %c0_i32, %c0_i32_0 : i32, i32, i32
  }
  func.func @transform_1(%arg0: i32) -> (i32, i32) {
    %c0_i32 = arith.constant 0 : i32
    %c0_i32_0 = arith.constant 0 : i32
    %c0_i32_1 = arith.constant 0 : i32
    return %c0_i32, %c0_i32_0 : i32, i32
  }
  func.func @transform_2(%arg0: i32) -> (i32, i32) {
    %c0_i32 = arith.constant 0 : i32
    %c0_i32_0 = arith.constant 0 : i32
    %c0_i32_1 = arith.constant 0 : i32
    return %c0_i32, %c0_i32_0 : i32, i32
  }
  func.func @transform_3(%arg0: i32) -> (i32, i32) {
    %c0_i32 = arith.constant 0 : i32
    %c0_i32_0 = arith.constant 0 : i32
    %c0_i32_1 = arith.constant 0 : i32
    return %c0_i32, %c0_i32_0 : i32, i32
  }
  func.func @transform_4(%arg0: i32) -> (i32, i32, i32) {
    %c0_i32 = arith.constant 0 : i32
    %c0_i32_0 = arith.constant 0 : i32
    %c0_i32_1 = arith.constant 0 : i32
    return %arg0, %c0_i32, %c0_i32_0 : i32, i32, i32
  }
}

</mosaic_0001>

<llo_original>
// kernel: tpu_custom_call.1
$region0: #{tpu_custom_call.1}
  #allocation0 [shape = 'u32[]', space=smem, size = 0x4, offset = 0x4, fixed_abs, tag = 'smem constant byte address 0x4 - core index']
  #allocation1 [shape = 'u32[144,128]{1,0:T(1,128)}', space=vmem, size = 0x12000, scoped, tag = 'internal scratch']
  %s0 = inlined_call_operand.hbm [shape: f32[2,16,384], index: 0, kind: input, shape index: {}]
  %s1 = inlined_call_operand.hbm [shape: bf16[384,1152], index: 1, kind: input, shape index: {}]
  %s2 = inlined_call_operand.hbm [shape: bf16[384,384], index: 2, kind: input, shape index: {}]
  %s3 = inlined_call_operand.vmem [shape: f32[1,384], index: 3, kind: input, shape index: {}]
  %s4 = inlined_call_operand.hbm [shape: f32[2,16,384], index: 4, kind: output, shape index: {}]
  %s5 = sld [smem:[#allocation0]]
  $region61: #{tpu_custom_call.1} parent=0
    _
  %s7 = ssub.s32 1, %s5
  %s8 = scalar_select 0, %s7, %s5
  $region1: #{tpu_custom_call.1} parent=0
    #allocation2 [shape = 'u8[49152]{0}', space=vmem, size = 0xc000, scoped, tag = 'input window, operand 0']
    #allocation3 [shape = 's32[2]{0}', space=sflag, size = 0x8, scoped, tag = 'scoped memory for tpu_custom_call.1']
    #allocation4 [shape = 's32[2]{0}', space=sflag, size = 0x8, scoped, tag = 'scoped memory for tpu_custom_call.1']
    #allocation5 [shape = 'u8[884736]{0}', space=vmem, size = 0xd8000, scoped, tag = 'input window, operand 1, single buffered']
    #allocation6 [shape = 's32[1]{0}', space=sflag, size = 0x4, scoped, tag = 'scoped memory for tpu_custom_call.1']
    #allocation7 [shape = 'u8[294912]{0}', space=vmem, size = 0x48000, scoped, tag = 'input window, operand 2, single buffered']
    #allocation8 [shape = 'u8[49152]{0}', space=vmem, size = 0xc000, scoped, tag = 'output window, operand 0']
    %9 = vsyncpa [#allocation3], 0
    %s10 = scalar_lea.sflag [#allocation3], 1
    %11 = vsyncpa %s10, 0
    %12 = vsyncpa [#allocation6], 0
    %13 = vsyncpa [#allocation4], 0
    %s14 = scalar_lea.sflag [#allocation4], 1
    %15 = vsyncpa %s14, 0
    loop: start=0, step=1, limit=4
    $region2: #{tpu_custom_call.1} parent=1 // loop_pre_header
      _
    $region3: #{tpu_custom_call.1} parent=1 // loop_header
      %s17 = sphi 0, %s21
      %p18 = scmp.ge.s32.totalorder %s17, 4
      %s27 = sphi 0, %s29
      %s30 = sphi 0, %s27
      %s31 = sphi 0, %s30
      %s47 = sphi 0, %s31
      %s51 = sphi 0, %s51
      %s53 = sphi 0, %s51
      %s54 = sphi 0, %s53
      %s68 = sphi 0, %s54
      %s72 = sphi 0, %s72
      %s74 = sphi 0, %s72
      %s75 = sphi 0, %s74
      %s89 = sphi 0, %s75
      %s93 = sphi 0, %s93
      %s95 = sphi 0, %s93
      %s96 = sphi 0, %s95
      %s110 = sphi 0, %s96
      %s116 = sphi 0, %s118
      %s119 = sphi 0, %s116
      %s120 = sphi 0, %s119
      %s136 = sphi 0, %s120
    $region4: #{tpu_custom_call.1} parent=1 // loop_header_branch
      %20 = sbr.rel (%p18) target = $region8
    $region5: #{tpu_custom_call.1} parent=1 // loop_body
      %s22 = ssub.s32 %s17, 1
      %s23 = ssub.s32 %s17, 2
      %s24 = sadd.s32 %s17, 1
      %s25 = ssub.s32 %s17, %s24
      %p26 = scmp.eq.s32.totalorder %s25, 0
      %s28 = sadd.s32 %s27, 1
      %s29 = scalar_select %p26, %s27, %s28
      %p32 = pneg %p26
      %p33 = scmp.eq.s32.totalorder %s17, 1
      %p34 = por %p32, %p33
      %p35 = scmp.ne.s32.totalorder %s27, %s30
      %p36 = scmp.eq.s32.totalorder %s17, 0
      %p37 = por %p35, %p36
      %p38 = scmp.ne.s32.totalorder %s27, %s30
      %p39 = scmp.eq.s32.totalorder %s22, 1
      %p40 = por %p38, %p39
      %p41 = scmp.ne.s32.totalorder %s30, %s31
      %p42 = scmp.eq.s32.totalorder %s22, 0
      %p43 = por %p41, %p42
      %p44 = scmp.ne.s32.totalorder %s30, %s31
      %p45 = scmp.eq.s32.totalorder %s23, 1
      %p46 = por %p44, %p45
      %p48 = scmp.ne.s32.totalorder %s31, %s47
      %p49 = scmp.eq.s32.totalorder %s23, 0
      %p50 = por %p48, %p49
      %s52 = sadd.s32 %s51, 1
      %p55 = scmp.eq.s32.totalorder %s17, 1
      %p56 = scmp.ne.s32.totalorder %s51, %s53
      %p57 = scmp.eq.s32.totalorder %s17, 0
      %p58 = por %p56, %p57
      %p59 = scmp.ne.s32.totalorder %s51, %s53
      %p60 = scmp.eq.s32.totalorder %s22, 1
      %p61 = por %p59, %p60
      %p62 = scmp.ne.s32.totalorder %s53, %s54
      %p63 = scmp.eq.s32.totalorder %s22, 0
      %p64 = por %p62, %p63
      %p65 = scmp.ne.s32.totalorder %s53, %s54
      %p66 = scmp.eq.s32.totalorder %s23, 1
      %p67 = por %p65, %p66
      %p69 = scmp.ne.s32.totalorder %s54, %s68
      %p70 = scmp.eq.s32.totalorder %s23, 0
      %p71 = por %p69, %p70
      %s73 = sadd.s32 %s72, 1
      %p76 = scmp.eq.s32.totalorder %s17, 1
      %p77 = scmp.ne.s32.totalorder %s72, %s74
      %p78 = scmp.eq.s32.totalorder %s17, 0
      %p79 = por %p77, %p78
      %p80 = scmp.ne.s32.totalorder %s72, %s74
      %p81 = scmp.eq.s32.totalorder %s22, 1
      %p82 = por %p80, %p81
      %p83 = scmp.ne.s32.totalorder %s74, %s75
      %p84 = scmp.eq.s32.totalorder %s22, 0
      %p85 = por %p83, %p84
      %p86 = scmp.ne.s32.totalorder %s74, %s75
      %p87 = scmp.eq.s32.totalorder %s23, 1
      %p88 = por %p86, %p87
      %p90 = scmp.ne.s32.totalorder %s75, %s89
      %p91 = scmp.eq.s32.totalorder %s23, 0
      %p92 = por %p90, %p91
      %s94 = sadd.s32 %s93, 1
      %p97 = scmp.eq.s32.totalorder %s17, 1
      %p98 = scmp.ne.s32.totalorder %s93, %s95
      %p99 = scmp.eq.s32.totalorder %s17, 0
      %p100 = por %p98, %p99
      %p101 = scmp.ne.s32.totalorder %s93, %s95
      %p102 = scmp.eq.s32.totalorder %s22, 1
      %p103 = por %p101, %p102
      %p104 = scmp.ne.s32.totalorder %s95, %s96
      %p105 = scmp.eq.s32.totalorder %s22, 0
      %p106 = por %p104, %p105
      %p107 = scmp.ne.s32.totalorder %s95, %s96
      %p108 = scmp.eq.s32.totalorder %s23, 1
      %p109 = por %p107, %p108
      %p111 = scmp.ne.s32.totalorder %s96, %s110
      %p112 = scmp.eq.s32.totalorder %s23, 0
      %p113 = por %p111, %p112
      %s114 = ssub.s32 %s17, %s24
      %p115 = scmp.eq.s32.totalorder %s114, 0
      %s117 = sadd.s32 %s116, 1
      %s118 = scalar_select %p115, %s116, %s117
      %p121 = pneg %p115
      %p122 = scmp.eq.s32.totalorder %s17, 1
      %p123 = por %p121, %p122
      %p124 = scmp.ne.s32.totalorder %s116, %s119
      %p125 = scmp.eq.s32.totalorder %s17, 0
      %p126 = por %p124, %p125
      %p127 = scmp.ne.s32.totalorder %s116, %s119
      %p128 = scmp.eq.s32.totalorder %s22, 1
      %p129 = por %p127, %p128
      %p130 = scmp.ne.s32.totalorder %s119, %s120
      %p131 = scmp.eq.s32.totalorder %s22, 0
      %p132 = por %p130, %p131
      %p133 = scmp.ne.s32.totalorder %s119, %s120
      %p134 = scmp.eq.s32.totalorder %s23, 1
      %p135 = por %p133, %p134
      %p137 = scmp.ne.s32.totalorder %s120, %s136
      %p138 = scmp.eq.s32.totalorder %s23, 0
      %p139 = por %p137, %p138
      %p140 = scmp.le.s32.totalorder 1, %s17
      %p141 = scmp.lt.s32.totalorder %s17, 3
      %p142 = pnand %p140, %p141
      %p143 = pneg %p142
      // Predicated region
      $region9: #{tpu_custom_call.1} parent=5 // pred_check
        _
      $region10: #{tpu_custom_call.1} parent=5 // pred_check_branch
        %145 = sbr.rel (%p142) target = $region12
      $region11: #{tpu_custom_call.1} parent=5 // pred_region
        %s146 = ssub.s32 %s17, 1
        // Predicated region
        $region13: #{tpu_custom_call.1} parent=11 // pred_check
          %p147 = pneg %p64
        $region14: #{tpu_custom_call.1} parent=11 // pred_check_branch
          %149 = sbr.rel (%p147) target = $region16
        $region15: #{tpu_custom_call.1} parent=11 // pred_region
          %s151 = ssub.s32 27648, 27648
          %152 = vsyncadd [#allocation6], %s151
          %s153 = sshll.u32 [#allocation5], 4
          %s154 = int_to_ptr.vmem [resolvable:$true] %s153
          %159 = dma.hbm_to_vmem [thread:$0]  %s1, 27648, %s154, [#allocation6], 576, 576, 36
        $region16: #{tpu_custom_call.1} parent=11 // pred_fallthru
          _
        // Predicated region
        $region17: #{tpu_custom_call.1} parent=11 // pred_check
          %p160 = pneg %p85
        $region18: #{tpu_custom_call.1} parent=11 // pred_check_branch
          %162 = sbr.rel (%p160) target = $region20
        $region19: #{tpu_custom_call.1} parent=11 // pred_region
          %s164 = ssub.s32 9216, 9216
          %165 = vsyncadd [#allocation6], %s164
          %s166 = sshll.u32 [#allocation7], 4
          %s167 = int_to_ptr.vmem [resolvable:$true] %s166
          %172 = dma.hbm_to_vmem [thread:$0]  %s2, 9216, %s167, [#allocation6], 192, 192, 12
        $region20: #{tpu_custom_call.1} parent=11 // pred_fallthru
          _
        // Predicated region
        $region21: #{tpu_custom_call.1} parent=11 // pred_check
          %p173 = pneg %p106
        $region22: #{tpu_custom_call.1} parent=11 // pred_check_branch
          %175 = sbr.rel (%p173) target = $region24
        $region23: #{tpu_custom_call.1} parent=11 // pred_region
          _
        $region24: #{tpu_custom_call.1} parent=11 // pred_fallthru
          _
      $region12: #{tpu_custom_call.1} parent=5 // pred_fallthru
        _
      %p176 = scmp.lt.s32.totalorder %s17, 2
      // Predicated region
      $region25: #{tpu_custom_call.1} parent=5 // pred_check
        %p177 = pneg %p176
      $region26: #{tpu_custom_call.1} parent=5 // pred_check_branch
        %179 = sbr.rel (%p177) target = $region28
      $region27: #{tpu_custom_call.1} parent=5 // pred_region
        // Predicated region
        $region29: #{tpu_custom_call.1} parent=27 // pred_check
          %p180 = pneg %p37
        $region30: #{tpu_custom_call.1} parent=27 // pred_check_branch
          %182 = sbr.rel (%p180) target = $region32
        $region31: #{tpu_custom_call.1} parent=27 // pred_region
          %s183 = sand.u32 %s27, 1
          %s184 = scalar_lea.sflag [#allocation3], %s183
          %s185 = sand.u32 %s27, 1
          %s186 = smul.addr %s185, 48
          %s187 = scalar_lea.vmem [#allocation2], %s186
          %s189 = ssub.s32 768, 768
          %190 = vsyncadd %s184, %s189
          %s191 = smul.addr %s17, 6
          %s192 = smul.addr %s191, 128
          %s193 = scalar_lea.hbm %s0, %s192
          %s194 = sshll.u32 %s187, 4
          %s195 = int_to_ptr.vmem [resolvable:$true] %s194
          %200 = dma.hbm_to_vmem [thread:$0]  %s193, 768, %s195, %s184, 384, 384, 24
        $region32: #{tpu_custom_call.1} parent=27 // pred_fallthru
          _
      $region28: #{tpu_custom_call.1} parent=5 // pred_fallthru
        _
      %p201 = scmp.le.s32.totalorder 1, %s17
      %p202 = scmp.lt.s32.totalorder %s17, 3
      %p203 = pnand %p201, %p202
      %p204 = pneg %p203
      // Predicated region
      $region33: #{tpu_custom_call.1} parent=5 // pred_check
        _
      $region34: #{tpu_custom_call.1} parent=5 // pred_check_branch
        %206 = sbr.rel (%p203) target = $region36
      $region35: #{tpu_custom_call.1} parent=5 // pred_region
        %s207 = ssub.s32 %s17, 1
        %s208 = sand.u32 %s30, 1
        %s209 = scalar_lea.sflag [#allocation3], %s208
        %s210 = sand.u32 %s30, 1
        %s211 = smul.addr %s210, 48
        %s212 = scalar_lea.vmem [#allocation2], %s211
        // Predicated region
        $region37: #{tpu_custom_call.1} parent=35 // pred_check
          %p213 = pneg %p43
        $region38: #{tpu_custom_call.1} parent=35 // pred_check_branch
          %215 = sbr.rel (%p213) target = $region40
        $region39: #{tpu_custom_call.1} parent=35 // pred_region
          %216 = dma.done %s209, 768
        $region40: #{tpu_custom_call.1} parent=35 // pred_fallthru
          _
        // Predicated region
        $region41: #{tpu_custom_call.1} parent=35 // pred_check
          %p217 = pneg %p64
        $region42: #{tpu_custom_call.1} parent=35 // pred_check_branch
          %219 = sbr.rel (%p217) target = $region44
        $region43: #{tpu_custom_call.1} parent=35 // pred_region
          %220 = dma.done [#allocation6], 27648
        $region44: #{tpu_custom_call.1} parent=35 // pred_fallthru
          _
        // Predicated region
        $region45: #{tpu_custom_call.1} parent=35 // pred_check
          %p221 = pneg %p85
        $region46: #{tpu_custom_call.1} parent=35 // pred_check_branch
          %223 = sbr.rel (%p221) target = $region48
        $region47: #{tpu_custom_call.1} parent=35 // pred_region
          %224 = dma.done [#allocation6], 9216
        $region48: #{tpu_custom_call.1} parent=35 // pred_fallthru
          _
        %s225 = sand.u32 %s30, 1
        %s226 = scalar_lea.sflag [#allocation3], %s225
        %s227 = sand.u32 %s30, 1
        %s228 = smul.addr %s227, 48
        %s229 = scalar_lea.vmem [#allocation2], %s228
        %p230 = pneg %p43
        %p231 = pneg %p40
        %p232 = pneg %p64
        %p233 = pneg %p61
        %p234 = pneg %p85
        %p235 = pneg %p82
        %p236 = pneg %p106
        %p237 = pneg %p103
        %p238 = pneg %p132
        %p239 = pneg %p129
        %s240 = sand.u32 %s119, 1
        %s241 = scalar_lea.sflag [#allocation4], %s240
        %s242 = sand.u32 %s119, 1
        %s243 = smul.addr %s242, 48
        %s244 = scalar_lea.vmem [#allocation8], %s243
        %v246 = vld [vmem:[%s212] sm:$0xff]
        %v247 = vld [vmem:[%s212 + $0x8] sm:$0xff]
        %v248 = vld [vmem:[%s212 + $0x10] sm:$0xff]
        %v249 = vld [vmem:[%s212 + $0x18] sm:$0xff]
        %v250 = vld [vmem:[%s212 + $0x20] sm:$0xff]
        %v251 = vld [vmem:[%s212 + $0x28] sm:$0xff]
        %v252 = vpack.c.bf16 %v249, %v246
        %v253 = vpack.c.bf16 %v250, %v247
        %v254 = vpack.c.bf16 %v251, %v248
        %v255 = vld [vmem:[#allocation5] sm:$0xff]
        %v256 = vld [vmem:[#allocation5 + $0x8] sm:$0xff]
        %v257 = vld [vmem:[#allocation5 + $0x10] sm:$0xff]
        %v258 = vld [vmem:[#allocation5 + $0x18] sm:$0xff]
        %v259 = vld [vmem:[#allocation5 + $0x20] sm:$0xf]
        %v260 = vld [vmem:[#allocation5 + $0x24] sm:$0xff]
        %v261 = vld [vmem:[#allocation5 + $0x2c] sm:$0xff]
        %v262 = vld [vmem:[#allocation5 + $0x34] sm:$0xff]
        %v263 = vld [vmem:[#allocation5 + $0x3c] sm:$0xff]
        %v264 = vld [vmem:[#allocation5 + $0x44] sm:$0xf]
        %v265 = vld [vmem:[#allocation5 + $0x48] sm:$0xff]
        %v266 = vld [vmem:[#allocation5 + $0x50] sm:$0xff]
        %v267 = vld [vmem:[#allocation5 + $0x58] sm:$0xff]
        %v268 = vld [vmem:[#allocation5 + $0x60] sm:$0xff]
        %v269 = vld [vmem:[#allocation5 + $0x68] sm:$0xf]
        %v270 = vld [vmem:[#allocation5 + $0x6c] sm:$0xff]
        %v271 = vld [vmem:[#allocation5 + $0x74] sm:$0xff]
        %v272 = vld [vmem:[#allocation5 + $0x7c] sm:$0xff]
        %v273 = vld [vmem:[#allocation5 + $0x84] sm:$0xff]
        %v274 = vld [vmem:[#allocation5 + $0x8c] sm:$0xf]
        %v275 = vld [vmem:[#allocation5 + $0x90] sm:$0xff]
        %v276 = vld [vmem:[#allocation5 + $0x98] sm:$0xff]
        %v277 = vld [vmem:[#allocation5 + $0xa0] sm:$0xff]
        %v278 = vld [vmem:[#allocation5 + $0xa8] sm:$0xff]
        %v279 = vld [vmem:[#allocation5 + $0xb0] sm:$0xf]
        %v280 = vld [vmem:[#allocation5 + $0xb4] sm:$0xff]
        %v281 = vld [vmem:[#allocation5 + $0xbc] sm:$0xff]
        %v282 = vld [vmem:[#allocation5 + $0xc4] sm:$0xff]
        %v283 = vld [vmem:[#allocation5 + $0xcc] sm:$0xff]
        %v284 = vld [vmem:[#allocation5 + $0xd4] sm:$0xf]
        %v285 = vld [vmem:[#allocation5 + $0xd8] sm:$0xff]
        %v286 = vld [vmem:[#allocation5 + $0xe0] sm:$0xff]
        %v287 = vld [vmem:[#allocation5 + $0xe8] sm:$0xff]
        %v288 = vld [vmem:[#allocation5 + $0xf0] sm:$0xff]
        %v289 = vld [vmem:[#allocation5 + $0xf8] sm:$0xf]
        %v290 = vld [vmem:[#allocation5 + $0xfc] sm:$0xff]
        %v291 = vld [vmem:[#allocation5 + $0x104] sm:$0xff]
        %v292 = vld [vmem:[#allocation5 + $0x10c] sm:$0xff]
        %v293 = vld [vmem:[#allocation5 + $0x114] sm:$0xff]
        %v294 = vld [vmem:[#allocation5 + $0x11c] sm:$0xf]
        %v295 = vld [vmem:[#allocation5 + $0x120] sm:$0xff]
        %v296 = vld [vmem:[#allocation5 + $0x128] sm:$0xff]
        %v297 = vld [vmem:[#allocation5 + $0x130] sm:$0xff]
        %v298 = vld [vmem:[#allocation5 + $0x138] sm:$0xff]
        %v299 = vld [vmem:[#allocation5 + $0x140] sm:$0xf]
        %v300 = vld [vmem:[#allocation5 + $0x144] sm:$0xff]
        %v301 = vld [vmem:[#allocation5 + $0x14c] sm:$0xff]
        %v302 = vld [vmem:[#allocation5 + $0x154] sm:$0xff]
        %v303 = vld [vmem:[#allocation5 + $0x15c] sm:$0xff]
        %v304 = vld [vmem:[#allocation5 + $0x164] sm:$0xf]
        %v305 = vld [vmem:[#allocation5 + $0x168] sm:$0xff]
        %v306 = vld [vmem:[#allocation5 + $0x170] sm:$0xff]
        %v307 = vld [vmem:[#allocation5 + $0x178] sm:$0xff]
        %v308 = vld [vmem:[#allocation5 + $0x180] sm:$0xff]
        %v309 = vld [vmem:[#allocation5 + $0x188] sm:$0xf]
        %v310 = vld [vmem:[#allocation5 + $0x18c] sm:$0xff]
        %v311 = vld [vmem:[#allocation5 + $0x194] sm:$0xff]
        %v312 = vld [vmem:[#allocation5 + $0x19c] sm:$0xff]
        %v313 = vld [vmem:[#allocation5 + $0x1a4] sm:$0xff]
        %v314 = vld [vmem:[#allocation5 + $0x1ac] sm:$0xf]
        %v315 = vld [vmem:[#allocation5 + $0x1b0] sm:$0xff]
        %v316 = vld [vmem:[#allocation5 + $0x1b8] sm:$0xff]
        %v317 = vld [vmem:[#allocation5 + $0x1c0] sm:$0xff]
        %v318 = vld [vmem:[#allocation5 + $0x1c8] sm:$0xff]
        %v319 = vld [vmem:[#allocation5 + $0x1d0] sm:$0xf]
        %v320 = vld [vmem:[#allocation5 + $0x1d4] sm:$0xff]
        %v321 = vld [vmem:[#allocation5 + $0x1dc] sm:$0xff]
        %v322 = vld [vmem:[#allocation5 + $0x1e4] sm:$0xff]
        %v323 = vld [vmem:[#allocation5 + $0x1ec] sm:$0xff]
        %v324 = vld [vmem:[#allocation5 + $0x1f4] sm:$0xf]
        %v325 = vld [vmem:[#allocation5 + $0x1f8] sm:$0xff]
        %v326 = vld [vmem:[#allocation5 + $0x200] sm:$0xff]
        %v327 = vld [vmem:[#allocation5 + $0x208] sm:$0xff]
        %v328 = vld [vmem:[#allocation5 + $0x210] sm:$0xff]
        %v329 = vld [vmem:[#allocation5 + $0x218] sm:$0xf]
        %v330 = vld [vmem:[#allocation5 + $0x21c] sm:$0xff]
        %v331 = vld [vmem:[#allocation5 + $0x224] sm:$0xff]
        %v332 = vld [vmem:[#allocation5 + $0x22c] sm:$0xff]
        %v333 = vld [vmem:[#allocation5 + $0x234] sm:$0xff]
        %v334 = vld [vmem:[#allocation5 + $0x23c] sm:$0xf]
        %v335 = vld [vmem:[#allocation5 + $0x240] sm:$0xff]
        %v336 = vld [vmem:[#allocation5 + $0x248] sm:$0xff]
        %v337 = vld [vmem:[#allocation5 + $0x250] sm:$0xff]
        %v338 = vld [vmem:[#allocation5 + $0x258] sm:$0xff]
        %v339 = vld [vmem:[#allocation5 + $0x260] sm:$0xf]
        %v340 = vld [vmem:[#allocation5 + $0x264] sm:$0xff]
        %v341 = vld [vmem:[#allocation5 + $0x26c] sm:$0xff]
        %v342 = vld [vmem:[#allocation5 + $0x274] sm:$0xff]
        %v343 = vld [vmem:[#allocation5 + $0x27c] sm:$0xff]
        %v344 = vld [vmem:[#allocation5 + $0x284] sm:$0xf]
        %v345 = vld [vmem:[#allocation5 + $0x288] sm:$0xff]
        %v346 = vld [vmem:[#allocation5 + $0x290] sm:$0xff]
        %v347 = vld [vmem:[#allocation5 + $0x298] sm:$0xff]
        %v348 = vld [vmem:[#allocation5 + $0x2a0] sm:$0xff]
        %v349 = vld [vmem:[#allocation5 + $0x2a8] sm:$0xf]
        %v350 = vld [vmem:[#allocation5 + $0x2ac] sm:$0xff]
        %v351 = vld [vmem:[#allocation5 + $0x2b4] sm:$0xff]
        %v352 = vld [vmem:[#allocation5 + $0x2bc] sm:$0xff]
        %v353 = vld [vmem:[#allocation5 + $0x2c4] sm:$0xff]
        %v354 = vld [vmem:[#allocation5 + $0x2cc] sm:$0xf]
        %v355 = vld [vmem:[#allocation5 + $0x2d0] sm:$0xff]
        %v356 = vld [vmem:[#allocation5 + $0x2d8] sm:$0xff]
        %v357 = vld [vmem:[#allocation5 + $0x2e0] sm:$0xff]
        %v358 = vld [vmem:[#allocation5 + $0x2e8] sm:$0xff]
        %v359 = vld [vmem:[#allocation5 + $0x2f0] sm:$0xf]
        %v360 = vld [vmem:[#allocation5 + $0x2f4] sm:$0xff]
        %v361 = vld [vmem:[#allocation5 + $0x2fc] sm:$0xff]
        %v362 = vld [vmem:[#allocation5 + $0x304] sm:$0xff]
        %v363 = vld [vmem:[#allocation5 + $0x30c] sm:$0xff]
        %v364 = vld [vmem:[#allocation5 + $0x314] sm:$0xf]
        %v365 = vld [vmem:[#allocation5 + $0x318] sm:$0xff]
        %v366 = vld [vmem:[#allocation5 + $0x320] sm:$0xff]
        %v367 = vld [vmem:[#allocation5 + $0x328] sm:$0xff]
        %v368 = vld [vmem:[#allocation5 + $0x330] sm:$0xff]
        %v369 = vld [vmem:[#allocation5 + $0x338] sm:$0xf]
        %v370 = vld [vmem:[#allocation5 + $0x33c] sm:$0xff]
        %v371 = vld [vmem:[#allocation5 + $0x344] sm:$0xff]
        %v372 = vld [vmem:[#allocation5 + $0x34c] sm:$0xff]
        %v373 = vld [vmem:[#allocation5 + $0x354] sm:$0xff]
        %v374 = vld [vmem:[#allocation5 + $0x35c] sm:$0xf]
        %v375 = vld [vmem:[#allocation5 + $0x360] sm:$0xff]
        %v376 = vld [vmem:[#allocation5 + $0x368] sm:$0xff]
        %v377 = vld [vmem:[#allocation5 + $0x370] sm:$0xff]
        %v378 = vld [vmem:[#allocation5 + $0x378] sm:$0xff]
        %v379 = vld [vmem:[#allocation5 + $0x380] sm:$0xf]
        %v380 = vld [vmem:[#allocation5 + $0x384] sm:$0xff]
        %v381 = vld [vmem:[#allocation5 + $0x38c] sm:$0xff]
        %v382 = vld [vmem:[#allocation5 + $0x394] sm:$0xff]
        %v383 = vld [vmem:[#allocation5 + $0x39c] sm:$0xff]
        %v384 = vld [vmem:[#allocation5 + $0x3a4] sm:$0xf]
        %v385 = vld [vmem:[#allocation5 + $0x3a8] sm:$0xff]
        %v386 = vld [vmem:[#allocation5 + $0x3b0] sm:$0xff]
        %v387 = vld [vmem:[#allocation5 + $0x3b8] sm:$0xff]
        %v388 = vld [vmem:[#allocation5 + $0x3c0] sm:$0xff]
        %v389 = vld [vmem:[#allocation5 + $0x3c8] sm:$0xf]
        %v390 = vld [vmem:[#allocation5 + $0x3cc] sm:$0xff]
        %v391 = vld [vmem:[#allocation5 + $0x3d4] sm:$0xff]
        %v392 = vld [vmem:[#allocation5 + $0x3dc] sm:$0xff]
        %v393 = vld [vmem:[#allocation5 + $0x3e4] sm:$0xff]
        %v394 = vld [vmem:[#allocation5 + $0x3ec] sm:$0xf]
        %v395 = vld [vmem:[#allocation5 + $0x3f0] sm:$0xff]
        %v396 = vld [vmem:[#allocation5 + $0x3f8] sm:$0xff]
        %v397 = vld [vmem:[#allocation5 + $0x400] sm:$0xff]
        %v398 = vld [vmem:[#allocation5 + $0x408] sm:$0xff]
        %v399 = vld [vmem:[#allocation5 + $0x410] sm:$0xf]
        %v400 = vld [vmem:[#allocation5 + $0x414] sm:$0xff]
        %v401 = vld [vmem:[#allocation5 + $0x41c] sm:$0xff]
        %v402 = vld [vmem:[#allocation5 + $0x424] sm:$0xff]
        %v403 = vld [vmem:[#allocation5 + $0x42c] sm:$0xff]
        %v404 = vld [vmem:[#allocation5 + $0x434] sm:$0xf]
        %v405 = vld [vmem:[#allocation5 + $0x438] sm:$0xff]
        %v406 = vld [vmem:[#allocation5 + $0x440] sm:$0xff]
        %v407 = vld [vmem:[#allocation5 + $0x448] sm:$0xff]
        %v408 = vld [vmem:[#allocation5 + $0x450] sm:$0xff]
        %v409 = vld [vmem:[#allocation5 + $0x458] sm:$0xf]
        %v410 = vld [vmem:[#allocation5 + $0x45c] sm:$0xff]
        %v411 = vld [vmem:[#allocation5 + $0x464] sm:$0xff]
        %v412 = vld [vmem:[#allocation5 + $0x46c] sm:$0xff]
        %v413 = vld [vmem:[#allocation5 + $0x474] sm:$0xff]
        %v414 = vld [vmem:[#allocation5 + $0x47c] sm:$0xf]
        %v415 = vld [vmem:[#allocation5 + $0x480] sm:$0xff]
        %v416 = vld [vmem:[#allocation5 + $0x488] sm:$0xff]
        %v417 = vld [vmem:[#allocation5 + $0x490] sm:$0xff]
        %v418 = vld [vmem:[#allocation5 + $0x498] sm:$0xff]
        %v419 = vld [vmem:[#allocation5 + $0x4a0] sm:$0xf]
        %v420 = vld [vmem:[#allocation5 + $0x4a4] sm:$0xff]
        %v421 = vld [vmem:[#allocation5 + $0x4ac] sm:$0xff]
        %v422 = vld [vmem:[#allocation5 + $0x4b4] sm:$0xff]
        %v423 = vld [vmem:[#allocation5 + $0x4bc] sm:$0xff]
        %v424 = vld [vmem:[#allocation5 + $0x4c4] sm:$0xf]
        %v425 = vld [vmem:[#allocation5 + $0x4c8] sm:$0xff]
        %v426 = vld [vmem:[#allocation5 + $0x4d0] sm:$0xff]
        %v427 = vld [vmem:[#allocation5 + $0x4d8] sm:$0xff]
        %v428 = vld [vmem:[#allocation5 + $0x4e0] sm:$0xff]
        %v429 = vld [vmem:[#allocation5 + $0x4e8] sm:$0xf]
        %v430 = vld [vmem:[#allocation5 + $0x4ec] sm:$0xff]
        %v431 = vld [vmem:[#allocation5 + $0x4f4] sm:$0xff]
        %v432 = vld [vmem:[#allocation5 + $0x4fc] sm:$0xff]
        %v433 = vld [vmem:[#allocation5 + $0x504] sm:$0xff]
        %v434 = vld [vmem:[#allocation5 + $0x50c] sm:$0xf]
        %v435 = vld [vmem:[#allocation5 + $0x510] sm:$0xff]
        %v436 = vld [vmem:[#allocation5 + $0x518] sm:$0xff]
        %v437 = vld [vmem:[#allocation5 + $0x520] sm:$0xff]
        %v438 = vld [vmem:[#allocation5 + $0x528] sm:$0xff]
        %v439 = vld [vmem:[#allocation5 + $0x530] sm:$0xf]
        %v440 = vld [vmem:[#allocation5 + $0x534] sm:$0xff]
        %v441 = vld [vmem:[#allocation5 + $0x53c] sm:$0xff]
        %v442 = vld [vmem:[#allocation5 + $0x544] sm:$0xff]
        %v443 = vld [vmem:[#allocation5 + $0x54c] sm:$0xff]
        %v444 = vld [vmem:[#allocation5 + $0x554] sm:$0xf]
        %v445 = vld [vmem:[#allocation5 + $0x558] sm:$0xff]
        %v446 = vld [vmem:[#allocation5 + $0x560] sm:$0xff]
        %v447 = vld [vmem:[#allocation5 + $0x568] sm:$0xff]
        %v448 = vld [vmem:[#allocation5 + $0x570] sm:$0xff]
        %v449 = vld [vmem:[#allocation5 + $0x578] sm:$0xf]
        %v450 = vld [vmem:[#allocation5 + $0x57c] sm:$0xff]
        %v451 = vld [vmem:[#allocation5 + $0x584] sm:$0xff]
        %v452 = vld [vmem:[#allocation5 + $0x58c] sm:$0xff]
        %v453 = vld [vmem:[#allocation5 + $0x594] sm:$0xff]
        %v454 = vld [vmem:[#allocation5 + $0x59c] sm:$0xf]
        %v455 = vld [vmem:[#allocation5 + $0x5a0] sm:$0xff]
        %v456 = vld [vmem:[#allocation5 + $0x5a8] sm:$0xff]
        %v457 = vld [vmem:[#allocation5 + $0x5b0] sm:$0xff]
        %v458 = vld [vmem:[#allocation5 + $0x5b8] sm:$0xff]
        %v459 = vld [vmem:[#allocation5 + $0x5c0] sm:$0xf]
        %v460 = vld [vmem:[#allocation5 + $0x5c4] sm:$0xff]
        %v461 = vld [vmem:[#allocation5 + $0x5cc] sm:$0xff]
        %v462 = vld [vmem:[#allocation5 + $0x5d4] sm:$0xff]
        %v463 = vld [vmem:[#allocation5 + $0x5dc] sm:$0xff]
        %v464 = vld [vmem:[#allocation5 + $0x5e4] sm:$0xf]
        %v465 = vld [vmem:[#allocation5 + $0x5e8] sm:$0xff]
        %v466 = vld [vmem:[#allocation5 + $0x5f0] sm:$0xff]
        %v467 = vld [vmem:[#allocation5 + $0x5f8] sm:$0xff]
        %v468 = vld [vmem:[#allocation5 + $0x600] sm:$0xff]
        %v469 = vld [vmem:[#allocation5 + $0x608] sm:$0xf]
        %v470 = vld [vmem:[#allocation5 + $0x60c] sm:$0xff]
        %v471 = vld [vmem:[#allocation5 + $0x614] sm:$0xff]
        %v472 = vld [vmem:[#allocation5 + $0x61c] sm:$0xff]
        %v473 = vld [vmem:[#allocation5 + $0x624] sm:$0xff]
        %v474 = vld [vmem:[#allocation5 + $0x62c] sm:$0xf]
        %v475 = vld [vmem:[#allocation5 + $0x630] sm:$0xff]
        %v476 = vld [vmem:[#allocation5 + $0x638] sm:$0xff]
        %v477 = vld [vmem:[#allocation5 + $0x640] sm:$0xff]
        %v478 = vld [vmem:[#allocation5 + $0x648] sm:$0xff]
        %v479 = vld [vmem:[#allocation5 + $0x650] sm:$0xf]
        %v480 = vld [vmem:[#allocation5 + $0x654] sm:$0xff]
        %v481 = vld [vmem:[#allocation5 + $0x65c] sm:$0xff]
        %v482 = vld [vmem:[#allocation5 + $0x664] sm:$0xff]
        %v483 = vld [vmem:[#allocation5 + $0x66c] sm:$0xff]
        %v484 = vld [vmem:[#allocation5 + $0x674] sm:$0xf]
        %v485 = vld [vmem:[#allocation5 + $0x678] sm:$0xff]
        %v486 = vld [vmem:[#allocation5 + $0x680] sm:$0xff]
        %v487 = vld [vmem:[#allocation5 + $0x688] sm:$0xff]
        %v488 = vld [vmem:[#allocation5 + $0x690] sm:$0xff]
        %v489 = vld [vmem:[#allocation5 + $0x698] sm:$0xf]
        %v490 = vld [vmem:[#allocation5 + $0x69c] sm:$0xff]
        %v491 = vld [vmem:[#allocation5 + $0x6a4] sm:$0xff]
        %v492 = vld [vmem:[#allocation5 + $0x6ac] sm:$0xff]
        %v493 = vld [vmem:[#allocation5 + $0x6b4] sm:$0xff]
        %v494 = vld [vmem:[#allocation5 + $0x6bc] sm:$0xf]
        %v735 = vunpack.c.l.b16 %v255
        %v736 = vunpack.c.h.b16 %v255
        %v737 = vunpack.c.l.b16 %v256
        %v738 = vunpack.c.h.b16 %v256
        %v739 = vunpack.c.l.b16 %v257
        %v740 = vunpack.c.h.b16 %v257
        %v741 = vunpack.c.l.b16 %v258
        %v742 = vunpack.c.h.b16 %v258
        %v743 = vunpack.c.l.b16 %v259
        %v744 = vunpack.c.l.b16 %v260
        %v745 = vunpack.c.h.b16 %v260
        %v746 = vunpack.c.l.b16 %v261
        %v747 = vunpack.c.h.b16 %v261
        %v748 = vunpack.c.l.b16 %v262
        %v749 = vunpack.c.h.b16 %v262
        %v750 = vunpack.c.l.b16 %v263
        %v751 = vunpack.c.h.b16 %v263
        %v752 = vunpack.c.l.b16 %v264
        %v753 = vunpack.c.l.b16 %v265
        %v754 = vunpack.c.h.b16 %v265
        %v755 = vunpack.c.l.b16 %v266
        %v756 = vunpack.c.h.b16 %v266
        %v757 = vunpack.c.l.b16 %v267
        %v758 = vunpack.c.h.b16 %v267
        %v759 = vunpack.c.l.b16 %v268
        %v760 = vunpack.c.h.b16 %v268
        %v761 = vunpack.c.l.b16 %v269
        %v762 = vunpack.c.l.b16 %v270
        %v763 = vunpack.c.h.b16 %v270
        %v764 = vunpack.c.l.b16 %v271
        %v765 = vunpack.c.h.b16 %v271
        %v766 = vunpack.c.l.b16 %v272
        %v767 = vunpack.c.h.b16 %v272
        %v768 = vunpack.c.l.b16 %v273
        %v769 = vunpack.c.h.b16 %v273
        %v770 = vunpack.c.l.b16 %v274
        %v771 = vunpack.c.l.b16 %v275
        %v772 = vunpack.c.h.b16 %v275
        %v773 = vunpack.c.l.b16 %v276
        %v774 = vunpack.c.h.b16 %v276
        %v775 = vunpack.c.l.b16 %v277
        %v776 = vunpack.c.h.b16 %v277
        %v777 = vunpack.c.l.b16 %v278
        %v778 = vunpack.c.h.b16 %v278
        %v779 = vunpack.c.l.b16 %v279
        %v780 = vunpack.c.l.b16 %v280
        %v781 = vunpack.c.h.b16 %v280
        %v782 = vunpack.c.l.b16 %v281
        %v783 = vunpack.c.h.b16 %v281
        %v784 = vunpack.c.l.b16 %v282
        %v785 = vunpack.c.h.b16 %v282
        %v786 = vunpack.c.l.b16 %v283
        %v787 = vunpack.c.h.b16 %v283
        %v788 = vunpack.c.l.b16 %v284
        %v789 = vunpack.c.l.b16 %v285
        %v790 = vunpack.c.h.b16 %v285
        %v791 = vunpack.c.l.b16 %v286
        %v792 = vunpack.c.h.b16 %v286
        %v793 = vunpack.c.l.b16 %v287
        %v794 = vunpack.c.h.b16 %v287
        %v795 = vunpack.c.l.b16 %v288
        %v796 = vunpack.c.h.b16 %v288
        %v797 = vunpack.c.l.b16 %v289
        %v798 = vunpack.c.l.b16 %v290
        %v799 = vunpack.c.h.b16 %v290
        %v800 = vunpack.c.l.b16 %v291
        %v801 = vunpack.c.h.b16 %v291
        %v802 = vunpack.c.l.b16 %v292
        %v803 = vunpack.c.h.b16 %v292
        %v804 = vunpack.c.l.b16 %v293
        %v805 = vunpack.c.h.b16 %v293
        %v806 = vunpack.c.l.b16 %v294
        %v807 = vunpack.c.l.b16 %v295
        %v808 = vunpack.c.h.b16 %v295
        %v809 = vunpack.c.l.b16 %v296
        %v810 = vunpack.c.h.b16 %v296
        %v811 = vunpack.c.l.b16 %v297
        %v812 = vunpack.c.h.b16 %v297
        %v813 = vunpack.c.l.b16 %v298
        %v814 = vunpack.c.h.b16 %v298
        %v815 = vunpack.c.l.b16 %v299
        %v816 = vunpack.c.l.b16 %v300
        %v817 = vunpack.c.h.b16 %v300
        %v818 = vunpack.c.l.b16 %v301
        %v819 = vunpack.c.h.b16 %v301
        %v820 = vunpack.c.l.b16 %v302
        %v821 = vunpack.c.h.b16 %v302
        %v822 = vunpack.c.l.b16 %v303
        %v823 = vunpack.c.h.b16 %v303
        %v824 = vunpack.c.l.b16 %v304
        %v825 = vunpack.c.l.b16 %v305
        %v826 = vunpack.c.h.b16 %v305
        %v827 = vunpack.c.l.b16 %v306
        %v828 = vunpack.c.h.b16 %v306
        %v829 = vunpack.c.l.b16 %v307
        %v830 = vunpack.c.h.b16 %v307
        %v831 = vunpack.c.l.b16 %v308
        %v832 = vunpack.c.h.b16 %v308
        %v833 = vunpack.c.l.b16 %v309
        %v834 = vunpack.c.l.b16 %v310
        %v835 = vunpack.c.h.b16 %v310
        %v836 = vunpack.c.l.b16 %v311
        %v837 = vunpack.c.h.b16 %v311
        %v838 = vunpack.c.l.b16 %v312
        %v839 = vunpack.c.h.b16 %v312
        %v840 = vunpack.c.l.b16 %v313
        %v841 = vunpack.c.h.b16 %v313
        %v842 = vunpack.c.l.b16 %v314
        %v843 = vunpack.c.l.b16 %v315
        %v844 = vunpack.c.h.b16 %v315
        %v845 = vunpack.c.l.b16 %v316
        %v846 = vunpack.c.h.b16 %v316
        %v847 = vunpack.c.l.b16 %v317
        %v848 = vunpack.c.h.b16 %v317
        %v849 = vunpack.c.l.b16 %v318
        %v850 = vunpack.c.h.b16 %v318
        %v851 = vunpack.c.l.b16 %v319
        %v852 = vunpack.c.l.b16 %v320
        %v853 = vunpack.c.h.b16 %v320
        %v854 = vunpack.c.l.b16 %v321
        %v855 = vunpack.c.h.b16 %v321
        %v856 = vunpack.c.l.b16 %v322
        %v857 = vunpack.c.h.b16 %v322
        %v858 = vunpack.c.l.b16 %v323
        %v859 = vunpack.c.h.b16 %v323
        %v860 = vunpack.c.l.b16 %v324
        %v861 = vunpack.c.l.b16 %v325
        %v862 = vunpack.c.h.b16 %v325
        %v863 = vunpack.c.l.b16 %v326
        %v864 = vunpack.c.h.b16 %v326
        %v865 = vunpack.c.l.b16 %v327
        %v866 = vunpack.c.h.b16 %v327
        %v867 = vunpack.c.l.b16 %v328
        %v868 = vunpack.c.h.b16 %v328
        %v869 = vunpack.c.l.b16 %v329
        %v870 = vunpack.c.l.b16 %v330
        %v871 = vunpack.c.h.b16 %v330
        %v872 = vunpack.c.l.b16 %v331
        %v873 = vunpack.c.h.b16 %v331
        %v874 = vunpack.c.l.b16 %v332
        %v875 = vunpack.c.h.b16 %v332
        %v876 = vunpack.c.l.b16 %v333
        %v877 = vunpack.c.h.b16 %v333
        %v878 = vunpack.c.l.b16 %v334
        %v879 = vunpack.c.l.b16 %v335
        %v880 = vunpack.c.h.b16 %v335
        %v881 = vunpack.c.l.b16 %v336
        %v882 = vunpack.c.h.b16 %v336
        %v883 = vunpack.c.l.b16 %v337
        %v884 = vunpack.c.h.b16 %v337
        %v885 = vunpack.c.l.b16 %v338
        %v886 = vunpack.c.h.b16 %v338
        %v887 = vunpack.c.l.b16 %v339
        %v888 = vunpack.c.l.b16 %v340
        %v889 = vunpack.c.h.b16 %v340
        %v890 = vunpack.c.l.b16 %v341
        %v891 = vunpack.c.h.b16 %v341
        %v892 = vunpack.c.l.b16 %v342
        %v893 = vunpack.c.h.b16 %v342
        %v894 = vunpack.c.l.b16 %v343
        %v895 = vunpack.c.h.b16 %v343
        %v896 = vunpack.c.l.b16 %v344
        %v897 = vunpack.c.l.b16 %v345
        %v898 = vunpack.c.h.b16 %v345
        %v899 = vunpack.c.l.b16 %v346
        %v900 = vunpack.c.h.b16 %v346
        %v901 = vunpack.c.l.b16 %v347
        %v902 = vunpack.c.h.b16 %v347
        %v903 = vunpack.c.l.b16 %v348
        %v904 = vunpack.c.h.b16 %v348
        %v905 = vunpack.c.l.b16 %v349
        %v906 = vunpack.c.l.b16 %v350
        %v907 = vunpack.c.h.b16 %v350
        %v908 = vunpack.c.l.b16 %v351
        %v909 = vunpack.c.h.b16 %v351
        %v910 = vunpack.c.l.b16 %v352
        %v911 = vunpack.c.h.b16 %v352
        %v912 = vunpack.c.l.b16 %v353
        %v913 = vunpack.c.h.b16 %v353
        %v914 = vunpack.c.l.b16 %v354
        %v915 = vunpack.c.l.b16 %v355
        %v916 = vunpack.c.h.b16 %v355
        %v917 = vunpack.c.l.b16 %v356
        %v918 = vunpack.c.h.b16 %v356
        %v919 = vunpack.c.l.b16 %v357
        %v920 = vunpack.c.h.b16 %v357
        %v921 = vunpack.c.l.b16 %v358
        %v922 = vunpack.c.h.b16 %v358
        %v923 = vunpack.c.l.b16 %v359
        %v924 = vunpack.c.l.b16 %v360
        %v925 = vunpack.c.h.b16 %v360
        %v926 = vunpack.c.l.b16 %v361
        %v927 = vunpack.c.h.b16 %v361
        %v928 = vunpack.c.l.b16 %v362
        %v929 = vunpack.c.h.b16 %v362
        %v930 = vunpack.c.l.b16 %v363
        %v931 = vunpack.c.h.b16 %v363
        %v932 = vunpack.c.l.b16 %v364
        %v933 = vunpack.c.l.b16 %v365
        %v934 = vunpack.c.h.b16 %v365
        %v935 = vunpack.c.l.b16 %v366
        %v936 = vunpack.c.h.b16 %v366
        %v937 = vunpack.c.l.b16 %v367
        %v938 = vunpack.c.h.b16 %v367
        %v939 = vunpack.c.l.b16 %v368
        %v940 = vunpack.c.h.b16 %v368
        %v941 = vunpack.c.l.b16 %v369
        %v942 = vunpack.c.l.b16 %v370
        %v943 = vunpack.c.h.b16 %v370
        %v944 = vunpack.c.l.b16 %v371
        %v945 = vunpack.c.h.b16 %v371
        %v946 = vunpack.c.l.b16 %v372
        %v947 = vunpack.c.h.b16 %v372
        %v948 = vunpack.c.l.b16 %v373
        %v949 = vunpack.c.h.b16 %v373
        %v950 = vunpack.c.l.b16 %v374
        %v951 = vunpack.c.l.b16 %v375
        %v952 = vunpack.c.h.b16 %v375
        %v953 = vunpack.c.l.b16 %v376
        %v954 = vunpack.c.h.b16 %v376
        %v955 = vunpack.c.l.b16 %v377
        %v956 = vunpack.c.h.b16 %v377
        %v957 = vunpack.c.l.b16 %v378
        %v958 = vunpack.c.h.b16 %v378
        %v959 = vunpack.c.l.b16 %v379
        %v960 = vunpack.c.l.b16 %v380
        %v961 = vunpack.c.h.b16 %v380
        %v962 = vunpack.c.l.b16 %v381
        %v963 = vunpack.c.h.b16 %v381
        %v964 = vunpack.c.l.b16 %v382
        %v965 = vunpack.c.h.b16 %v382
        %v966 = vunpack.c.l.b16 %v383
        %v967 = vunpack.c.h.b16 %v383
        %v968 = vunpack.c.l.b16 %v384
        %v969 = vunpack.c.l.b16 %v385
        %v970 = vunpack.c.h.b16 %v385
        %v971 = vunpack.c.l.b16 %v386
        %v972 = vunpack.c.h.b16 %v386
        %v973 = vunpack.c.l.b16 %v387
        %v974 = vunpack.c.h.b16 %v387
        %v975 = vunpack.c.l.b16 %v388
        %v976 = vunpack.c.h.b16 %v388
        %v977 = vunpack.c.l.b16 %v389
        %v978 = vunpack.c.l.b16 %v390
        %v979 = vunpack.c.h.b16 %v390
        %v980 = vunpack.c.l.b16 %v391
        %v981 = vunpack.c.h.b16 %v391
        %v982 = vunpack.c.l.b16 %v392
        %v983 = vunpack.c.h.b16 %v392
        %v984 = vunpack.c.l.b16 %v393
        %v985 = vunpack.c.h.b16 %v393
        %v986 = vunpack.c.l.b16 %v394
        %v987 = vunpack.c.l.b16 %v395
        %v988 = vunpack.c.h.b16 %v395
        %v989 = vunpack.c.l.b16 %v396
        %v990 = vunpack.c.h.b16 %v396
        %v991 = vunpack.c.l.b16 %v397
        %v992 = vunpack.c.h.b16 %v397
        %v993 = vunpack.c.l.b16 %v398
        %v994 = vunpack.c.h.b16 %v398
        %v995 = vunpack.c.l.b16 %v399
        %v996 = vunpack.c.l.b16 %v400
        %v997 = vunpack.c.h.b16 %v400
        %v998 = vunpack.c.l.b16 %v401
        %v999 = vunpack.c.h.b16 %v401
        %v1000 = vunpack.c.l.b16 %v402
        %v1001 = vunpack.c.h.b16 %v402
        %v1002 = vunpack.c.l.b16 %v403
        %v1003 = vunpack.c.h.b16 %v403
        %v1004 = vunpack.c.l.b16 %v404
        %v1005 = vunpack.c.l.b16 %v405
        %v1006 = vunpack.c.h.b16 %v405
        %v1007 = vunpack.c.l.b16 %v406
        %v1008 = vunpack.c.h.b16 %v406
        %v1009 = vunpack.c.l.b16 %v407
        %v1010 = vunpack.c.h.b16 %v407
        %v1011 = vunpack.c.l.b16 %v408
        %v1012 = vunpack.c.h.b16 %v408
        %v1013 = vunpack.c.l.b16 %v409
        %v1014 = vunpack.c.l.b16 %v410
        %v1015 = vunpack.c.h.b16 %v410
        %v1016 = vunpack.c.l.b16 %v411
        %v1017 = vunpack.c.h.b16 %v411
        %v1018 = vunpack.c.l.b16 %v412
        %v1019 = vunpack.c.h.b16 %v412
        %v1020 = vunpack.c.l.b16 %v413
        %v1021 = vunpack.c.h.b16 %v413
        %v1022 = vunpack.c.l.b16 %v414
        %v1023 = vunpack.c.l.b16 %v415
        %v1024 = vunpack.c.h.b16 %v415
        %v1025 = vunpack.c.l.b16 %v416
        %v1026 = vunpack.c.h.b16 %v416
        %v1027 = vunpack.c.l.b16 %v417
        %v1028 = vunpack.c.h.b16 %v417
        %v1029 = vunpack.c.l.b16 %v418
        %v1030 = vunpack.c.h.b16 %v418
        %v1031 = vunpack.c.l.b16 %v419
        %v1032 = vunpack.c.l.b16 %v420
        %v1033 = vunpack.c.h.b16 %v420
        %v1034 = vunpack.c.l.b16 %v421
        %v1035 = vunpack.c.h.b16 %v421
        %v1036 = vunpack.c.l.b16 %v422
        %v1037 = vunpack.c.h.b16 %v422
        %v1038 = vunpack.c.l.b16 %v423
        %v1039 = vunpack.c.h.b16 %v423
        %v1040 = vunpack.c.l.b16 %v424
        %v1041 = vunpack.c.l.b16 %v425
        %v1042 = vunpack.c.h.b16 %v425
        %v1043 = vunpack.c.l.b16 %v426
        %v1044 = vunpack.c.h.b16 %v426
        %v1045 = vunpack.c.l.b16 %v427
        %v1046 = vunpack.c.h.b16 %v427
        %v1047 = vunpack.c.l.b16 %v428
        %v1048 = vunpack.c.h.b16 %v428
        %v1049 = vunpack.c.l.b16 %v429
        %v1050 = vunpack.c.l.b16 %v430
        %v1051 = vunpack.c.h.b16 %v430
        %v1052 = vunpack.c.l.b16 %v431
        %v1053 = vunpack.c.h.b16 %v431
        %v1054 = vunpack.c.l.b16 %v432
        %v1055 = vunpack.c.h.b16 %v432
        %v1056 = vunpack.c.l.b16 %v433
        %v1057 = vunpack.c.h.b16 %v433
        %v1058 = vunpack.c.l.b16 %v434
        %v1059 = vunpack.c.l.b16 %v435
        %v1060 = vunpack.c.h.b16 %v435
        %v1061 = vunpack.c.l.b16 %v436
        %v1062 = vunpack.c.h.b16 %v436
        %v1063 = vunpack.c.l.b16 %v437
        %v1064 = vunpack.c.h.b16 %v437
        %v1065 = vunpack.c.l.b16 %v438
        %v1066 = vunpack.c.h.b16 %v438
        %v1067 = vunpack.c.l.b16 %v439
        %v1068 = vunpack.c.l.b16 %v440
        %v1069 = vunpack.c.h.b16 %v440
        %v1070 = vunpack.c.l.b16 %v441
        %v1071 = vunpack.c.h.b16 %v441
        %v1072 = vunpack.c.l.b16 %v442
        %v1073 = vunpack.c.h.b16 %v442
        %v1074 = vunpack.c.l.b16 %v443
        %v1075 = vunpack.c.h.b16 %v443
        %v1076 = vunpack.c.l.b16 %v444
        %v1077 = vunpack.c.l.b16 %v445
        %v1078 = vunpack.c.h.b16 %v445
        %v1079 = vunpack.c.l.b16 %v446
        %v1080 = vunpack.c.h.b16 %v446
        %v1081 = vunpack.c.l.b16 %v447
        %v1082 = vunpack.c.h.b16 %v447
        %v1083 = vunpack.c.l.b16 %v448
        %v1084 = vunpack.c.h.b16 %v448
        %v1085 = vunpack.c.l.b16 %v449
        %v1086 = vunpack.c.l.b16 %v450
        %v1087 = vunpack.c.h.b16 %v450
        %v1088 = vunpack.c.l.b16 %v451
        %v1089 = vunpack.c.h.b16 %v451
        %v1090 = vunpack.c.l.b16 %v452
        %v1091 = vunpack.c.h.b16 %v452
        %v1092 = vunpack.c.l.b16 %v453
        %v1093 = vunpack.c.h.b16 %v453
        %v1094 = vunpack.c.l.b16 %v454
        %v1095 = vunpack.c.l.b16 %v455
        %v1096 = vunpack.c.h.b16 %v455
        %v1097 = vunpack.c.l.b16 %v456
        %v1098 = vunpack.c.h.b16 %v456
        %v1099 = vunpack.c.l.b16 %v457
        %v1100 = vunpack.c.h.b16 %v457
        %v1101 = vunpack.c.l.b16 %v458
        %v1102 = vunpack.c.h.b16 %v458
        %v1103 = vunpack.c.l.b16 %v459
        %v1104 = vunpack.c.l.b16 %v460
        %v1105 = vunpack.c.h.b16 %v460
        %v1106 = vunpack.c.l.b16 %v461
        %v1107 = vunpack.c.h.b16 %v461
        %v1108 = vunpack.c.l.b16 %v462
        %v1109 = vunpack.c.h.b16 %v462
        %v1110 = vunpack.c.l.b16 %v463
        %v1111 = vunpack.c.h.b16 %v463
        %v1112 = vunpack.c.l.b16 %v464
        %v1113 = vunpack.c.l.b16 %v465
        %v1114 = vunpack.c.h.b16 %v465
        %v1115 = vunpack.c.l.b16 %v466
        %v1116 = vunpack.c.h.b16 %v466
        %v1117 = vunpack.c.l.b16 %v467
        %v1118 = vunpack.c.h.b16 %v467
        %v1119 = vunpack.c.l.b16 %v468
        %v1120 = vunpack.c.h.b16 %v468
        %v1121 = vunpack.c.l.b16 %v469
        %v1122 = vunpack.c.l.b16 %v470
        %v1123 = vunpack.c.h.b16 %v470
        %v1124 = vunpack.c.l.b16 %v471
        %v1125 = vunpack.c.h.b16 %v471
        %v1126 = vunpack.c.l.b16 %v472
        %v1127 = vunpack.c.h.b16 %v472
        %v1128 = vunpack.c.l.b16 %v473
        %v1129 = vunpack.c.h.b16 %v473
        %v1130 = vunpack.c.l.b16 %v474
        %v1131 = vunpack.c.l.b16 %v475
        %v1132 = vunpack.c.h.b16 %v475
        %v1133 = vunpack.c.l.b16 %v476
        %v1134 = vunpack.c.h.b16 %v476
        %v1135 = vunpack.c.l.b16 %v477
        %v1136 = vunpack.c.h.b16 %v477
        %v1137 = vunpack.c.l.b16 %v478
        %v1138 = vunpack.c.h.b16 %v478
        %v1139 = vunpack.c.l.b16 %v479
        %v1140 = vunpack.c.l.b16 %v480
        %v1141 = vunpack.c.h.b16 %v480
        %v1142 = vunpack.c.l.b16 %v481
        %v1143 = vunpack.c.h.b16 %v481
        %v1144 = vunpack.c.l.b16 %v482
        %v1145 = vunpack.c.h.b16 %v482
        %v1146 = vunpack.c.l.b16 %v483
        %v1147 = vunpack.c.h.b16 %v483
        %v1148 = vunpack.c.l.b16 %v484
        %v1149 = vunpack.c.l.b16 %v485
        %v1150 = vunpack.c.h.b16 %v485
        %v1151 = vunpack.c.l.b16 %v486
        %v1152 = vunpack.c.h.b16 %v486
        %v1153 = vunpack.c.l.b16 %v487
        %v1154 = vunpack.c.h.b16 %v487
        %v1155 = vunpack.c.l.b16 %v488
        %v1156 = vunpack.c.h.b16 %v488
        %v1157 = vunpack.c.l.b16 %v489
        %v1158 = vunpack.c.l.b16 %v490
        %v1159 = vunpack.c.h.b16 %v490
        %v1160 = vunpack.c.l.b16 %v491
        %v1161 = vunpack.c.h.b16 %v491
        %v1162 = vunpack.c.l.b16 %v492
        %v1163 = vunpack.c.h.b16 %v492
        %v1164 = vunpack.c.l.b16 %v493
        %v1165 = vunpack.c.h.b16 %v493
        %v1166 = vunpack.c.l.b16 %v494
        %v1167 = vpack.c.b16 %v744, %v735
        %v1168 = vpack.c.b16 %v745, %v736
        %v1169 = vpack.c.b16 %v746, %v737
        %v1170 = vpack.c.b16 %v747, %v738
        %v1171 = vpack.c.b16 %v748, %v739
        %v1172 = vpack.c.b16 %v749, %v740
        %v1173 = vpack.c.b16 %v750, %v741
        %v1174 = vpack.c.b16 %v751, %v742
        %v1175 = vpack.c.b16 %v752, %v743
        %v1176 = vpack.c.b16 %v762, %v753
        %v1177 = vpack.c.b16 %v763, %v754
        %v1178 = vpack.c.b16 %v764, %v755
        %v1179 = vpack.c.b16 %v765, %v756
        %v1180 = vpack.c.b16 %v766, %v757
        %v1181 = vpack.c.b16 %v767, %v758
        %v1182 = vpack.c.b16 %v768, %v759
        %v1183 = vpack.c.b16 %v769, %v760
        %v1184 = vpack.c.b16 %v770, %v761
        %v1185 = vpack.c.b16 %v780, %v771
        %v1186 = vpack.c.b16 %v781, %v772
        %v1187 = vpack.c.b16 %v782, %v773
        %v1188 = vpack.c.b16 %v783, %v774
        %v1189 = vpack.c.b16 %v784, %v775
        %v1190 = vpack.c.b16 %v785, %v776
        %v1191 = vpack.c.b16 %v786, %v777
        %v1192 = vpack.c.b16 %v787, %v778
        %v1193 = vpack.c.b16 %v788, %v779
        %v1194 = vpack.c.b16 %v798, %v789
        %v1195 = vpack.c.b16 %v799, %v790
        %v1196 = vpack.c.b16 %v800, %v791
        %v1197 = vpack.c.b16 %v801, %v792
        %v1198 = vpack.c.b16 %v802, %v793
        %v1199 = vpack.c.b16 %v803, %v794
        %v1200 = vpack.c.b16 %v804, %v795
        %v1201 = vpack.c.b16 %v805, %v796
        %v1202 = vpack.c.b16 %v806, %v797
        %v1203 = vpack.c.b16 %v816, %v807
        %v1204 = vpack.c.b16 %v817, %v808
        %v1205 = vpack.c.b16 %v818, %v809
        %v1206 = vpack.c.b16 %v819, %v810
        %v1207 = vpack.c.b16 %v820, %v811
        %v1208 = vpack.c.b16 %v821, %v812
        %v1209 = vpack.c.b16 %v822, %v813
        %v1210 = vpack.c.b16 %v823, %v814
        %v1211 = vpack.c.b16 %v824, %v815
        %v1212 = vpack.c.b16 %v834, %v825
        %v1213 = vpack.c.b16 %v835, %v826
        %v1214 = vpack.c.b16 %v836, %v827
        %v1215 = vpack.c.b16 %v837, %v828
        %v1216 = vpack.c.b16 %v838, %v829
        %v1217 = vpack.c.b16 %v839, %v830
        %v1218 = vpack.c.b16 %v840, %v831
        %v1219 = vpack.c.b16 %v841, %v832
        %v1220 = vpack.c.b16 %v842, %v833
        %v1221 = vpack.c.b16 %v852, %v843
        %v1222 = vpack.c.b16 %v853, %v844
        %v1223 = vpack.c.b16 %v854, %v845
        %v1224 = vpack.c.b16 %v855, %v846
        %v1225 = vpack.c.b16 %v856, %v847
        %v1226 = vpack.c.b16 %v857, %v848
        %v1227 = vpack.c.b16 %v858, %v849
        %v1228 = vpack.c.b16 %v859, %v850
        %v1229 = vpack.c.b16 %v860, %v851
        %v1230 = vpack.c.b16 %v870, %v861
        %v1231 = vpack.c.b16 %v871, %v862
        %v1232 = vpack.c.b16 %v872, %v863
        %v1233 = vpack.c.b16 %v873, %v864
        %v1234 = vpack.c.b16 %v874, %v865
        %v1235 = vpack.c.b16 %v875, %v866
        %v1236 = vpack.c.b16 %v876, %v867
        %v1237 = vpack.c.b16 %v877, %v868
        %v1238 = vpack.c.b16 %v878, %v869
        %v1239 = vpack.c.b16 %v888, %v879
        %v1240 = vpack.c.b16 %v889, %v880
        %v1241 = vpack.c.b16 %v890, %v881
        %v1242 = vpack.c.b16 %v891, %v882
        %v1243 = vpack.c.b16 %v892, %v883
        %v1244 = vpack.c.b16 %v893, %v884
        %v1245 = vpack.c.b16 %v894, %v885
        %v1246 = vpack.c.b16 %v895, %v886
        %v1247 = vpack.c.b16 %v896, %v887
        %v1248 = vpack.c.b16 %v906, %v897
        %v1249 = vpack.c.b16 %v907, %v898
        %v1250 = vpack.c.b16 %v908, %v899
        %v1251 = vpack.c.b16 %v909, %v900
        %v1252 = vpack.c.b16 %v910, %v901
        %v1253 = vpack.c.b16 %v911, %v902
        %v1254 = vpack.c.b16 %v912, %v903
        %v1255 = vpack.c.b16 %v913, %v904
        %v1256 = vpack.c.b16 %v914, %v905
        %v1257 = vpack.c.b16 %v924, %v915
        %v1258 = vpack.c.b16 %v925, %v916
        %v1259 = vpack.c.b16 %v926, %v917
        %v1260 = vpack.c.b16 %v927, %v918
        %v1261 = vpack.c.b16 %v928, %v919
        %v1262 = vpack.c.b16 %v929, %v920
        %v1263 = vpack.c.b16 %v930, %v921
        %v1264 = vpack.c.b16 %v931, %v922
        %v1265 = vpack.c.b16 %v932, %v923
        %v1266 = vpack.c.b16 %v942, %v933
        %v1267 = vpack.c.b16 %v943, %v934
        %v1268 = vpack.c.b16 %v944, %v935
        %v1269 = vpack.c.b16 %v945, %v936
        %v1270 = vpack.c.b16 %v946, %v937
        %v1271 = vpack.c.b16 %v947, %v938
        %v1272 = vpack.c.b16 %v948, %v939
        %v1273 = vpack.c.b16 %v949, %v940
        %v1274 = vpack.c.b16 %v950, %v941
        %v1275 = vpack.c.b16 %v960, %v951
        %v1276 = vpack.c.b16 %v961, %v952
        %v1277 = vpack.c.b16 %v962, %v953
        %v1278 = vpack.c.b16 %v963, %v954
        %v1279 = vpack.c.b16 %v964, %v955
        %v1280 = vpack.c.b16 %v965, %v956
        %v1281 = vpack.c.b16 %v966, %v957
        %v1282 = vpack.c.b16 %v967, %v958
        %v1283 = vpack.c.b16 %v968, %v959
        %v1284 = vpack.c.b16 %v978, %v969
        %v1285 = vpack.c.b16 %v979, %v970
        %v1286 = vpack.c.b16 %v980, %v971
        %v1287 = vpack.c.b16 %v981, %v972
        %v1288 = vpack.c.b16 %v982, %v973
        %v1289 = vpack.c.b16 %v983, %v974
        %v1290 = vpack.c.b16 %v984, %v975
        %v1291 = vpack.c.b16 %v985, %v976
        %v1292 = vpack.c.b16 %v986, %v977
        %v1293 = vpack.c.b16 %v996, %v987
        %v1294 = vpack.c.b16 %v997, %v988
        %v1295 = vpack.c.b16 %v998, %v989
        %v1296 = vpack.c.b16 %v999, %v990
        %v1297 = vpack.c.b16 %v1000, %v991
        %v1298 = vpack.c.b16 %v1001, %v992
        %v1299 = vpack.c.b16 %v1002, %v993
        %v1300 = vpack.c.b16 %v1003, %v994
        %v1301 = vpack.c.b16 %v1004, %v995
        %v1302 = vpack.c.b16 %v1014, %v1005
        %v1303 = vpack.c.b16 %v1015, %v1006
        %v1304 = vpack.c.b16 %v1016, %v1007
        %v1305 = vpack.c.b16 %v1017, %v1008
        %v1306 = vpack.c.b16 %v1018, %v1009
        %v1307 = vpack.c.b16 %v1019, %v1010
        %v1308 = vpack.c.b16 %v1020, %v1011
        %v1309 = vpack.c.b16 %v1021, %v1012
        %v1310 = vpack.c.b16 %v1022, %v1013
        %v1311 = vpack.c.b16 %v1032, %v1023
        %v1312 = vpack.c.b16 %v1033, %v1024
        %v1313 = vpack.c.b16 %v1034, %v1025
        %v1314 = vpack.c.b16 %v1035, %v1026
        %v1315 = vpack.c.b16 %v1036, %v1027
        %v1316 = vpack.c.b16 %v1037, %v1028
        %v1317 = vpack.c.b16 %v1038, %v1029
        %v1318 = vpack.c.b16 %v1039, %v1030
        %v1319 = vpack.c.b16 %v1040, %v1031
        %v1320 = vpack.c.b16 %v1050, %v1041
        %v1321 = vpack.c.b16 %v1051, %v1042
        %v1322 = vpack.c.b16 %v1052, %v1043
        %v1323 = vpack.c.b16 %v1053, %v1044
        %v1324 = vpack.c.b16 %v1054, %v1045
        %v1325 = vpack.c.b16 %v1055, %v1046
        %v1326 = vpack.c.b16 %v1056, %v1047
        %v1327 = vpack.c.b16 %v1057, %v1048
        %v1328 = vpack.c.b16 %v1058, %v1049
        %v1329 = vpack.c.b16 %v1068, %v1059
        %v1330 = vpack.c.b16 %v1069, %v1060
        %v1331 = vpack.c.b16 %v1070, %v1061
        %v1332 = vpack.c.b16 %v1071, %v1062
        %v1333 = vpack.c.b16 %v1072, %v1063
        %v1334 = vpack.c.b16 %v1073, %v1064
        %v1335 = vpack.c.b16 %v1074, %v1065
        %v1336 = vpack.c.b16 %v1075, %v1066
        %v1337 = vpack.c.b16 %v1076, %v1067
        %v1338 = vpack.c.b16 %v1086, %v1077
        %v1339 = vpack.c.b16 %v1087, %v1078
        %v1340 = vpack.c.b16 %v1088, %v1079
        %v1341 = vpack.c.b16 %v1089, %v1080
        %v1342 = vpack.c.b16 %v1090, %v1081
        %v1343 = vpack.c.b16 %v1091, %v1082
        %v1344 = vpack.c.b16 %v1092, %v1083
        %v1345 = vpack.c.b16 %v1093, %v1084
        %v1346 = vpack.c.b16 %v1094, %v1085
        %v1347 = vpack.c.b16 %v1104, %v1095
        %v1348 = vpack.c.b16 %v1105, %v1096
        %v1349 = vpack.c.b16 %v1106, %v1097
        %v1350 = vpack.c.b16 %v1107, %v1098
        %v1351 = vpack.c.b16 %v1108, %v1099
        %v1352 = vpack.c.b16 %v1109, %v1100
        %v1353 = vpack.c.b16 %v1110, %v1101
        %v1354 = vpack.c.b16 %v1111, %v1102
        %v1355 = vpack.c.b16 %v1112, %v1103
        %v1356 = vpack.c.b16 %v1122, %v1113
        %v1357 = vpack.c.b16 %v1123, %v1114
        %v1358 = vpack.c.b16 %v1124, %v1115
        %v1359 = vpack.c.b16 %v1125, %v1116
        %v1360 = vpack.c.b16 %v1126, %v1117
        %v1361 = vpack.c.b16 %v1127, %v1118
        %v1362 = vpack.c.b16 %v1128, %v1119
        %v1363 = vpack.c.b16 %v1129, %v1120
        %v1364 = vpack.c.b16 %v1130, %v1121
        %v1365 = vpack.c.b16 %v1140, %v1131
        %v1366 = vpack.c.b16 %v1141, %v1132
        %v1367 = vpack.c.b16 %v1142, %v1133
        %v1368 = vpack.c.b16 %v1143, %v1134
        %v1369 = vpack.c.b16 %v1144, %v1135
        %v1370 = vpack.c.b16 %v1145, %v1136
        %v1371 = vpack.c.b16 %v1146, %v1137
        %v1372 = vpack.c.b16 %v1147, %v1138
        %v1373 = vpack.c.b16 %v1148, %v1139
        %v1374 = vpack.c.b16 %v1158, %v1149
        %v1375 = vpack.c.b16 %v1159, %v1150
        %v1376 = vpack.c.b16 %v1160, %v1151
        %v1377 = vpack.c.b16 %v1161, %v1152
        %v1378 = vpack.c.b16 %v1162, %v1153
        %v1379 = vpack.c.b16 %v1163, %v1154
        %v1380 = vpack.c.b16 %v1164, %v1155
        %v1381 = vpack.c.b16 %v1165, %v1156
        %v1382 = vpack.c.b16 %v1166, %v1157
        %1599 = vmatprep.subr.bf16.mxu0 %v1231
        %1600 = vmatpush1.bf16.msra.mxu0 %v1230
        %1601 = vmatprep.subr.bf16.mxu0 %v1222
        %1602 = vmatpush1.bf16.msra.mxu0 %v1221
        %1603 = vmatprep.subr.bf16.mxu0 %v1213
        %1604 = vmatpush1.bf16.msra.mxu0 %v1212
        %1605 = vmatprep.subr.bf16.mxu0 %v1204
        %1606 = vmatpush1.bf16.msra.mxu0 %v1203
        %1607 = vmatprep.subr.bf16.mxu0 %v1195
        %1608 = vmatpush1.bf16.msra.mxu0 %v1194
        %1609 = vmatprep.subr.bf16.mxu0 %v1186
        %1610 = vmatpush1.bf16.msra.mxu0 %v1185
        %1611 = vmatprep.subr.bf16.mxu0 %v1177
        %1612 = vmatpush1.bf16.msra.mxu0 %v1176
        %1613 = vmatprep.subr.bf16.mxu0 %v1168
        %1614 = vmatpush1.bf16.msra.mxu0 %v1167
        %1615 = vmatprep.subr.bf16.mxu0 %v1303
        %1616 = vmatpush2.bf16.msra.mxu0 %v1302
        %1617 = vmatprep.subr.bf16.mxu0 %v1294
        %1618 = vmatpush2.bf16.msra.mxu0 %v1293
        %1619 = vmatprep.subr.bf16.mxu0 %v1285
        %1620 = vmatpush2.bf16.msra.mxu0 %v1284
        %1621 = vmatprep.subr.bf16.mxu0 %v1276
        %1622 = vmatpush2.bf16.msra.mxu0 %v1275
        %1623 = vmatprep.subr.bf16.mxu0 %v1267
        %1624 = vmatpush2.bf16.msra.mxu0 %v1266
        %1625 = vmatprep.subr.bf16.mxu0 %v1258
        %1626 = vmatpush2.bf16.msra.mxu0 %v1257
        %1627 = vmatprep.subr.bf16.mxu0 %v1249
        %1628 = vmatpush2.bf16.msra.mxu0 %v1248
        %1629 = vmatprep.subr.bf16.mxu0 %v1240
        %1630 = vmatpush2.bf16.msra.mxu0 %v1239
        %1631 = vmatprep.mubr.bf16.mxu0 %v253
        %1632 = vmatmul.mubr.bf16.gmra.mxu0 %v252
        %v1633 = vpop.f32.mrf.mxu0
        %v1634 = vadd.f32 0.0, %v1633
        %v1635 = vpop.f32.mrf.mxu0
        %v1636 = vadd.f32 0.0, %v1635
        %v1637 = vpop.f32.mrf.mxu0
        %v1638 = vadd.f32 0.0, %v1637
        %v1639 = vpop.f32.mrf.mxu0
        %v1640 = vadd.f32 0.0, %v1639
        %1641 = vdwg.mxu0
        %1642 = vmatprep.subr.bf16.mxu0 %v1375
        %1643 = vmatpush1.bf16.msra.mxu0 %v1374
        %1644 = vmatprep.subr.bf16.mxu0 %v1366
        %1645 = vmatpush1.bf16.msra.mxu0 %v1365
        %1646 = vmatprep.subr.bf16.mxu0 %v1357
        %1647 = vmatpush1.bf16.msra.mxu0 %v1356
        %1648 = vmatprep.subr.bf16.mxu0 %v1348
        %1649 = vmatpush1.bf16.msra.mxu0 %v1347
        %1650 = vmatprep.subr.bf16.mxu0 %v1339
        %1651 = vmatpush1.bf16.msra.mxu0 %v1338
        %1652 = vmatprep.subr.bf16.mxu0 %v1330
        %1653 = vmatpush1.bf16.msra.mxu0 %v1329
        %1654 = vmatprep.subr.bf16.mxu0 %v1321
        %1655 = vmatpush1.bf16.msra.mxu0 %v1320
        %1656 = vmatprep.subr.bf16.mxu0 %v1312
        %1657 = vmatpush1.bf16.msra.mxu0 %v1311
        %1658 = vmatprep.subr.bf16.mxu0 0
        %1659 = vmatpush2.bf16.msra.mxu0 0
        %1660 = vmatprep.subr.bf16.mxu0 0
        %1661 = vmatpush2.bf16.msra.mxu0 0
        %1662 = vmatprep.subr.bf16.mxu0 0
        %1663 = vmatpush2.bf16.msra.mxu0 0
        %1664 = vmatprep.subr.bf16.mxu0 0
        %1665 = vmatpush2.bf16.msra.mxu0 0
        %1666 = vmatprep.subr.bf16.mxu0 0
        %1667 = vmatpush2.bf16.msra.mxu0 0
        %1668 = vmatprep.subr.bf16.mxu0 0
        %1669 = vmatpush2.bf16.msra.mxu0 0
        %1670 = vmatprep.subr.bf16.mxu0 0
        %1671 = vmatpush2.bf16.msra.mxu0 0
        %1672 = vmatprep.subr.bf16.mxu0 0
        %1673 = vmatpush2.bf16.msra.mxu0 0
        %1674 = vmatprep.mubr.bf16.mxu0 0
        %1675 = vmatmul.mubr.bf16.gmra.mxu0 %v254
        %v1676 = vpop.f32.mrf.mxu0
        %v1677 = vadd.f32 %v1634, %v1676
        %v1678 = vpop.f32.mrf.mxu0
        %v1679 = vadd.f32 %v1636, %v1678
        %v1680 = vpop.f32.mrf.mxu0
        %v1681 = vadd.f32 %v1638, %v1680
        %v1682 = vpop.f32.mrf.mxu0
        %v1683 = vadd.f32 %v1640, %v1682
        %1684 = vdwg.mxu0
        %1685 = vmatprep.subr.bf16.mxu0 %v1233
        %1686 = vmatpush1.bf16.msra.mxu0 %v1232
        %1687 = vmatprep.subr.bf16.mxu0 %v1224
        %1688 = vmatpush1.bf16.msra.mxu0 %v1223
        %1689 = vmatprep.subr.bf16.mxu0 %v1215
        %1690 = vmatpush1.bf16.msra.mxu0 %v1214
        %1691 = vmatprep.subr.bf16.mxu0 %v1206
        %1692 = vmatpush1.bf16.msra.mxu0 %v1205
        %1693 = vmatprep.subr.bf16.mxu0 %v1197
        %1694 = vmatpush1.bf16.msra.mxu0 %v1196
        %1695 = vmatprep.subr.bf16.mxu0 %v1188
        %1696 = vmatpush1.bf16.msra.mxu0 %v1187
        %1697 = vmatprep.subr.bf16.mxu0 %v1179
        %1698 = vmatpush1.bf16.msra.mxu0 %v1178
        %1699 = vmatprep.subr.bf16.mxu0 %v1170
        %1700 = vmatpush1.bf16.msra.mxu0 %v1169
        %1701 = vmatprep.subr.bf16.mxu0 %v1305
        %1702 = vmatpush2.bf16.msra.mxu0 %v1304
        %1703 = vmatprep.subr.bf16.mxu0 %v1296
        %1704 = vmatpush2.bf16.msra.mxu0 %v1295
        %1705 = vmatprep.subr.bf16.mxu0 %v1287
        %1706 = vmatpush2.bf16.msra.mxu0 %v1286
        %1707 = vmatprep.subr.bf16.mxu0 %v1278
        %1708 = vmatpush2.bf16.msra.mxu0 %v1277
        %1709 = vmatprep.subr.bf16.mxu0 %v1269
        %1710 = vmatpush2.bf16.msra.mxu0 %v1268
        %1711 = vmatprep.subr.bf16.mxu0 %v1260
        %1712 = vmatpush2.bf16.msra.mxu0 %v1259
        %1713 = vmatprep.subr.bf16.mxu0 %v1251
        %1714 = vmatpush2.bf16.msra.mxu0 %v1250
        %1715 = vmatprep.subr.bf16.mxu0 %v1242
        %1716 = vmatpush2.bf16.msra.mxu0 %v1241
        %1717 = vmatprep.mubr.bf16.mxu0 %v253
        %1718 = vmatmul.mubr.bf16.gmra.mxu0 %v252
        %v1719 = vpop.f32.mrf.mxu0
        %v1720 = vadd.f32 0.0, %v1719
        %v1721 = vpop.f32.mrf.mxu0
        %v1722 = vadd.f32 0.0, %v1721
        %v1723 = vpop.f32.mrf.mxu0
        %v1724 = vadd.f32 0.0, %v1723
        %v1725 = vpop.f32.mrf.mxu0
        %v1726 = vadd.f32 0.0, %v1725
        %1727 = vdwg.mxu0
        %1728 = vmatprep.subr.bf16.mxu0 %v1377
        %1729 = vmatpush1.bf16.msra.mxu0 %v1376
        %1730 = vmatprep.subr.bf16.mxu0 %v1368
        %1731 = vmatpush1.bf16.msra.mxu0 %v1367
        %1732 = vmatprep.subr.bf16.mxu0 %v1359
        %1733 = vmatpush1.bf16.msra.mxu0 %v1358
        %1734 = vmatprep.subr.bf16.mxu0 %v1350
        %1735 = vmatpush1.bf16.msra.mxu0 %v1349
        %1736 = vmatprep.subr.bf16.mxu0 %v1341
        %1737 = vmatpush1.bf16.msra.mxu0 %v1340
        %1738 = vmatprep.subr.bf16.mxu0 %v1332
        %1739 = vmatpush1.bf16.msra.mxu0 %v1331
        %1740 = vmatprep.subr.bf16.mxu0 %v1323
        %1741 = vmatpush1.bf16.msra.mxu0 %v1322
        %1742 = vmatprep.subr.bf16.mxu0 %v1314
        %1743 = vmatpush1.bf16.msra.mxu0 %v1313
        %1744 = vmatprep.subr.bf16.mxu0 0
        %1745 = vmatpush2.bf16.msra.mxu0 0
        %1746 = vmatprep.subr.bf16.mxu0 0
        %1747 = vmatpush2.bf16.msra.mxu0 0
        %1748 = vmatprep.subr.bf16.mxu0 0
        %1749 = vmatpush2.bf16.msra.mxu0 0
        %1750 = vmatprep.subr.bf16.mxu0 0
        %1751 = vmatpush2.bf16.msra.mxu0 0
        %1752 = vmatprep.subr.bf16.mxu0 0
        %1753 = vmatpush2.bf16.msra.mxu0 0
        %1754 = vmatprep.subr.bf16.mxu0 0
        %1755 = vmatpush2.bf16.msra.mxu0 0
        %1756 = vmatprep.subr.bf16.mxu0 0
        %1757 = vmatpush2.bf16.msra.mxu0 0
        %1758 = vmatprep.subr.bf16.mxu0 0
        %1759 = vmatpush2.bf16.msra.mxu0 0
        %1760 = vmatprep.mubr.bf16.mxu0 0
        %1761 = vmatmul.mubr.bf16.gmra.mxu0 %v254
        %v1762 = vpop.f32.mrf.mxu0
        %v1763 = vadd.f32 %v1720, %v1762
        %v1764 = vpop.f32.mrf.mxu0
        %v1765 = vadd.f32 %v1722, %v1764
        %v1766 = vpop.f32.mrf.mxu0
        %v1767 = vadd.f32 %v1724, %v1766
        %v1768 = vpop.f32.mrf.mxu0
        %v1769 = vadd.f32 %v1726, %v1768
        %1770 = vdwg.mxu0
        %1771 = vmatprep.subr.bf16.mxu0 %v1235
        %1772 = vmatpush1.bf16.msra.mxu0 %v1234
        %1773 = vmatprep.subr.bf16.mxu0 %v1226
        %1774 = vmatpush1.bf16.msra.mxu0 %v1225
        %1775 = vmatprep.subr.bf16.mxu0 %v1217
        %1776 = vmatpush1.bf16.msra.mxu0 %v1216
        %1777 = vmatprep.subr.bf16.mxu0 %v1208
        %1778 = vmatpush1.bf16.msra.mxu0 %v1207
        %1779 = vmatprep.subr.bf16.mxu0 %v1199
        %1780 = vmatpush1.bf16.msra.mxu0 %v1198
        %1781 = vmatprep.subr.bf16.mxu0 %v1190
        %1782 = vmatpush1.bf16.msra.mxu0 %v1189
        %1783 = vmatprep.subr.bf16.mxu0 %v1181
        %1784 = vmatpush1.bf16.msra.mxu0 %v1180
        %1785 = vmatprep.subr.bf16.mxu0 %v1172
        %1786 = vmatpush1.bf16.msra.mxu0 %v1171
        %1787 = vmatprep.subr.bf16.mxu0 %v1307
        %1788 = vmatpush2.bf16.msra.mxu0 %v1306
        %1789 = vmatprep.subr.bf16.mxu0 %v1298
        %1790 = vmatpush2.bf16.msra.mxu0 %v1297
        %1791 = vmatprep.subr.bf16.mxu0 %v1289
        %1792 = vmatpush2.bf16.msra.mxu0 %v1288
        %1793 = vmatprep.subr.bf16.mxu0 %v1280
        %1794 = vmatpush2.bf16.msra.mxu0 %v1279
        %1795 = vmatprep.subr.bf16.mxu0 %v1271
        %1796 = vmatpush2.bf16.msra.mxu0 %v1270
        %1797 = vmatprep.subr.bf16.mxu0 %v1262
        %1798 = vmatpush2.bf16.msra.mxu0 %v1261
        %1799 = vmatprep.subr.bf16.mxu0 %v1253
        %1800 = vmatpush2.bf16.msra.mxu0 %v1252
        %1801 = vmatprep.subr.bf16.mxu0 %v1244
        %1802 = vmatpush2.bf16.msra.mxu0 %v1243
        %1803 = vmatprep.mubr.bf16.mxu0 %v253
        %1804 = vmatmul.mubr.bf16.gmra.mxu0 %v252
        %v1805 = vpop.f32.mrf.mxu0
        %v1806 = vadd.f32 0.0, %v1805
        %v1807 = vpop.f32.mrf.mxu0
        %v1808 = vadd.f32 0.0, %v1807
        %v1809 = vpop.f32.mrf.mxu0
        %v1810 = vadd.f32 0.0, %v1809
        %v1811 = vpop.f32.mrf.mxu0
        %v1812 = vadd.f32 0.0, %v1811
        %1813 = vdwg.mxu0
        %1814 = vmatprep.subr.bf16.mxu0 %v1379
        %1815 = vmatpush1.bf16.msra.mxu0 %v1378
        %1816 = vmatprep.subr.bf16.mxu0 %v1370
        %1817 = vmatpush1.bf16.msra.mxu0 %v1369
        %1818 = vmatprep.subr.bf16.mxu0 %v1361
        %1819 = vmatpush1.bf16.msra.mxu0 %v1360
        %1820 = vmatprep.subr.bf16.mxu0 %v1352
        %1821 = vmatpush1.bf16.msra.mxu0 %v1351
        %1822 = vmatprep.subr.bf16.mxu0 %v1343
        %1823 = vmatpush1.bf16.msra.mxu0 %v1342
        %1824 = vmatprep.subr.bf16.mxu0 %v1334
        %1825 = vmatpush1.bf16.msra.mxu0 %v1333
        %1826 = vmatprep.subr.bf16.mxu0 %v1325
        %1827 = vmatpush1.bf16.msra.mxu0 %v1324
        %1828 = vmatprep.subr.bf16.mxu0 %v1316
        %1829 = vmatpush1.bf16.msra.mxu0 %v1315
        %1830 = vmatprep.subr.bf16.mxu0 0
        %1831 = vmatpush2.bf16.msra.mxu0 0
        %1832 = vmatprep.subr.bf16.mxu0 0
        %1833 = vmatpush2.bf16.msra.mxu0 0
        %1834 = vmatprep.subr.bf16.mxu0 0
        %1835 = vmatpush2.bf16.msra.mxu0 0
        %1836 = vmatprep.subr.bf16.mxu0 0
        %1837 = vmatpush2.bf16.msra.mxu0 0
        %1838 = vmatprep.subr.bf16.mxu0 0
        %1839 = vmatpush2.bf16.msra.mxu0 0
        %1840 = vmatprep.subr.bf16.mxu0 0
        %1841 = vmatpush2.bf16.msra.mxu0 0
        %1842 = vmatprep.subr.bf16.mxu0 0
        %1843 = vmatpush2.bf16.msra.mxu0 0
        %1844 = vmatprep.subr.bf16.mxu0 0
        %1845 = vmatpush2.bf16.msra.mxu0 0
        %1846 = vmatprep.mubr.bf16.mxu0 0
        %1847 = vmatmul.mubr.bf16.gmra.mxu0 %v254
        %v1848 = vpop.f32.mrf.mxu0
        %v1849 = vadd.f32 %v1806, %v1848
        %v1850 = vpop.f32.mrf.mxu0
        %v1851 = vadd.f32 %v1808, %v1850
        %v1852 = vpop.f32.mrf.mxu0
        %v1853 = vadd.f32 %v1810, %v1852
        %v1854 = vpop.f32.mrf.mxu0
        %v1855 = vadd.f32 %v1812, %v1854
        %1856 = vdwg.mxu0
        %1857 = vmatprep.subr.bf16.mxu0 %v1237
        %1858 = vmatpush1.bf16.msra.mxu0 %v1236
        %1859 = vmatprep.subr.bf16.mxu0 %v1228
        %1860 = vmatpush1.bf16.msra.mxu0 %v1227
        %1861 = vmatprep.subr.bf16.mxu0 %v1219
        %1862 = vmatpush1.bf16.msra.mxu0 %v1218
        %1863 = vmatprep.subr.bf16.mxu0 %v1210
        %1864 = vmatpush1.bf16.msra.mxu0 %v1209
        %1865 = vmatprep.subr.bf16.mxu0 %v1201
        %1866 = vmatpush1.bf16.msra.mxu0 %v1200
        %1867 = vmatprep.subr.bf16.mxu0 %v1192
        %1868 = vmatpush1.bf16.msra.mxu0 %v1191
        %1869 = vmatprep.subr.bf16.mxu0 %v1183
        %1870 = vmatpush1.bf16.msra.mxu0 %v1182
        %1871 = vmatprep.subr.bf16.mxu0 %v1174
        %1872 = vmatpush1.bf16.msra.mxu0 %v1173
        %1873 = vmatprep.subr.bf16.mxu0 %v1309
        %1874 = vmatpush2.bf16.msra.mxu0 %v1308
        %1875 = vmatprep.subr.bf16.mxu0 %v1300
        %1876 = vmatpush2.bf16.msra.mxu0 %v1299
        %1877 = vmatprep.subr.bf16.mxu0 %v1291
        %1878 = vmatpush2.bf16.msra.mxu0 %v1290
        %1879 = vmatprep.subr.bf16.mxu0 %v1282
        %1880 = vmatpush2.bf16.msra.mxu0 %v1281
        %1881 = vmatprep.subr.bf16.mxu0 %v1273
        %1882 = vmatpush2.bf16.msra.mxu0 %v1272
        %1883 = vmatprep.subr.bf16.mxu0 %v1264
        %1884 = vmatpush2.bf16.msra.mxu0 %v1263
        %1885 = vmatprep.subr.bf16.mxu0 %v1255
        %1886 = vmatpush2.bf16.msra.mxu0 %v1254
        %1887 = vmatprep.subr.bf16.mxu0 %v1246
        %1888 = vmatpush2.bf16.msra.mxu0 %v1245
        %1889 = vmatprep.mubr.bf16.mxu0 %v253
        %1890 = vmatmul.mubr.bf16.gmra.mxu0 %v252
        %v1891 = vpop.f32.mrf.mxu0
        %v1892 = vadd.f32 0.0, %v1891
        %v1893 = vpop.f32.mrf.mxu0
        %v1894 = vadd.f32 0.0, %v1893
        %v1895 = vpop.f32.mrf.mxu0
        %v1896 = vadd.f32 0.0, %v1895
        %v1897 = vpop.f32.mrf.mxu0
        %v1898 = vadd.f32 0.0, %v1897
        %1899 = vdwg.mxu0
        %1900 = vmatprep.subr.bf16.mxu0 %v1381
        %1901 = vmatpush1.bf16.msra.mxu0 %v1380
        %1902 = vmatprep.subr.bf16.mxu0 %v1372
        %1903 = vmatpush1.bf16.msra.mxu0 %v1371
        %1904 = vmatprep.subr.bf16.mxu0 %v1363
        %1905 = vmatpush1.bf16.msra.mxu0 %v1362
        %1906 = vmatprep.subr.bf16.mxu0 %v1354
        %1907 = vmatpush1.bf16.msra.mxu0 %v1353
        %1908 = vmatprep.subr.bf16.mxu0 %v1345
        %1909 = vmatpush1.bf16.msra.mxu0 %v1344
        %1910 = vmatprep.subr.bf16.mxu0 %v1336
        %1911 = vmatpush1.bf16.msra.mxu0 %v1335
        %1912 = vmatprep.subr.bf16.mxu0 %v1327
        %1913 = vmatpush1.bf16.msra.mxu0 %v1326
        %1914 = vmatprep.subr.bf16.mxu0 %v1318
        %1915 = vmatpush1.bf16.msra.mxu0 %v1317
        %1916 = vmatprep.subr.bf16.mxu0 0
        %1917 = vmatpush2.bf16.msra.mxu0 0
        %1918 = vmatprep.subr.bf16.mxu0 0
        %1919 = vmatpush2.bf16.msra.mxu0 0
        %1920 = vmatprep.subr.bf16.mxu0 0
        %1921 = vmatpush2.bf16.msra.mxu0 0
        %1922 = vmatprep.subr.bf16.mxu0 0
        %1923 = vmatpush2.bf16.msra.mxu0 0
        %1924 = vmatprep.subr.bf16.mxu0 0
        %1925 = vmatpush2.bf16.msra.mxu0 0
        %1926 = vmatprep.subr.bf16.mxu0 0
        %1927 = vmatpush2.bf16.msra.mxu0 0
        %1928 = vmatprep.subr.bf16.mxu0 0
        %1929 = vmatpush2.bf16.msra.mxu0 0
        %1930 = vmatprep.subr.bf16.mxu0 0
        %1931 = vmatpush2.bf16.msra.mxu0 0
        %1932 = vmatprep.mubr.bf16.mxu0 0
        %1933 = vmatmul.mubr.bf16.gmra.mxu0 %v254
        %v1934 = vpop.f32.mrf.mxu0
        %v1935 = vadd.f32 %v1892, %v1934
        %v1936 = vpop.f32.mrf.mxu0
        %v1937 = vadd.f32 %v1894, %v1936
        %v1938 = vpop.f32.mrf.mxu0
        %v1939 = vadd.f32 %v1896, %v1938
        %v1940 = vpop.f32.mrf.mxu0
        %v1941 = vadd.f32 %v1898, %v1940
        %1942 = vdwg.mxu0
        %1943 = vmatprep.subr.bf16.mxu0 0
        %1944 = vmatpush1.bf16.msra.mxu0 %v1238
        %1945 = vmatprep.subr.bf16.mxu0 0
        %1946 = vmatpush1.bf16.msra.mxu0 %v1229
        %1947 = vmatprep.subr.bf16.mxu0 0
        %1948 = vmatpush1.bf16.msra.mxu0 %v1220
        %1949 = vmatprep.subr.bf16.mxu0 0
        %1950 = vmatpush1.bf16.msra.mxu0 %v1211
        %1951 = vmatprep.subr.bf16.mxu0 0
        %1952 = vmatpush1.bf16.msra.mxu0 %v1202
        %1953 = vmatprep.subr.bf16.mxu0 0
        %1954 = vmatpush1.bf16.msra.mxu0 %v1193
        %1955 = vmatprep.subr.bf16.mxu0 0
        %1956 = vmatpush1.bf16.msra.mxu0 %v1184
        %1957 = vmatprep.subr.bf16.mxu0 0
        %1958 = vmatpush1.bf16.msra.mxu0 %v1175
        %1959 = vmatprep.subr.bf16.mxu0 0
        %1960 = vmatpush2.bf16.msra.mxu0 %v1310
        %1961 = vmatprep.subr.bf16.mxu0 0
        %1962 = vmatpush2.bf16.msra.mxu0 %v1301
        %1963 = vmatprep.subr.bf16.mxu0 0
        %1964 = vmatpush2.bf16.msra.mxu0 %v1292
        %1965 = vmatprep.subr.bf16.mxu0 0
        %1966 = vmatpush2.bf16.msra.mxu0 %v1283
        %1967 = vmatprep.subr.bf16.mxu0 0
        %1968 = vmatpush2.bf16.msra.mxu0 %v1274
        %1969 = vmatprep.subr.bf16.mxu0 0
        %1970 = vmatpush2.bf16.msra.mxu0 %v1265
        %1971 = vmatprep.subr.bf16.mxu0 0
        %1972 = vmatpush2.bf16.msra.mxu0 %v1256
        %1973 = vmatprep.subr.bf16.mxu0 0
        %1974 = vmatpush2.bf16.msra.mxu0 %v1247
        %1975 = vmatprep.mubr.bf16.mxu0 %v253
        %1976 = vmatmul.mubr.bf16.gmra.mxu0 %v252
        %v1977 = vpop.f32.mrf.mxu0
        %v1978 = vadd.f32 0.0, %v1977
        %v1979 = vpop.f32.mrf.mxu0
        %v1980 = vpop.f32.mrf.mxu0
        %v1981 = vadd.f32 0.0, %v1980
        %v1982 = vpop.f32.mrf.mxu0
        %1983 = vdwg.mxu0
        %1984 = vmatprep.subr.bf16.mxu0 0
        %1985 = vmatpush1.bf16.msra.mxu0 %v1382
        %1986 = vmatprep.subr.bf16.mxu0 0
        %1987 = vmatpush1.bf16.msra.mxu0 %v1373
        %1988 = vmatprep.subr.bf16.mxu0 0
        %1989 = vmatpush1.bf16.msra.mxu0 %v1364
        %1990 = vmatprep.subr.bf16.mxu0 0
        %1991 = vmatpush1.bf16.msra.mxu0 %v1355
        %1992 = vmatprep.subr.bf16.mxu0 0
        %1993 = vmatpush1.bf16.msra.mxu0 %v1346
        %1994 = vmatprep.subr.bf16.mxu0 0
        %1995 = vmatpush1.bf16.msra.mxu0 %v1337
        %1996 = vmatprep.subr.bf16.mxu0 0
        %1997 = vmatpush1.bf16.msra.mxu0 %v1328
        %1998 = vmatprep.subr.bf16.mxu0 0
        %1999 = vmatpush1.bf16.msra.mxu0 %v1319
        %2000 = vmatprep.subr.bf16.mxu0 0
        %2001 = vmatpush2.bf16.msra.mxu0 0
        %2002 = vmatprep.subr.bf16.mxu0 0
        %2003 = vmatpush2.bf16.msra.mxu0 0
        %2004 = vmatprep.subr.bf16.mxu0 0
        %2005 = vmatpush2.bf16.msra.mxu0 0
        %2006 = vmatprep.subr.bf16.mxu0 0
        %2007 = vmatpush2.bf16.msra.mxu0 0
        %2008 = vmatprep.subr.bf16.mxu0 0
        %2009 = vmatpush2.bf16.msra.mxu0 0
        %2010 = vmatprep.subr.bf16.mxu0 0
        %2011 = vmatpush2.bf16.msra.mxu0 0
        %2012 = vmatprep.subr.bf16.mxu0 0
        %2013 = vmatpush2.bf16.msra.mxu0 0
        %2014 = vmatprep.subr.bf16.mxu0 0
        %2015 = vmatpush2.bf16.msra.mxu0 0
        %2016 = vmatprep.mubr.bf16.mxu0 0
        %2017 = vmatmul.mubr.bf16.gmra.mxu0 %v254
        %v2018 = vpop.f32.mrf.mxu0
        %v2019 = vadd.f32 %v1978, %v2018
        %v2020 = vpop.f32.mrf.mxu0
        %v2021 = vpop.f32.mrf.mxu0
        %v2022 = vadd.f32 %v1981, %v2021
        %v2023 = vpop.f32.mrf.mxu0
        %2024 = vdwg.mxu0
        %v2025 = vlaneseq
        %v2026 = vshrl.u32 %v2025, 7
        %v2027 = vadd.s32 %v2026, 8
        %v2028 = vlaneseq
        %v2029 = vand.u32 %v2028, 127
        %vm2030 = vcmp.le.s32.totalorder %v2029, %v2026
        %vm2031 = vcmp.le.s32.totalorder %v2029, %v2027
        %v2032 = vpack.c.bf16 %v1681, %v1677
        %v2033 = vpack.c.bf16 %v1769, %v1765
        %vm2034 = vcmask 523264
        %v2036 = vsel %vm2034, %v2032, 0
        %v2039 = vsel %vm2034, %v2033, 0
        %2041 = vmatprep.subr.bf16.mxu0 0
        %2042 = vmatpush1.bf16.xpose.msra.mxu0 0
        %2043 = vmatprep.subr.bf16.mxu0 0
        %2044 = vmatpush1.bf16.xpose.msra.mxu0 0
        %2045 = vmatprep.subr.bf16.mxu0 0
        %2046 = vmatpush1.bf16.xpose.msra.mxu0 0
        %2047 = vmatprep.subr.bf16.mxu0 0
        %2048 = vmatpush1.bf16.xpose.msra.mxu0 0
        %2049 = vmatprep.subr.bf16.mxu0 0
        %2050 = vmatpush1.bf16.xpose.msra.mxu0 0
        %2051 = vmatprep.subr.bf16.mxu0 0
        %2052 = vmatpush1.bf16.xpose.msra.mxu0 0
        %2053 = vmatprep.subr.bf16.mxu0 0
        %2054 = vmatpush1.bf16.xpose.msra.mxu0 0
        %2055 = vmatprep.subr.bf16.mxu0 0
        %2056 = vmatpush1.bf16.xpose.msra.mxu0 %v2039
        %2057 = vmatprep.subr.bf16.mxu0 0
        %2058 = vmatpush2.bf16.xpose.msra.mxu0 0
        %2059 = vmatprep.subr.bf16.mxu0 0
        %2060 = vmatpush2.bf16.xpose.msra.mxu0 0
        %2061 = vmatprep.subr.bf16.mxu0 0
        %2062 = vmatpush2.bf16.xpose.msra.mxu0 0
        %2063 = vmatprep.subr.bf16.mxu0 0
        %2064 = vmatpush2.bf16.xpose.msra.mxu0 0
        %2065 = vmatprep.subr.bf16.mxu0 0
        %2066 = vmatpush2.bf16.xpose.msra.mxu0 0
        %2067 = vmatprep.subr.bf16.mxu0 0
        %2068 = vmatpush2.bf16.xpose.msra.mxu0 0
        %2069 = vmatprep.subr.bf16.mxu0 0
        %2070 = vmatpush2.bf16.xpose.msra.mxu0 0
        %2071 = vmatprep.subr.bf16.mxu0 0
        %2072 = vmatpush2.bf16.xpose.msra.mxu0 0
        %2073 = vmatprep.mubr.bf16.mxu0 0
        %2074 = vmatmul.mubr.bf16.gmra.mxu0 %v2036
        %v2075 = vpop.f32.mrf.mxu0
        %v2076 = vadd.f32 0.0, %v2075
        %v2077 = vpop.f32.mrf.mxu0
        %v2078 = vpop.f32.mrf.mxu0
        %v2079 = vadd.f32 0.0, %v2078
        %v2080 = vpop.f32.mrf.mxu0
        %2081 = vdwg.mxu0
        %v2082 = vmul.f32 %v2076, 0.05103104
        %v2083 = vmul.f32 %v2079, 0.05103104
        %v2084 = vsel %vm2030, %v2082, -inf
        %v2085 = vsel %vm2031, %v2083, -inf
        %vm2086 = vcmask 130048
        %v2087 = vsel %vm2086, %v2084, -inf
        %2088 = vmax.xlane.f32.xlu0 %v2087
        %v2089 = vpop.xlane.xlu0 %2088
        %v2090 = vsel %vm2086, %v2085, -inf
        %2091 = vmax.xlane.f32.xlu0 %v2090
        %v2092 = vpop.xlane.xlu0 %2091
        %v2093 = vsub.f32 %v2084, %v2089
        %v2094 = vsub.f32 %v2085, %v2092
        %v2095 = vmul.f32 %v2093, 1.442695
        %v2096 = vpow.pop %v2095
        %v2097 = vmul.f32 %v2094, 1.442695
        %v2098 = vpow.pop %v2097
        %v2099 = vsel %vm2086, %v2096, 0.0
        %2100 = vadd.xlane.f32.xlu0 %v2099
        %v2101 = vpop.xlane.xlu0 %2100
        %v2102 = vsel %vm2086, %v2098, 0.0
        %2103 = vadd.xlane.f32.xlu0 %v2102
        %v2104 = vpop.xlane.xlu0 %2103
        %v2105 = vrcp.pop %v2101
        %v2106 = vrcp.pop %v2104
        %v2107 = vmul.f32 %v2096, %v2105
        %v2108 = vmul.f32 %v2098, %v2106
        %v2109 = vpack.c.bf16 %v2108, %v2107
        %v2110 = vpack.c.bf16 %v1939, %v1935
        %v2112 = vsel %vm2086, %v2109, 0
        %2114 = vmatprep.subr.bf16.mxu0 0
        %2115 = vmatpush1.bf16.msra.mxu0 0
        %2116 = vmatprep.subr.bf16.mxu0 0
        %2117 = vmatpush1.bf16.msra.mxu0 0
        %2118 = vmatprep.subr.bf16.mxu0 0
        %2119 = vmatpush1.bf16.msra.mxu0 0
        %2120 = vmatprep.subr.bf16.mxu0 0
        %2121 = vmatpush1.bf16.msra.mxu0 0
        %2122 = vmatprep.subr.bf16.mxu0 0
        %2123 = vmatpush1.bf16.msra.mxu0 0
        %2124 = vmatprep.subr.bf16.mxu0 0
        %2125 = vmatpush1.bf16.msra.mxu0 0
        %2126 = vmatprep.subr.bf16.mxu0 0
        %2127 = vmatpush1.bf16.msra.mxu0 0
        %2128 = vmatprep.subr.bf16.mxu0 0
        %2129 = vmatpush1.bf16.msra.mxu0 %v2110
        %2130 = vmatprep.subr.bf16.mxu0 0
        %2131 = vmatpush2.bf16.msra.mxu0 0
        %2132 = vmatprep.subr.bf16.mxu0 0
        %2133 = vmatpush2.bf16.msra.mxu0 0
        %2134 = vmatprep.subr.bf16.mxu0 0
        %2135 = vmatpush2.bf16.msra.mxu0 0
        %2136 = vmatprep.subr.bf16.mxu0 0
        %2137 = vmatpush2.bf16.msra.mxu0 0
        %2138 = vmatprep.subr.bf16.mxu0 0
        %2139 = vmatpush2.bf16.msra.mxu0 0
        %2140 = vmatprep.subr.bf16.mxu0 0
        %2141 = vmatpush2.bf16.msra.mxu0 0
        %2142 = vmatprep.subr.bf16.mxu0 0
        %2143 = vmatpush2.bf16.msra.mxu0 0
        %2144 = vmatprep.subr.bf16.mxu0 0
        %2145 = vmatpush2.bf16.msra.mxu0 0
        %2146 = vmatprep.mubr.bf16.mxu0 0
        %2147 = vmatmul.mubr.bf16.gmra.mxu0 %v2112
        %v2148 = vpop.f32.mrf.mxu0
        %v2149 = vadd.f32 0.0, %v2148
        %v2150 = vpop.f32.mrf.mxu0
        %v2151 = vpop.f32.mrf.mxu0
        %v2152 = vadd.f32 0.0, %v2151
        %v2153 = vpop.f32.mrf.mxu0
        %2154 = vdwg.mxu0
        %v2155 = vld [vmem:[#allocation7] sm:$0xff]
        %v2156 = vld [vmem:[#allocation7 + $0x8] sm:$0xf]
        %v2157 = vld [vmem:[#allocation7 + $0xc] sm:$0xff]
        %v2158 = vld [vmem:[#allocation7 + $0x14] sm:$0xf]
        %v2159 = vld [vmem:[#allocation7 + $0x18] sm:$0xff]
        %v2160 = vld [vmem:[#allocation7 + $0x20] sm:$0xf]
        %v2161 = vld [vmem:[#allocation7 + $0x24] sm:$0xff]
        %v2162 = vld [vmem:[#allocation7 + $0x2c] sm:$0xf]
        %v2163 = vld [vmem:[#allocation7 + $0x30] sm:$0xff]
        %v2164 = vld [vmem:[#allocation7 + $0x38] sm:$0xf]
        %v2165 = vld [vmem:[#allocation7 + $0x3c] sm:$0xff]
        %v2166 = vld [vmem:[#allocation7 + $0x44] sm:$0xf]
        %v2167 = vld [vmem:[#allocation7 + $0x48] sm:$0xff]
        %v2168 = vld [vmem:[#allocation7 + $0x50] sm:$0xf]
        %v2169 = vld [vmem:[#allocation7 + $0x54] sm:$0xff]
        %v2170 = vld [vmem:[#allocation7 + $0x5c] sm:$0xf]
        %v2171 = vpack.c.bf16 %v2152, %v2149
        %2173 = vrot.lane.b32.xlu0 %v2032, 64
        %v2174 = vpop.permute.xlu0 %2173
        %2176 = vrot.lane.b32.xlu0 %v2033, 64
        %v2177 = vpop.permute.xlu0 %2176
        %v2179 = vsel %vm2034, %v2174, 0
        %v2182 = vsel %vm2034, %v2177, 0
        %2184 = vmatprep.subr.bf16.mxu0 0
        %2185 = vmatpush1.bf16.xpose.msra.mxu0 0
        %2186 = vmatprep.subr.bf16.mxu0 0
        %2187 = vmatpush1.bf16.xpose.msra.mxu0 0
        %2188 = vmatprep.subr.bf16.mxu0 0
        %2189 = vmatpush1.bf16.xpose.msra.mxu0 0
        %2190 = vmatprep.subr.bf16.mxu0 0
        %2191 = vmatpush1.bf16.xpose.msra.mxu0 0
        %2192 = vmatprep.subr.bf16.mxu0 0
        %2193 = vmatpush1.bf16.xpose.msra.mxu0 0
        %2194 = vmatprep.subr.bf16.mxu0 0
        %2195 = vmatpush1.bf16.xpose.msra.mxu0 0
        %2196 = vmatprep.subr.bf16.mxu0 0
        %2197 = vmatpush1.bf16.xpose.msra.mxu0 0
        %2198 = vmatprep.subr.bf16.mxu0 0
        %2199 = vmatpush1.bf16.xpose.msra.mxu0 %v2182
        %2200 = vmatprep.subr.bf16.mxu0 0
        %2201 = vmatpush2.bf16.xpose.msra.mxu0 0
        %2202 = vmatprep.subr.bf16.mxu0 0
        %2203 = vmatpush2.bf16.xpose.msra.mxu0 0
        %2204 = vmatprep.subr.bf16.mxu0 0
        %2205 = vmatpush2.bf16.xpose.msra.mxu0 0
        %2206 = vmatprep.subr.bf16.mxu0 0
        %2207 = vmatpush2.bf16.xpose.msra.mxu0 0
        %2208 = vmatprep.subr.bf16.mxu0 0
        %2209 = vmatpush2.bf16.xpose.msra.mxu0 0
        %2210 = vmatprep.subr.bf16.mxu0 0
        %2211 = vmatpush2.bf16.xpose.msra.mxu0 0
        %2212 = vmatprep.subr.bf16.mxu0 0
        %2213 = vmatpush2.bf16.xpose.msra.mxu0 0
        %2214 = vmatprep.subr.bf16.mxu0 0
        %2215 = vmatpush2.bf16.xpose.msra.mxu0 0
        %2216 = vmatprep.mubr.bf16.mxu0 0
        %2217 = vmatmul.mubr.bf16.gmra.mxu0 %v2179
        %v2218 = vpop.f32.mrf.mxu0
        %v2219 = vadd.f32 0.0, %v2218
        %v2220 = vpop.f32.mrf.mxu0
        %v2221 = vpop.f32.mrf.mxu0
        %v2222 = vadd.f32 0.0, %v2221
        %v2223 = vpop.f32.mrf.mxu0
        %2224 = vdwg.mxu0
        %v2225 = vmul.f32 %v2219, 0.05103104
        %v2226 = vmul.f32 %v2222, 0.05103104
        %v2227 = vsel %vm2030, %v2225, -inf
        %v2228 = vsel %vm2031, %v2226, -inf
        %v2229 = vsel %vm2086, %v2227, -inf
        %2230 = vmax.xlane.f32.xlu0 %v2229
        %v2231 = vpop.xlane.xlu0 %2230
        %v2232 = vsel %vm2086, %v2228, -inf
        %2233 = vmax.xlane.f32.xlu0 %v2232
        %v2234 = vpop.xlane.xlu0 %2233
        %v2235 = vsub.f32 %v2227, %v2231
        %v2236 = vsub.f32 %v2228, %v2234
        %v2237 = vmul.f32 %v2235, 1.442695
        %v2238 = vpow.pop %v2237
        %v2239 = vmul.f32 %v2236, 1.442695
        %v2240 = vpow.pop %v2239
        %v2241 = vsel %vm2086, %v2238, 0.0
        %2242 = vadd.xlane.f32.xlu0 %v2241
        %v2243 = vpop.xlane.xlu0 %2242
        %v2244 = vsel %vm2086, %v2240, 0.0
        %2245 = vadd.xlane.f32.xlu0 %v2244
        %v2246 = vpop.xlane.xlu0 %2245
        %v2247 = vrcp.pop %v2243
        %v2248 = vrcp.pop %v2246
        %v2249 = vmul.f32 %v2238, %v2247
        %v2250 = vmul.f32 %v2240, %v2248
        %v2251 = vpack.c.bf16 %v2250, %v2249
        %2253 = vrot.lane.b32.xlu0 %v2110, 64
        %v2254 = vpop.permute.xlu0 %2253
        %v2257 = vsel %vm2086, %v2251, 0
        %2259 = vmatprep.subr.bf16.mxu0 0
        %2260 = vmatpush1.bf16.msra.mxu0 0
        %2261 = vmatprep.subr.bf16.mxu0 0
        %2262 = vmatpush1.bf16.msra.mxu0 0
        %2263 = vmatprep.subr.bf16.mxu0 0
        %2264 = vmatpush1.bf16.msra.mxu0 0
        %2265 = vmatprep.subr.bf16.mxu0 0
        %2266 = vmatpush1.bf16.msra.mxu0 0
        %2267 = vmatprep.subr.bf16.mxu0 0
        %2268 = vmatpush1.bf16.msra.mxu0 0
        %2269 = vmatprep.subr.bf16.mxu0 0
        %2270 = vmatpush1.bf16.msra.mxu0 0
        %2271 = vmatprep.subr.bf16.mxu0 0
        %2272 = vmatpush1.bf16.msra.mxu0 0
        %2273 = vmatprep.subr.bf16.mxu0 0
        %2274 = vmatpush1.bf16.msra.mxu0 %v2254
        %2275 = vmatprep.subr.bf16.mxu0 0
        %2276 = vmatpush2.bf16.msra.mxu0 0
        %2277 = vmatprep.subr.bf16.mxu0 0
        %2278 = vmatpush2.bf16.msra.mxu0 0
        %2279 = vmatprep.subr.bf16.mxu0 0
        %2280 = vmatpush2.bf16.msra.mxu0 0
        %2281 = vmatprep.subr.bf16.mxu0 0
        %2282 = vmatpush2.bf16.msra.mxu0 0
        %2283 = vmatprep.subr.bf16.mxu0 0
        %2284 = vmatpush2.bf16.msra.mxu0 0
        %2285 = vmatprep.subr.bf16.mxu0 0
        %2286 = vmatpush2.bf16.msra.mxu0 0
        %2287 = vmatprep.subr.bf16.mxu0 0
        %2288 = vmatpush2.bf16.msra.mxu0 0
        %2289 = vmatprep.subr.bf16.mxu0 0
        %2290 = vmatpush2.bf16.msra.mxu0 0
        %2291 = vmatprep.mubr.bf16.mxu0 0
        %2292 = vmatmul.mubr.bf16.gmra.mxu0 %v2257
        %v2293 = vpop.f32.mrf.mxu0
        %v2294 = vadd.f32 0.0, %v2293
        %v2295 = vpop.f32.mrf.mxu0
        %v2296 = vpop.f32.mrf.mxu0
        %v2297 = vadd.f32 0.0, %v2296
        %v2298 = vpop.f32.mrf.mxu0
        %2299 = vdwg.mxu0
        %v2300 = vld [vmem:[#allocation7 + $0x60] sm:$0xff]
        %v2301 = vld [vmem:[#allocation7 + $0x68] sm:$0xf]
        %v2302 = vld [vmem:[#allocation7 + $0x6c] sm:$0xff]
        %v2303 = vld [vmem:[#allocation7 + $0x74] sm:$0xf]
        %v2304 = vld [vmem:[#allocation7 + $0x78] sm:$0xff]
        %v2305 = vld [vmem:[#allocation7 + $0x80] sm:$0xf]
        %v2306 = vld [vmem:[#allocation7 + $0x84] sm:$0xff]
        %v2307 = vld [vmem:[#allocation7 + $0x8c] sm:$0xf]
        %v2308 = vld [vmem:[#allocation7 + $0x90] sm:$0xff]
        %v2309 = vld [vmem:[#allocation7 + $0x98] sm:$0xf]
        %v2310 = vld [vmem:[#allocation7 + $0x9c] sm:$0xff]
        %v2311 = vld [vmem:[#allocation7 + $0xa4] sm:$0xf]
        %v2312 = vld [vmem:[#allocation7 + $0xa8] sm:$0xff]
        %v2313 = vld [vmem:[#allocation7 + $0xb0] sm:$0xf]
        %v2314 = vld [vmem:[#allocation7 + $0xb4] sm:$0xff]
        %v2315 = vld [vmem:[#allocation7 + $0xbc] sm:$0xf]
        %v2316 = vpack.c.bf16 %v2297, %v2294
        %v2333 = vunpack.c.l.b16 %v2300
        %v2334 = vunpack.c.h.b16 %v2300
        %v2335 = vunpack.c.l.b16 %v2301
        %v2336 = vunpack.c.l.b16 %v2302
        %v2337 = vunpack.c.h.b16 %v2302
        %v2338 = vunpack.c.l.b16 %v2303
        %v2339 = vunpack.c.l.b16 %v2304
        %v2340 = vunpack.c.h.b16 %v2304
        %v2341 = vunpack.c.l.b16 %v2305
        %v2342 = vunpack.c.l.b16 %v2306
        %v2343 = vunpack.c.h.b16 %v2306
        %v2344 = vunpack.c.l.b16 %v2307
        %v2345 = vunpack.c.l.b16 %v2308
        %v2346 = vunpack.c.h.b16 %v2308
        %v2347 = vunpack.c.l.b16 %v2309
        %v2348 = vunpack.c.l.b16 %v2310
        %v2349 = vunpack.c.h.b16 %v2310
        %v2350 = vunpack.c.l.b16 %v2311
        %v2351 = vunpack.c.l.b16 %v2312
        %v2352 = vunpack.c.h.b16 %v2312
        %v2353 = vunpack.c.l.b16 %v2313
        %v2354 = vunpack.c.l.b16 %v2314
        %v2355 = vunpack.c.h.b16 %v2314
        %v2356 = vunpack.c.l.b16 %v2315
        %v2357 = vpack.c.b16 %v2336, %v2333
        %v2358 = vpack.c.b16 %v2337, %v2334
        %v2359 = vpack.c.b16 %v2338, %v2335
        %v2360 = vpack.c.b16 %v2342, %v2339
        %v2361 = vpack.c.b16 %v2343, %v2340
        %v2362 = vpack.c.b16 %v2344, %v2341
        %v2363 = vpack.c.b16 %v2348, %v2345
        %v2364 = vpack.c.b16 %v2349, %v2346
        %v2365 = vpack.c.b16 %v2350, %v2347
        %v2366 = vpack.c.b16 %v2354, %v2351
        %v2367 = vpack.c.b16 %v2355, %v2352
        %v2368 = vpack.c.b16 %v2356, %v2353
        %v2382 = vsel %vm2034, %v2316, 0
        %2384 = vmatprep.subr.bf16.mxu0 0
        %2385 = vmatpush1.bf16.msra.mxu0 0
        %2386 = vmatprep.subr.bf16.mxu0 0
        %2387 = vmatpush1.bf16.msra.mxu0 0
        %2388 = vmatprep.subr.bf16.mxu0 0
        %2389 = vmatpush1.bf16.msra.mxu0 0
        %2390 = vmatprep.subr.bf16.mxu0 0
        %2391 = vmatpush1.bf16.msra.mxu0 0
        %2392 = vmatprep.subr.bf16.mxu0 %v2367
        %2393 = vmatpush1.bf16.msra.mxu0 %v2366
        %2394 = vmatprep.subr.bf16.mxu0 %v2364
        %2395 = vmatpush1.bf16.msra.mxu0 %v2363
        %2396 = vmatprep.subr.bf16.mxu0 %v2361
        %2397 = vmatpush1.bf16.msra.mxu0 %v2360
        %2398 = vmatprep.subr.bf16.mxu0 %v2358
        %2399 = vmatpush1.bf16.msra.mxu0 %v2357
        %2400 = vmatprep.subr.bf16.mxu0 0
        %2401 = vmatpush2.bf16.msra.mxu0 0
        %2402 = vmatprep.subr.bf16.mxu0 0
        %2403 = vmatpush2.bf16.msra.mxu0 0
        %2404 = vmatprep.subr.bf16.mxu0 0
        %2405 = vmatpush2.bf16.msra.mxu0 0
        %2406 = vmatprep.subr.bf16.mxu0 0
        %2407 = vmatpush2.bf16.msra.mxu0 0
        %2408 = vmatprep.subr.bf16.mxu0 0
        %2409 = vmatpush2.bf16.msra.mxu0 0
        %2410 = vmatprep.subr.bf16.mxu0 0
        %2411 = vmatpush2.bf16.msra.mxu0 0
        %2412 = vmatprep.subr.bf16.mxu0 0
        %2413 = vmatpush2.bf16.msra.mxu0 0
        %2414 = vmatprep.subr.bf16.mxu0 0
        %2415 = vmatpush2.bf16.msra.mxu0 0
        %2416 = vmatprep.mubr.bf16.mxu0 0
        %2417 = vmatmul.mubr.bf16.gmra.mxu0 %v2382
        %v2418 = vpop.f32.mrf.mxu0
        %v2419 = vadd.f32 0.0, %v2418
        %v2420 = vpop.f32.mrf.mxu0
        %v2421 = vadd.f32 0.0, %v2420
        %v2422 = vpop.f32.mrf.mxu0
        %v2423 = vadd.f32 0.0, %v2422
        %v2424 = vpop.f32.mrf.mxu0
        %v2425 = vadd.f32 0.0, %v2424
        %2426 = vdwg.mxu0
        %2427 = vmatprep.subr.bf16.mxu0 0
        %2428 = vmatpush1.bf16.msra.mxu0 0
        %2429 = vmatprep.subr.bf16.mxu0 0
        %2430 = vmatpush1.bf16.msra.mxu0 0
        %2431 = vmatprep.subr.bf16.mxu0 0
        %2432 = vmatpush1.bf16.msra.mxu0 0
        %2433 = vmatprep.subr.bf16.mxu0 0
        %2434 = vmatpush1.bf16.msra.mxu0 0
        %2435 = vmatprep.subr.bf16.mxu0 0
        %2436 = vmatpush1.bf16.msra.mxu0 %v2368
        %2437 = vmatprep.subr.bf16.mxu0 0
        %2438 = vmatpush1.bf16.msra.mxu0 %v2365
        %2439 = vmatprep.subr.bf16.mxu0 0
        %2440 = vmatpush1.bf16.msra.mxu0 %v2362
        %2441 = vmatprep.subr.bf16.mxu0 0
        %2442 = vmatpush1.bf16.msra.mxu0 %v2359
        %2443 = vmatprep.subr.bf16.mxu0 0
        %2444 = vmatpush2.bf16.msra.mxu0 0
        %2445 = vmatprep.subr.bf16.mxu0 0
        %2446 = vmatpush2.bf16.msra.mxu0 0
        %2447 = vmatprep.subr.bf16.mxu0 0
        %2448 = vmatpush2.bf16.msra.mxu0 0
        %2449 = vmatprep.subr.bf16.mxu0 0
        %2450 = vmatpush2.bf16.msra.mxu0 0
        %2451 = vmatprep.subr.bf16.mxu0 0
        %2452 = vmatpush2.bf16.msra.mxu0 0
        %2453 = vmatprep.subr.bf16.mxu0 0
        %2454 = vmatpush2.bf16.msra.mxu0 0
        %2455 = vmatprep.subr.bf16.mxu0 0
        %2456 = vmatpush2.bf16.msra.mxu0 0
        %2457 = vmatprep.subr.bf16.mxu0 0
        %2458 = vmatpush2.bf16.msra.mxu0 0
        %2459 = vmatprep.mubr.bf16.mxu0 0
        %2460 = vmatmul.mubr.bf16.gmra.mxu0 %v2382
        %v2461 = vpop.f32.mrf.mxu0
        %v2462 = vadd.f32 0.0, %v2461
        %v2463 = vpop.f32.mrf.mxu0
        %v2464 = vpop.f32.mrf.mxu0
        %v2465 = vadd.f32 0.0, %v2464
        %v2466 = vpop.f32.mrf.mxu0
        %2467 = vdwg.mxu0
        %v2484 = vunpack.c.l.b16 %v2155
        %v2485 = vunpack.c.h.b16 %v2155
        %v2486 = vunpack.c.l.b16 %v2156
        %v2487 = vunpack.c.l.b16 %v2157
        %v2488 = vunpack.c.h.b16 %v2157
        %v2489 = vunpack.c.l.b16 %v2158
        %v2490 = vunpack.c.l.b16 %v2159
        %v2491 = vunpack.c.h.b16 %v2159
        %v2492 = vunpack.c.l.b16 %v2160
        %v2493 = vunpack.c.l.b16 %v2161
        %v2494 = vunpack.c.h.b16 %v2161
        %v2495 = vunpack.c.l.b16 %v2162
        %v2496 = vunpack.c.l.b16 %v2163
        %v2497 = vunpack.c.h.b16 %v2163
        %v2498 = vunpack.c.l.b16 %v2164
        %v2499 = vunpack.c.l.b16 %v2165
        %v2500 = vunpack.c.h.b16 %v2165
        %v2501 = vunpack.c.l.b16 %v2166
        %v2502 = vunpack.c.l.b16 %v2167
        %v2503 = vunpack.c.h.b16 %v2167
        %v2504 = vunpack.c.l.b16 %v2168
        %v2505 = vunpack.c.l.b16 %v2169
        %v2506 = vunpack.c.h.b16 %v2169
        %v2507 = vunpack.c.l.b16 %v2170
        %v2508 = vpack.c.b16 %v2487, %v2484
        %v2509 = vpack.c.b16 %v2488, %v2485
        %v2510 = vpack.c.b16 %v2489, %v2486
        %v2511 = vpack.c.b16 %v2493, %v2490
        %v2512 = vpack.c.b16 %v2494, %v2491
        %v2513 = vpack.c.b16 %v2495, %v2492
        %v2514 = vpack.c.b16 %v2499, %v2496
        %v2515 = vpack.c.b16 %v2500, %v2497
        %v2516 = vpack.c.b16 %v2501, %v2498
        %v2517 = vpack.c.b16 %v2505, %v2502
        %v2518 = vpack.c.b16 %v2506, %v2503
        %v2519 = vpack.c.b16 %v2507, %v2504
        %v2533 = vsel %vm2034, %v2171, 0
        %2535 = vmatprep.subr.bf16.mxu0 0
        %2536 = vmatpush1.bf16.msra.mxu0 0
        %2537 = vmatprep.subr.bf16.mxu0 0
        %2538 = vmatpush1.bf16.msra.mxu0 0
        %2539 = vmatprep.subr.bf16.mxu0 0
        %2540 = vmatpush1.bf16.msra.mxu0 0
        %2541 = vmatprep.subr.bf16.mxu0 0
        %2542 = vmatpush1.bf16.msra.mxu0 0
        %2543 = vmatprep.subr.bf16.mxu0 %v2518
        %2544 = vmatpush1.bf16.msra.mxu0 %v2517
        %2545 = vmatprep.subr.bf16.mxu0 %v2515
        %2546 = vmatpush1.bf16.msra.mxu0 %v2514
        %2547 = vmatprep.subr.bf16.mxu0 %v2512
        %2548 = vmatpush1.bf16.msra.mxu0 %v2511
        %2549 = vmatprep.subr.bf16.mxu0 %v2509
        %2550 = vmatpush1.bf16.msra.mxu0 %v2508
        %2551 = vmatprep.subr.bf16.mxu0 0
        %2552 = vmatpush2.bf16.msra.mxu0 0
        %2553 = vmatprep.subr.bf16.mxu0 0
        %2554 = vmatpush2.bf16.msra.mxu0 0
        %2555 = vmatprep.subr.bf16.mxu0 0
        %2556 = vmatpush2.bf16.msra.mxu0 0
        %2557 = vmatprep.subr.bf16.mxu0 0
        %2558 = vmatpush2.bf16.msra.mxu0 0
        %2559 = vmatprep.subr.bf16.mxu0 0
        %2560 = vmatpush2.bf16.msra.mxu0 0
        %2561 = vmatprep.subr.bf16.mxu0 0
        %2562 = vmatpush2.bf16.msra.mxu0 0
        %2563 = vmatprep.subr.bf16.mxu0 0
        %2564 = vmatpush2.bf16.msra.mxu0 0
        %2565 = vmatprep.subr.bf16.mxu0 0
        %2566 = vmatpush2.bf16.msra.mxu0 0
        %2567 = vmatprep.mubr.bf16.mxu0 0
        %2568 = vmatmul.mubr.bf16.gmra.mxu0 %v2533
        %v2569 = vpop.f32.mrf.mxu0
        %v2570 = vadd.f32 %v2419, %v2569
        %v2571 = vpop.f32.mrf.mxu0
        %v2572 = vadd.f32 %v2421, %v2571
        %v2573 = vpop.f32.mrf.mxu0
        %v2574 = vadd.f32 %v2423, %v2573
        %v2575 = vpop.f32.mrf.mxu0
        %v2576 = vadd.f32 %v2425, %v2575
        %2577 = vdwg.mxu0
        %2578 = vmatprep.subr.bf16.mxu0 0
        %2579 = vmatpush1.bf16.msra.mxu0 0
        %2580 = vmatprep.subr.bf16.mxu0 0
        %2581 = vmatpush1.bf16.msra.mxu0 0
        %2582 = vmatprep.subr.bf16.mxu0 0
        %2583 = vmatpush1.bf16.msra.mxu0 0
        %2584 = vmatprep.subr.bf16.mxu0 0
        %2585 = vmatpush1.bf16.msra.mxu0 0
        %2586 = vmatprep.subr.bf16.mxu0 0
        %2587 = vmatpush1.bf16.msra.mxu0 %v2519
        %2588 = vmatprep.subr.bf16.mxu0 0
        %2589 = vmatpush1.bf16.msra.mxu0 %v2516
        %2590 = vmatprep.subr.bf16.mxu0 0
        %2591 = vmatpush1.bf16.msra.mxu0 %v2513
        %2592 = vmatprep.subr.bf16.mxu0 0
        %2593 = vmatpush1.bf16.msra.mxu0 %v2510
        %2594 = vmatprep.subr.bf16.mxu0 0
        %2595 = vmatpush2.bf16.msra.mxu0 0
        %2596 = vmatprep.subr.bf16.mxu0 0
        %2597 = vmatpush2.bf16.msra.mxu0 0
        %2598 = vmatprep.subr.bf16.mxu0 0
        %2599 = vmatpush2.bf16.msra.mxu0 0
        %2600 = vmatprep.subr.bf16.mxu0 0
        %2601 = vmatpush2.bf16.msra.mxu0 0
        %2602 = vmatprep.subr.bf16.mxu0 0
        %2603 = vmatpush2.bf16.msra.mxu0 0
        %2604 = vmatprep.subr.bf16.mxu0 0
        %2605 = vmatpush2.bf16.msra.mxu0 0
        %2606 = vmatprep.subr.bf16.mxu0 0
        %2607 = vmatpush2.bf16.msra.mxu0 0
        %2608 = vmatprep.subr.bf16.mxu0 0
        %2609 = vmatpush2.bf16.msra.mxu0 0
        %2610 = vmatprep.mubr.bf16.mxu0 0
        %2611 = vmatmul.mubr.bf16.gmra.mxu0 %v2533
        %v2612 = vpop.f32.mrf.mxu0
        %v2613 = vadd.f32 %v2462, %v2612
        %v2614 = vpop.f32.mrf.mxu0
        %v2615 = vpop.f32.mrf.mxu0
        %v2616 = vadd.f32 %v2465, %v2615
        %v2617 = vpop.f32.mrf.mxu0
        %2618 = vdwg.mxu0
        %v2619 = vpack.c.bf16 %v1683, %v1679
        %v2620 = vpack.c.bf16 %v1853, %v1849
        %v2622 = vsel %vm2034, %v2619, 0
        %v2625 = vsel %vm2034, %v2620, 0
        %2627 = vmatprep.subr.bf16.mxu0 0
        %2628 = vmatpush1.bf16.xpose.msra.mxu0 0
        %2629 = vmatprep.subr.bf16.mxu0 0
        %2630 = vmatpush1.bf16.xpose.msra.mxu0 0
        %2631 = vmatprep.subr.bf16.mxu0 0
        %2632 = vmatpush1.bf16.xpose.msra.mxu0 0
        %2633 = vmatprep.subr.bf16.mxu0 0
        %2634 = vmatpush1.bf16.xpose.msra.mxu0 0
        %2635 = vmatprep.subr.bf16.mxu0 0
        %2636 = vmatpush1.bf16.xpose.msra.mxu0 0
        %2637 = vmatprep.subr.bf16.mxu0 0
        %2638 = vmatpush1.bf16.xpose.msra.mxu0 0
        %2639 = vmatprep.subr.bf16.mxu0 0
        %2640 = vmatpush1.bf16.xpose.msra.mxu0 0
        %2641 = vmatprep.subr.bf16.mxu0 0
        %2642 = vmatpush1.bf16.xpose.msra.mxu0 %v2625
        %2643 = vmatprep.subr.bf16.mxu0 0
        %2644 = vmatpush2.bf16.xpose.msra.mxu0 0
        %2645 = vmatprep.subr.bf16.mxu0 0
        %2646 = vmatpush2.bf16.xpose.msra.mxu0 0
        %2647 = vmatprep.subr.bf16.mxu0 0
        %2648 = vmatpush2.bf16.xpose.msra.mxu0 0
        %2649 = vmatprep.subr.bf16.mxu0 0
        %2650 = vmatpush2.bf16.xpose.msra.mxu0 0
        %2651 = vmatprep.subr.bf16.mxu0 0
        %2652 = vmatpush2.bf16.xpose.msra.mxu0 0
        %2653 = vmatprep.subr.bf16.mxu0 0
        %2654 = vmatpush2.bf16.xpose.msra.mxu0 0
        %2655 = vmatprep.subr.bf16.mxu0 0
        %2656 = vmatpush2.bf16.xpose.msra.mxu0 0
        %2657 = vmatprep.subr.bf16.mxu0 0
        %2658 = vmatpush2.bf16.xpose.msra.mxu0 0
        %2659 = vmatprep.mubr.bf16.mxu0 0
        %2660 = vmatmul.mubr.bf16.gmra.mxu0 %v2622
        %v2661 = vpop.f32.mrf.mxu0
        %v2662 = vadd.f32 0.0, %v2661
        %v2663 = vpop.f32.mrf.mxu0
        %v2664 = vpop.f32.mrf.mxu0
        %v2665 = vadd.f32 0.0, %v2664
        %v2666 = vpop.f32.mrf.mxu0
        %2667 = vdwg.mxu0
        %v2668 = vmul.f32 %v2662, 0.05103104
        %v2669 = vmul.f32 %v2665, 0.05103104
        %v2670 = vsel %vm2030, %v2668, -inf
        %v2671 = vsel %vm2031, %v2669, -inf
        %v2672 = vsel %vm2086, %v2670, -inf
        %2673 = vmax.xlane.f32.xlu0 %v2672
        %v2674 = vpop.xlane.xlu0 %2673
        %v2675 = vsel %vm2086, %v2671, -inf
        %2676 = vmax.xlane.f32.xlu0 %v2675
        %v2677 = vpop.xlane.xlu0 %2676
        %v2678 = vsub.f32 %v2670, %v2674
        %v2679 = vsub.f32 %v2671, %v2677
        %v2680 = vmul.f32 %v2678, 1.442695
        %v2681 = vpow.pop %v2680
        %v2682 = vmul.f32 %v2679, 1.442695
        %v2683 = vpow.pop %v2682
        %v2684 = vsel %vm2086, %v2681, 0.0
        %2685 = vadd.xlane.f32.xlu0 %v2684
        %v2686 = vpop.xlane.xlu0 %2685
        %v2687 = vsel %vm2086, %v2683, 0.0
        %2688 = vadd.xlane.f32.xlu0 %v2687
        %v2689 = vpop.xlane.xlu0 %2688
        %v2690 = vrcp.pop %v2686
        %v2691 = vrcp.pop %v2689
        %v2692 = vmul.f32 %v2681, %v2690
        %v2693 = vmul.f32 %v2683, %v2691
        %v2694 = vpack.c.bf16 %v2693, %v2692
        %v2695 = vpack.c.bf16 %v1941, %v1937
        %v2697 = vsel %vm2086, %v2694, 0
        %2699 = vmatprep.subr.bf16.mxu0 0
        %2700 = vmatpush1.bf16.msra.mxu0 0
        %2701 = vmatprep.subr.bf16.mxu0 0
        %2702 = vmatpush1.bf16.msra.mxu0 0
        %2703 = vmatprep.subr.bf16.mxu0 0
        %2704 = vmatpush1.bf16.msra.mxu0 0
        %2705 = vmatprep.subr.bf16.mxu0 0
        %2706 = vmatpush1.bf16.msra.mxu0 0
        %2707 = vmatprep.subr.bf16.mxu0 0
        %2708 = vmatpush1.bf16.msra.mxu0 0
        %2709 = vmatprep.subr.bf16.mxu0 0
        %2710 = vmatpush1.bf16.msra.mxu0 0
        %2711 = vmatprep.subr.bf16.mxu0 0
        %2712 = vmatpush1.bf16.msra.mxu0 0
        %2713 = vmatprep.subr.bf16.mxu0 0
        %2714 = vmatpush1.bf16.msra.mxu0 %v2695
        %2715 = vmatprep.subr.bf16.mxu0 0
        %2716 = vmatpush2.bf16.msra.mxu0 0
        %2717 = vmatprep.subr.bf16.mxu0 0
        %2718 = vmatpush2.bf16.msra.mxu0 0
        %2719 = vmatprep.subr.bf16.mxu0 0
        %2720 = vmatpush2.bf16.msra.mxu0 0
        %2721 = vmatprep.subr.bf16.mxu0 0
        %2722 = vmatpush2.bf16.msra.mxu0 0
        %2723 = vmatprep.subr.bf16.mxu0 0
        %2724 = vmatpush2.bf16.msra.mxu0 0
        %2725 = vmatprep.subr.bf16.mxu0 0
        %2726 = vmatpush2.bf16.msra.mxu0 0
        %2727 = vmatprep.subr.bf16.mxu0 0
        %2728 = vmatpush2.bf16.msra.mxu0 0
        %2729 = vmatprep.subr.bf16.mxu0 0
        %2730 = vmatpush2.bf16.msra.mxu0 0
        %2731 = vmatprep.mubr.bf16.mxu0 0
        %2732 = vmatmul.mubr.bf16.gmra.mxu0 %v2697
        %v2733 = vpop.f32.mrf.mxu0
        %v2734 = vadd.f32 0.0, %v2733
        %v2735 = vpop.f32.mrf.mxu0
        %v2736 = vpop.f32.mrf.mxu0
        %v2737 = vadd.f32 0.0, %v2736
        %v2738 = vpop.f32.mrf.mxu0
        %2739 = vdwg.mxu0
        %v2740 = vld [vmem:[#allocation7 + $0xc0] sm:$0xff]
        %v2741 = vld [vmem:[#allocation7 + $0xc8] sm:$0xf]
        %v2742 = vld [vmem:[#allocation7 + $0xcc] sm:$0xff]
        %v2743 = vld [vmem:[#allocation7 + $0xd4] sm:$0xf]
        %v2744 = vld [vmem:[#allocation7 + $0xd8] sm:$0xff]
        %v2745 = vld [vmem:[#allocation7 + $0xe0] sm:$0xf]
        %v2746 = vld [vmem:[#allocation7 + $0xe4] sm:$0xff]
        %v2747 = vld [vmem:[#allocation7 + $0xec] sm:$0xf]
        %v2748 = vld [vmem:[#allocation7 + $0xf0] sm:$0xff]
        %v2749 = vld [vmem:[#allocation7 + $0xf8] sm:$0xf]
        %v2750 = vld [vmem:[#allocation7 + $0xfc] sm:$0xff]
        %v2751 = vld [vmem:[#allocation7 + $0x104] sm:$0xf]
        %v2752 = vld [vmem:[#allocation7 + $0x108] sm:$0xff]
        %v2753 = vld [vmem:[#allocation7 + $0x110] sm:$0xf]
        %v2754 = vld [vmem:[#allocation7 + $0x114] sm:$0xff]
        %v2755 = vld [vmem:[#allocation7 + $0x11c] sm:$0xf]
        %v2756 = vpack.c.bf16 %v2737, %v2734
        %v2773 = vunpack.c.l.b16 %v2740
        %v2774 = vunpack.c.h.b16 %v2740
        %v2775 = vunpack.c.l.b16 %v2741
        %v2776 = vunpack.c.l.b16 %v2742
        %v2777 = vunpack.c.h.b16 %v2742
        %v2778 = vunpack.c.l.b16 %v2743
        %v2779 = vunpack.c.l.b16 %v2744
        %v2780 = vunpack.c.h.b16 %v2744
        %v2781 = vunpack.c.l.b16 %v2745
        %v2782 = vunpack.c.l.b16 %v2746
        %v2783 = vunpack.c.h.b16 %v2746
        %v2784 = vunpack.c.l.b16 %v2747
        %v2785 = vunpack.c.l.b16 %v2748
        %v2786 = vunpack.c.h.b16 %v2748
        %v2787 = vunpack.c.l.b16 %v2749
        %v2788 = vunpack.c.l.b16 %v2750
        %v2789 = vunpack.c.h.b16 %v2750
        %v2790 = vunpack.c.l.b16 %v2751
        %v2791 = vunpack.c.l.b16 %v2752
        %v2792 = vunpack.c.h.b16 %v2752
        %v2793 = vunpack.c.l.b16 %v2753
        %v2794 = vunpack.c.l.b16 %v2754
        %v2795 = vunpack.c.h.b16 %v2754
        %v2796 = vunpack.c.l.b16 %v2755
        %v2797 = vpack.c.b16 %v2776, %v2773
        %v2798 = vpack.c.b16 %v2777, %v2774
        %v2799 = vpack.c.b16 %v2778, %v2775
        %v2800 = vpack.c.b16 %v2782, %v2779
        %v2801 = vpack.c.b16 %v2783, %v2780
        %v2802 = vpack.c.b16 %v2784, %v2781
        %v2803 = vpack.c.b16 %v2788, %v2785
        %v2804 = vpack.c.b16 %v2789, %v2786
        %v2805 = vpack.c.b16 %v2790, %v2787
        %v2806 = vpack.c.b16 %v2794, %v2791
        %v2807 = vpack.c.b16 %v2795, %v2792
        %v2808 = vpack.c.b16 %v2796, %v2793
        %v2822 = vsel %vm2034, %v2756, 0
        %2824 = vmatprep.subr.bf16.mxu0 0
        %2825 = vmatpush1.bf16.msra.mxu0 0
        %2826 = vmatprep.subr.bf16.mxu0 0
        %2827 = vmatpush1.bf16.msra.mxu0 0
        %2828 = vmatprep.subr.bf16.mxu0 0
        %2829 = vmatpush1.bf16.msra.mxu0 0
        %2830 = vmatprep.subr.bf16.mxu0 0
        %2831 = vmatpush1.bf16.msra.mxu0 0
        %2832 = vmatprep.subr.bf16.mxu0 %v2807
        %2833 = vmatpush1.bf16.msra.mxu0 %v2806
        %2834 = vmatprep.subr.bf16.mxu0 %v2804
        %2835 = vmatpush1.bf16.msra.mxu0 %v2803
        %2836 = vmatprep.subr.bf16.mxu0 %v2801
        %2837 = vmatpush1.bf16.msra.mxu0 %v2800
        %2838 = vmatprep.subr.bf16.mxu0 %v2798
        %2839 = vmatpush1.bf16.msra.mxu0 %v2797
        %2840 = vmatprep.subr.bf16.mxu0 0
        %2841 = vmatpush2.bf16.msra.mxu0 0
        %2842 = vmatprep.subr.bf16.mxu0 0
        %2843 = vmatpush2.bf16.msra.mxu0 0
        %2844 = vmatprep.subr.bf16.mxu0 0
        %2845 = vmatpush2.bf16.msra.mxu0 0
        %2846 = vmatprep.subr.bf16.mxu0 0
        %2847 = vmatpush2.bf16.msra.mxu0 0
        %2848 = vmatprep.subr.bf16.mxu0 0
        %2849 = vmatpush2.bf16.msra.mxu0 0
        %2850 = vmatprep.subr.bf16.mxu0 0
        %2851 = vmatpush2.bf16.msra.mxu0 0
        %2852 = vmatprep.subr.bf16.mxu0 0
        %2853 = vmatpush2.bf16.msra.mxu0 0
        %2854 = vmatprep.subr.bf16.mxu0 0
        %2855 = vmatpush2.bf16.msra.mxu0 0
        %2856 = vmatprep.mubr.bf16.mxu0 0
        %2857 = vmatmul.mubr.bf16.gmra.mxu0 %v2822
        %v2858 = vpop.f32.mrf.mxu0
        %v2859 = vadd.f32 0.0, %v2858
        %v2860 = vpop.f32.mrf.mxu0
        %v2861 = vadd.f32 0.0, %v2860
        %v2862 = vpop.f32.mrf.mxu0
        %v2863 = vadd.f32 0.0, %v2862
        %v2864 = vpop.f32.mrf.mxu0
        %v2865 = vadd.f32 0.0, %v2864
        %2866 = vdwg.mxu0
        %2867 = vmatprep.subr.bf16.mxu0 0
        %2868 = vmatpush1.bf16.msra.mxu0 0
        %2869 = vmatprep.subr.bf16.mxu0 0
        %2870 = vmatpush1.bf16.msra.mxu0 0
        %2871 = vmatprep.subr.bf16.mxu0 0
        %2872 = vmatpush1.bf16.msra.mxu0 0
        %2873 = vmatprep.subr.bf16.mxu0 0
        %2874 = vmatpush1.bf16.msra.mxu0 0
        %2875 = vmatprep.subr.bf16.mxu0 0
        %2876 = vmatpush1.bf16.msra.mxu0 %v2808
        %2877 = vmatprep.subr.bf16.mxu0 0
        %2878 = vmatpush1.bf16.msra.mxu0 %v2805
        %2879 = vmatprep.subr.bf16.mxu0 0
        %2880 = vmatpush1.bf16.msra.mxu0 %v2802
        %2881 = vmatprep.subr.bf16.mxu0 0
        %2882 = vmatpush1.bf16.msra.mxu0 %v2799
        %2883 = vmatprep.subr.bf16.mxu0 0
        %2884 = vmatpush2.bf16.msra.mxu0 0
        %2885 = vmatprep.subr.bf16.mxu0 0
        %2886 = vmatpush2.bf16.msra.mxu0 0
        %2887 = vmatprep.subr.bf16.mxu0 0
        %2888 = vmatpush2.bf16.msra.mxu0 0
        %2889 = vmatprep.subr.bf16.mxu0 0
        %2890 = vmatpush2.bf16.msra.mxu0 0
        %2891 = vmatprep.subr.bf16.mxu0 0
        %2892 = vmatpush2.bf16.msra.mxu0 0
        %2893 = vmatprep.subr.bf16.mxu0 0
        %2894 = vmatpush2.bf16.msra.mxu0 0
        %2895 = vmatprep.subr.bf16.mxu0 0
        %2896 = vmatpush2.bf16.msra.mxu0 0
        %2897 = vmatprep.subr.bf16.mxu0 0
        %2898 = vmatpush2.bf16.msra.mxu0 0
        %2899 = vmatprep.mubr.bf16.mxu0 0
        %2900 = vmatmul.mubr.bf16.gmra.mxu0 %v2822
        %v2901 = vpop.f32.mrf.mxu0
        %v2902 = vadd.f32 0.0, %v2901
        %v2903 = vpop.f32.mrf.mxu0
        %v2904 = vpop.f32.mrf.mxu0
        %v2905 = vadd.f32 0.0, %v2904
        %v2906 = vpop.f32.mrf.mxu0
        %2907 = vdwg.mxu0
        %v2908 = vadd.f32 %v2570, %v2859
        %v2909 = vadd.f32 %v2572, %v2861
        %v2910 = vadd.f32 %v2613, %v2902
        %v2911 = vadd.f32 %v2574, %v2863
        %v2912 = vadd.f32 %v2576, %v2865
        %v2913 = vadd.f32 %v2616, %v2905
        %2915 = vrot.lane.b32.xlu0 %v2619, 64
        %v2916 = vpop.permute.xlu0 %2915
        %2918 = vrot.lane.b32.xlu0 %v2620, 64
        %v2919 = vpop.permute.xlu0 %2918
        %v2921 = vsel %vm2034, %v2916, 0
        %v2924 = vsel %vm2034, %v2919, 0
        %2926 = vmatprep.subr.bf16.mxu0 0
        %2927 = vmatpush1.bf16.xpose.msra.mxu0 0
        %2928 = vmatprep.subr.bf16.mxu0 0
        %2929 = vmatpush1.bf16.xpose.msra.mxu0 0
        %2930 = vmatprep.subr.bf16.mxu0 0
        %2931 = vmatpush1.bf16.xpose.msra.mxu0 0
        %2932 = vmatprep.subr.bf16.mxu0 0
        %2933 = vmatpush1.bf16.xpose.msra.mxu0 0
        %2934 = vmatprep.subr.bf16.mxu0 0
        %2935 = vmatpush1.bf16.xpose.msra.mxu0 0
        %2936 = vmatprep.subr.bf16.mxu0 0
        %2937 = vmatpush1.bf16.xpose.msra.mxu0 0
        %2938 = vmatprep.subr.bf16.mxu0 0
        %2939 = vmatpush1.bf16.xpose.msra.mxu0 0
        %2940 = vmatprep.subr.bf16.mxu0 0
        %2941 = vmatpush1.bf16.xpose.msra.mxu0 %v2924
        %2942 = vmatprep.subr.bf16.mxu0 0
        %2943 = vmatpush2.bf16.xpose.msra.mxu0 0
        %2944 = vmatprep.subr.bf16.mxu0 0
        %2945 = vmatpush2.bf16.xpose.msra.mxu0 0
        %2946 = vmatprep.subr.bf16.mxu0 0
        %2947 = vmatpush2.bf16.xpose.msra.mxu0 0
        %2948 = vmatprep.subr.bf16.mxu0 0
        %2949 = vmatpush2.bf16.xpose.msra.mxu0 0
        %2950 = vmatprep.subr.bf16.mxu0 0
        %2951 = vmatpush2.bf16.xpose.msra.mxu0 0
        %2952 = vmatprep.subr.bf16.mxu0 0
        %2953 = vmatpush2.bf16.xpose.msra.mxu0 0
        %2954 = vmatprep.subr.bf16.mxu0 0
        %2955 = vmatpush2.bf16.xpose.msra.mxu0 0
        %2956 = vmatprep.subr.bf16.mxu0 0
        %2957 = vmatpush2.bf16.xpose.msra.mxu0 0
        %2958 = vmatprep.mubr.bf16.mxu0 0
        %2959 = vmatmul.mubr.bf16.gmra.mxu0 %v2921
        %v2960 = vpop.f32.mrf.mxu0
        %v2961 = vadd.f32 0.0, %v2960
        %v2962 = vpop.f32.mrf.mxu0
        %v2963 = vpop.f32.mrf.mxu0
        %v2964 = vadd.f32 0.0, %v2963
        %v2965 = vpop.f32.mrf.mxu0
        %2966 = vdwg.mxu0
        %v2967 = vmul.f32 %v2961, 0.05103104
        %v2968 = vmul.f32 %v2964, 0.05103104
        %v2969 = vsel %vm2030, %v2967, -inf
        %v2970 = vsel %vm2031, %v2968, -inf
        %v2971 = vsel %vm2086, %v2969, -inf
        %2972 = vmax.xlane.f32.xlu0 %v2971
        %v2973 = vpop.xlane.xlu0 %2972
        %v2974 = vsel %vm2086, %v2970, -inf
        %2975 = vmax.xlane.f32.xlu0 %v2974
        %v2976 = vpop.xlane.xlu0 %2975
        %v2977 = vsub.f32 %v2969, %v2973
        %v2978 = vsub.f32 %v2970, %v2976
        %v2979 = vmul.f32 %v2977, 1.442695
        %v2980 = vpow.pop %v2979
        %v2981 = vmul.f32 %v2978, 1.442695
        %v2982 = vpow.pop %v2981
        %v2983 = vsel %vm2086, %v2980, 0.0
        %2984 = vadd.xlane.f32.xlu0 %v2983
        %v2985 = vpop.xlane.xlu0 %2984
        %v2986 = vsel %vm2086, %v2982, 0.0
        %2987 = vadd.xlane.f32.xlu0 %v2986
        %v2988 = vpop.xlane.xlu0 %2987
        %v2989 = vrcp.pop %v2985
        %v2990 = vrcp.pop %v2988
        %v2991 = vmul.f32 %v2980, %v2989
        %v2992 = vmul.f32 %v2982, %v2990
        %v2993 = vpack.c.bf16 %v2992, %v2991
        %2995 = vrot.lane.b32.xlu0 %v2695, 64
        %v2996 = vpop.permute.xlu0 %2995
        %v2999 = vsel %vm2086, %v2993, 0
        %3001 = vmatprep.subr.bf16.mxu0 0
        %3002 = vmatpush1.bf16.msra.mxu0 0
        %3003 = vmatprep.subr.bf16.mxu0 0
        %3004 = vmatpush1.bf16.msra.mxu0 0
        %3005 = vmatprep.subr.bf16.mxu0 0
        %3006 = vmatpush1.bf16.msra.mxu0 0
        %3007 = vmatprep.subr.bf16.mxu0 0
        %3008 = vmatpush1.bf16.msra.mxu0 0
        %3009 = vmatprep.subr.bf16.mxu0 0
        %3010 = vmatpush1.bf16.msra.mxu0 0
        %3011 = vmatprep.subr.bf16.mxu0 0
        %3012 = vmatpush1.bf16.msra.mxu0 0
        %3013 = vmatprep.subr.bf16.mxu0 0
        %3014 = vmatpush1.bf16.msra.mxu0 0
        %3015 = vmatprep.subr.bf16.mxu0 0
        %3016 = vmatpush1.bf16.msra.mxu0 %v2996
        %3017 = vmatprep.subr.bf16.mxu0 0
        %3018 = vmatpush2.bf16.msra.mxu0 0
        %3019 = vmatprep.subr.bf16.mxu0 0
        %3020 = vmatpush2.bf16.msra.mxu0 0
        %3021 = vmatprep.subr.bf16.mxu0 0
        %3022 = vmatpush2.bf16.msra.mxu0 0
        %3023 = vmatprep.subr.bf16.mxu0 0
        %3024 = vmatpush2.bf16.msra.mxu0 0
        %3025 = vmatprep.subr.bf16.mxu0 0
        %3026 = vmatpush2.bf16.msra.mxu0 0
        %3027 = vmatprep.subr.bf16.mxu0 0
        %3028 = vmatpush2.bf16.msra.mxu0 0
        %3029 = vmatprep.subr.bf16.mxu0 0
        %3030 = vmatpush2.bf16.msra.mxu0 0
        %3031 = vmatprep.subr.bf16.mxu0 0
        %3032 = vmatpush2.bf16.msra.mxu0 0
        %3033 = vmatprep.mubr.bf16.mxu0 0
        %3034 = vmatmul.mubr.bf16.gmra.mxu0 %v2999
        %v3035 = vpop.f32.mrf.mxu0
        %v3036 = vadd.f32 0.0, %v3035
        %v3037 = vpop.f32.mrf.mxu0
        %v3038 = vpop.f32.mrf.mxu0
        %v3039 = vadd.f32 0.0, %v3038
        %v3040 = vpop.f32.mrf.mxu0
        %3041 = vdwg.mxu0
        %v3042 = vld [vmem:[#allocation7 + $0x120] sm:$0xff]
        %v3043 = vld [vmem:[#allocation7 + $0x128] sm:$0xf]
        %v3044 = vld [vmem:[#allocation7 + $0x12c] sm:$0xff]
        %v3045 = vld [vmem:[#allocation7 + $0x134] sm:$0xf]
        %v3046 = vld [vmem:[#allocation7 + $0x138] sm:$0xff]
        %v3047 = vld [vmem:[#allocation7 + $0x140] sm:$0xf]
        %v3048 = vld [vmem:[#allocation7 + $0x144] sm:$0xff]
        %v3049 = vld [vmem:[#allocation7 + $0x14c] sm:$0xf]
        %v3050 = vld [vmem:[#allocation7 + $0x150] sm:$0xff]
        %v3051 = vld [vmem:[#allocation7 + $0x158] sm:$0xf]
        %v3052 = vld [vmem:[#allocation7 + $0x15c] sm:$0xff]
        %v3053 = vld [vmem:[#allocation7 + $0x164] sm:$0xf]
        %v3054 = vld [vmem:[#allocation7 + $0x168] sm:$0xff]
        %v3055 = vld [vmem:[#allocation7 + $0x170] sm:$0xf]
        %v3056 = vld [vmem:[#allocation7 + $0x174] sm:$0xff]
        %v3057 = vld [vmem:[#allocation7 + $0x17c] sm:$0xf]
        %v3058 = vpack.c.bf16 %v3039, %v3036
        %v3075 = vunpack.c.l.b16 %v3042
        %v3076 = vunpack.c.h.b16 %v3042
        %v3077 = vunpack.c.l.b16 %v3043
        %v3078 = vunpack.c.l.b16 %v3044
        %v3079 = vunpack.c.h.b16 %v3044
        %v3080 = vunpack.c.l.b16 %v3045
        %v3081 = vunpack.c.l.b16 %v3046
        %v3082 = vunpack.c.h.b16 %v3046
        %v3083 = vunpack.c.l.b16 %v3047
        %v3084 = vunpack.c.l.b16 %v3048
        %v3085 = vunpack.c.h.b16 %v3048
        %v3086 = vunpack.c.l.b16 %v3049
        %v3087 = vunpack.c.l.b16 %v3050
        %v3088 = vunpack.c.h.b16 %v3050
        %v3089 = vunpack.c.l.b16 %v3051
        %v3090 = vunpack.c.l.b16 %v3052
        %v3091 = vunpack.c.h.b16 %v3052
        %v3092 = vunpack.c.l.b16 %v3053
        %v3093 = vunpack.c.l.b16 %v3054
        %v3094 = vunpack.c.h.b16 %v3054
        %v3095 = vunpack.c.l.b16 %v3055
        %v3096 = vunpack.c.l.b16 %v3056
        %v3097 = vunpack.c.h.b16 %v3056
        %v3098 = vunpack.c.l.b16 %v3057
        %v3099 = vpack.c.b16 %v3078, %v3075
        %v3100 = vpack.c.b16 %v3079, %v3076
        %v3101 = vpack.c.b16 %v3080, %v3077
        %v3102 = vpack.c.b16 %v3084, %v3081
        %v3103 = vpack.c.b16 %v3085, %v3082
        %v3104 = vpack.c.b16 %v3086, %v3083
        %v3105 = vpack.c.b16 %v3090, %v3087
        %v3106 = vpack.c.b16 %v3091, %v3088
        %v3107 = vpack.c.b16 %v3092, %v3089
        %v3108 = vpack.c.b16 %v3096, %v3093
        %v3109 = vpack.c.b16 %v3097, %v3094
        %v3110 = vpack.c.b16 %v3098, %v3095
        %v3124 = vsel %vm2034, %v3058, 0
        %3126 = vmatprep.subr.bf16.mxu0 0
        %3127 = vmatpush1.bf16.msra.mxu0 0
        %3128 = vmatprep.subr.bf16.mxu0 0
        %3129 = vmatpush1.bf16.msra.mxu0 0
        %3130 = vmatprep.subr.bf16.mxu0 0
        %3131 = vmatpush1.bf16.msra.mxu0 0
        %3132 = vmatprep.subr.bf16.mxu0 0
        %3133 = vmatpush1.bf16.msra.mxu0 0
        %3134 = vmatprep.subr.bf16.mxu0 %v3109
        %3135 = vmatpush1.bf16.msra.mxu0 %v3108
        %3136 = vmatprep.subr.bf16.mxu0 %v3106
        %3137 = vmatpush1.bf16.msra.mxu0 %v3105
        %3138 = vmatprep.subr.bf16.mxu0 %v3103
        %3139 = vmatpush1.bf16.msra.mxu0 %v3102
        %3140 = vmatprep.subr.bf16.mxu0 %v3100
        %3141 = vmatpush1.bf16.msra.mxu0 %v3099
        %3142 = vmatprep.subr.bf16.mxu0 0
        %3143 = vmatpush2.bf16.msra.mxu0 0
        %3144 = vmatprep.subr.bf16.mxu0 0
        %3145 = vmatpush2.bf16.msra.mxu0 0
        %3146 = vmatprep.subr.bf16.mxu0 0
        %3147 = vmatpush2.bf16.msra.mxu0 0
        %3148 = vmatprep.subr.bf16.mxu0 0
        %3149 = vmatpush2.bf16.msra.mxu0 0
        %3150 = vmatprep.subr.bf16.mxu0 0
        %3151 = vmatpush2.bf16.msra.mxu0 0
        %3152 = vmatprep.subr.bf16.mxu0 0
        %3153 = vmatpush2.bf16.msra.mxu0 0
        %3154 = vmatprep.subr.bf16.mxu0 0
        %3155 = vmatpush2.bf16.msra.mxu0 0
        %3156 = vmatprep.subr.bf16.mxu0 0
        %3157 = vmatpush2.bf16.msra.mxu0 0
        %3158 = vmatprep.mubr.bf16.mxu0 0
        %3159 = vmatmul.mubr.bf16.gmra.mxu0 %v3124
        %v3160 = vpop.f32.mrf.mxu0
        %v3161 = vadd.f32 0.0, %v3160
        %v3162 = vpop.f32.mrf.mxu0
        %v3163 = vadd.f32 0.0, %v3162
        %v3164 = vpop.f32.mrf.mxu0
        %v3165 = vadd.f32 0.0, %v3164
        %v3166 = vpop.f32.mrf.mxu0
        %v3167 = vadd.f32 0.0, %v3166
        %3168 = vdwg.mxu0
        %3169 = vmatprep.subr.bf16.mxu0 0
        %3170 = vmatpush1.bf16.msra.mxu0 0
        %3171 = vmatprep.subr.bf16.mxu0 0
        %3172 = vmatpush1.bf16.msra.mxu0 0
        %3173 = vmatprep.subr.bf16.mxu0 0
        %3174 = vmatpush1.bf16.msra.mxu0 0
        %3175 = vmatprep.subr.bf16.mxu0 0
        %3176 = vmatpush1.bf16.msra.mxu0 0
        %3177 = vmatprep.subr.bf16.mxu0 0
        %3178 = vmatpush1.bf16.msra.mxu0 %v3110
        %3179 = vmatprep.subr.bf16.mxu0 0
        %3180 = vmatpush1.bf16.msra.mxu0 %v3107
        %3181 = vmatprep.subr.bf16.mxu0 0
        %3182 = vmatpush1.bf16.msra.mxu0 %v3104
        %3183 = vmatprep.subr.bf16.mxu0 0
        %3184 = vmatpush1.bf16.msra.mxu0 %v3101
        %3185 = vmatprep.subr.bf16.mxu0 0
        %3186 = vmatpush2.bf16.msra.mxu0 0
        %3187 = vmatprep.subr.bf16.mxu0 0
        %3188 = vmatpush2.bf16.msra.mxu0 0
        %3189 = vmatprep.subr.bf16.mxu0 0
        %3190 = vmatpush2.bf16.msra.mxu0 0
        %3191 = vmatprep.subr.bf16.mxu0 0
        %3192 = vmatpush2.bf16.msra.mxu0 0
        %3193 = vmatprep.subr.bf16.mxu0 0
        %3194 = vmatpush2.bf16.msra.mxu0 0
        %3195 = vmatprep.subr.bf16.mxu0 0
        %3196 = vmatpush2.bf16.msra.mxu0 0
        %3197 = vmatprep.subr.bf16.mxu0 0
        %3198 = vmatpush2.bf16.msra.mxu0 0
        %3199 = vmatprep.subr.bf16.mxu0 0
        %3200 = vmatpush2.bf16.msra.mxu0 0
        %3201 = vmatprep.mubr.bf16.mxu0 0
        %3202 = vmatmul.mubr.bf16.gmra.mxu0 %v3124
        %v3203 = vpop.f32.mrf.mxu0
        %v3204 = vadd.f32 0.0, %v3203
        %v3205 = vpop.f32.mrf.mxu0
        %v3206 = vpop.f32.mrf.mxu0
        %v3207 = vadd.f32 0.0, %v3206
        %v3208 = vpop.f32.mrf.mxu0
        %3209 = vdwg.mxu0
        %v3210 = vadd.f32 %v2908, %v3161
        %v3211 = vadd.f32 %v2909, %v3163
        %v3212 = vadd.f32 %v2910, %v3204
        %v3213 = vadd.f32 %v2911, %v3165
        %v3214 = vadd.f32 %v2912, %v3167
        %v3215 = vadd.f32 %v2913, %v3207
        %v3216 = vpack.c.bf16 %v1767, %v1763
        %v3217 = vpack.c.bf16 %v1855, %v1851
        %v3219 = vsel %vm2034, %v3216, 0
        %v3222 = vsel %vm2034, %v3217, 0
        %3224 = vmatprep.subr.bf16.mxu0 0
        %3225 = vmatpush1.bf16.xpose.msra.mxu0 0
        %3226 = vmatprep.subr.bf16.mxu0 0
        %3227 = vmatpush1.bf16.xpose.msra.mxu0 0
        %3228 = vmatprep.subr.bf16.mxu0 0
        %3229 = vmatpush1.bf16.xpose.msra.mxu0 0
        %3230 = vmatprep.subr.bf16.mxu0 0
        %3231 = vmatpush1.bf16.xpose.msra.mxu0 0
        %3232 = vmatprep.subr.bf16.mxu0 0
        %3233 = vmatpush1.bf16.xpose.msra.mxu0 0
        %3234 = vmatprep.subr.bf16.mxu0 0
        %3235 = vmatpush1.bf16.xpose.msra.mxu0 0
        %3236 = vmatprep.subr.bf16.mxu0 0
        %3237 = vmatpush1.bf16.xpose.msra.mxu0 0
        %3238 = vmatprep.subr.bf16.mxu0 0
        %3239 = vmatpush1.bf16.xpose.msra.mxu0 %v3222
        %3240 = vmatprep.subr.bf16.mxu0 0
        %3241 = vmatpush2.bf16.xpose.msra.mxu0 0
        %3242 = vmatprep.subr.bf16.mxu0 0
        %3243 = vmatpush2.bf16.xpose.msra.mxu0 0
        %3244 = vmatprep.subr.bf16.mxu0 0
        %3245 = vmatpush2.bf16.xpose.msra.mxu0 0
        %3246 = vmatprep.subr.bf16.mxu0 0
        %3247 = vmatpush2.bf16.xpose.msra.mxu0 0
        %3248 = vmatprep.subr.bf16.mxu0 0
        %3249 = vmatpush2.bf16.xpose.msra.mxu0 0
        %3250 = vmatprep.subr.bf16.mxu0 0
        %3251 = vmatpush2.bf16.xpose.msra.mxu0 0
        %3252 = vmatprep.subr.bf16.mxu0 0
        %3253 = vmatpush2.bf16.xpose.msra.mxu0 0
        %3254 = vmatprep.subr.bf16.mxu0 0
        %3255 = vmatpush2.bf16.xpose.msra.mxu0 0
        %3256 = vmatprep.mubr.bf16.mxu0 0
        %3257 = vmatmul.mubr.bf16.gmra.mxu0 %v3219
        %v3258 = vpop.f32.mrf.mxu0
        %v3259 = vadd.f32 0.0, %v3258
        %v3260 = vpop.f32.mrf.mxu0
        %v3261 = vpop.f32.mrf.mxu0
        %v3262 = vadd.f32 0.0, %v3261
        %v3263 = vpop.f32.mrf.mxu0
        %3264 = vdwg.mxu0
        %v3265 = vmul.f32 %v3259, 0.05103104
        %v3266 = vmul.f32 %v3262, 0.05103104
        %v3267 = vsel %vm2030, %v3265, -inf
        %v3268 = vsel %vm2031, %v3266, -inf
        %v3269 = vsel %vm2086, %v3267, -inf
        %3270 = vmax.xlane.f32.xlu0 %v3269
        %v3271 = vpop.xlane.xlu0 %3270
        %v3272 = vsel %vm2086, %v3268, -inf
        %3273 = vmax.xlane.f32.xlu0 %v3272
        %v3274 = vpop.xlane.xlu0 %3273
        %v3275 = vsub.f32 %v3267, %v3271
        %v3276 = vsub.f32 %v3268, %v3274
        %v3277 = vmul.f32 %v3275, 1.442695
        %v3278 = vpow.pop %v3277
        %v3279 = vmul.f32 %v3276, 1.442695
        %v3280 = vpow.pop %v3279
        %v3281 = vsel %vm2086, %v3278, 0.0
        %3282 = vadd.xlane.f32.xlu0 %v3281
        %v3283 = vpop.xlane.xlu0 %3282
        %v3284 = vsel %vm2086, %v3280, 0.0
        %3285 = vadd.xlane.f32.xlu0 %v3284
        %v3286 = vpop.xlane.xlu0 %3285
        %v3287 = vrcp.pop %v3283
        %v3288 = vrcp.pop %v3286
        %v3289 = vmul.f32 %v3278, %v3287
        %v3290 = vmul.f32 %v3280, %v3288
        %v3291 = vpack.c.bf16 %v3290, %v3289
        %v3292 = vpack.c.bf16 %v2022, %v2019
        %v3294 = vsel %vm2086, %v3291, 0
        %3296 = vmatprep.subr.bf16.mxu0 0
        %3297 = vmatpush1.bf16.msra.mxu0 0
        %3298 = vmatprep.subr.bf16.mxu0 0
        %3299 = vmatpush1.bf16.msra.mxu0 0
        %3300 = vmatprep.subr.bf16.mxu0 0
        %3301 = vmatpush1.bf16.msra.mxu0 0
        %3302 = vmatprep.subr.bf16.mxu0 0
        %3303 = vmatpush1.bf16.msra.mxu0 0
        %3304 = vmatprep.subr.bf16.mxu0 0
        %3305 = vmatpush1.bf16.msra.mxu0 0
        %3306 = vmatprep.subr.bf16.mxu0 0
        %3307 = vmatpush1.bf16.msra.mxu0 0
        %3308 = vmatprep.subr.bf16.mxu0 0
        %3309 = vmatpush1.bf16.msra.mxu0 0
        %3310 = vmatprep.subr.bf16.mxu0 0
        %3311 = vmatpush1.bf16.msra.mxu0 %v3292
        %3312 = vmatprep.subr.bf16.mxu0 0
        %3313 = vmatpush2.bf16.msra.mxu0 0
        %3314 = vmatprep.subr.bf16.mxu0 0
        %3315 = vmatpush2.bf16.msra.mxu0 0
        %3316 = vmatprep.subr.bf16.mxu0 0
        %3317 = vmatpush2.bf16.msra.mxu0 0
        %3318 = vmatprep.subr.bf16.mxu0 0
        %3319 = vmatpush2.bf16.msra.mxu0 0
        %3320 = vmatprep.subr.bf16.mxu0 0
        %3321 = vmatpush2.bf16.msra.mxu0 0
        %3322 = vmatprep.subr.bf16.mxu0 0
        %3323 = vmatpush2.bf16.msra.mxu0 0
        %3324 = vmatprep.subr.bf16.mxu0 0
        %3325 = vmatpush2.bf16.msra.mxu0 0
        %3326 = vmatprep.subr.bf16.mxu0 0
        %3327 = vmatpush2.bf16.msra.mxu0 0
        %3328 = vmatprep.mubr.bf16.mxu0 0
        %3329 = vmatmul.mubr.bf16.gmra.mxu0 %v3294
        %v3330 = vpop.f32.mrf.mxu0
        %v3331 = vadd.f32 0.0, %v3330
        %v3332 = vpop.f32.mrf.mxu0
        %v3333 = vpop.f32.mrf.mxu0
        %v3334 = vadd.f32 0.0, %v3333
        %v3335 = vpop.f32.mrf.mxu0
        %3336 = vdwg.mxu0
        %v3337 = vld [vmem:[#allocation7 + $0x180] sm:$0xff]
        %v3338 = vld [vmem:[#allocation7 + $0x188] sm:$0xf]
        %v3339 = vld [vmem:[#allocation7 + $0x18c] sm:$0xff]
        %v3340 = vld [vmem:[#allocation7 + $0x194] sm:$0xf]
        %v3341 = vld [vmem:[#allocation7 + $0x198] sm:$0xff]
        %v3342 = vld [vmem:[#allocation7 + $0x1a0] sm:$0xf]
        %v3343 = vld [vmem:[#allocation7 + $0x1a4] sm:$0xff]
        %v3344 = vld [vmem:[#allocation7 + $0x1ac] sm:$0xf]
        %v3345 = vld [vmem:[#allocation7 + $0x1b0] sm:$0xff]
        %v3346 = vld [vmem:[#allocation7 + $0x1b8] sm:$0xf]
        %v3347 = vld [vmem:[#allocation7 + $0x1bc] sm:$0xff]
        %v3348 = vld [vmem:[#allocation7 + $0x1c4] sm:$0xf]
        %v3349 = vld [vmem:[#allocation7 + $0x1c8] sm:$0xff]
        %v3350 = vld [vmem:[#allocation7 + $0x1d0] sm:$0xf]
        %v3351 = vld [vmem:[#allocation7 + $0x1d4] sm:$0xff]
        %v3352 = vld [vmem:[#allocation7 + $0x1dc] sm:$0xf]
        %v3353 = vpack.c.bf16 %v3334, %v3331
        %v3370 = vunpack.c.l.b16 %v3337
        %v3371 = vunpack.c.h.b16 %v3337
        %v3372 = vunpack.c.l.b16 %v3338
        %v3373 = vunpack.c.l.b16 %v3339
        %v3374 = vunpack.c.h.b16 %v3339
        %v3375 = vunpack.c.l.b16 %v3340
        %v3376 = vunpack.c.l.b16 %v3341
        %v3377 = vunpack.c.h.b16 %v3341
        %v3378 = vunpack.c.l.b16 %v3342
        %v3379 = vunpack.c.l.b16 %v3343
        %v3380 = vunpack.c.h.b16 %v3343
        %v3381 = vunpack.c.l.b16 %v3344
        %v3382 = vunpack.c.l.b16 %v3345
        %v3383 = vunpack.c.h.b16 %v3345
        %v3384 = vunpack.c.l.b16 %v3346
        %v3385 = vunpack.c.l.b16 %v3347
        %v3386 = vunpack.c.h.b16 %v3347
        %v3387 = vunpack.c.l.b16 %v3348
        %v3388 = vunpack.c.l.b16 %v3349
        %v3389 = vunpack.c.h.b16 %v3349
        %v3390 = vunpack.c.l.b16 %v3350
        %v3391 = vunpack.c.l.b16 %v3351
        %v3392 = vunpack.c.h.b16 %v3351
        %v3393 = vunpack.c.l.b16 %v3352
        %v3394 = vpack.c.b16 %v3373, %v3370
        %v3395 = vpack.c.b16 %v3374, %v3371
        %v3396 = vpack.c.b16 %v3375, %v3372
        %v3397 = vpack.c.b16 %v3379, %v3376
        %v3398 = vpack.c.b16 %v3380, %v3377
        %v3399 = vpack.c.b16 %v3381, %v3378
        %v3400 = vpack.c.b16 %v3385, %v3382
        %v3401 = vpack.c.b16 %v3386, %v3383
        %v3402 = vpack.c.b16 %v3387, %v3384
        %v3403 = vpack.c.b16 %v3391, %v3388
        %v3404 = vpack.c.b16 %v3392, %v3389
        %v3405 = vpack.c.b16 %v3393, %v3390
        %v3419 = vsel %vm2034, %v3353, 0
        %3421 = vmatprep.subr.bf16.mxu0 0
        %3422 = vmatpush1.bf16.msra.mxu0 0
        %3423 = vmatprep.subr.bf16.mxu0 0
        %3424 = vmatpush1.bf16.msra.mxu0 0
        %3425 = vmatprep.subr.bf16.mxu0 0
        %3426 = vmatpush1.bf16.msra.mxu0 0
        %3427 = vmatprep.subr.bf16.mxu0 0
        %3428 = vmatpush1.bf16.msra.mxu0 0
        %3429 = vmatprep.subr.bf16.mxu0 %v3404
        %3430 = vmatpush1.bf16.msra.mxu0 %v3403
        %3431 = vmatprep.subr.bf16.mxu0 %v3401
        %3432 = vmatpush1.bf16.msra.mxu0 %v3400
        %3433 = vmatprep.subr.bf16.mxu0 %v3398
        %3434 = vmatpush1.bf16.msra.mxu0 %v3397
        %3435 = vmatprep.subr.bf16.mxu0 %v3395
        %3436 = vmatpush1.bf16.msra.mxu0 %v3394
        %3437 = vmatprep.subr.bf16.mxu0 0
        %3438 = vmatpush2.bf16.msra.mxu0 0
        %3439 = vmatprep.subr.bf16.mxu0 0
        %3440 = vmatpush2.bf16.msra.mxu0 0
        %3441 = vmatprep.subr.bf16.mxu0 0
        %3442 = vmatpush2.bf16.msra.mxu0 0
        %3443 = vmatprep.subr.bf16.mxu0 0
        %3444 = vmatpush2.bf16.msra.mxu0 0
        %3445 = vmatprep.subr.bf16.mxu0 0
        %3446 = vmatpush2.bf16.msra.mxu0 0
        %3447 = vmatprep.subr.bf16.mxu0 0
        %3448 = vmatpush2.bf16.msra.mxu0 0
        %3449 = vmatprep.subr.bf16.mxu0 0
        %3450 = vmatpush2.bf16.msra.mxu0 0
        %3451 = vmatprep.subr.bf16.mxu0 0
        %3452 = vmatpush2.bf16.msra.mxu0 0
        %3453 = vmatprep.mubr.bf16.mxu0 0
        %3454 = vmatmul.mubr.bf16.gmra.mxu0 %v3419
        %v3455 = vpop.f32.mrf.mxu0
        %v3456 = vadd.f32 0.0, %v3455
        %v3457 = vpop.f32.mrf.mxu0
        %v3458 = vadd.f32 0.0, %v3457
        %v3459 = vpop.f32.mrf.mxu0
        %v3460 = vadd.f32 0.0, %v3459
        %v3461 = vpop.f32.mrf.mxu0
        %v3462 = vadd.f32 0.0, %v3461
        %3463 = vdwg.mxu0
        %3464 = vmatprep.subr.bf16.mxu0 0
        %3465 = vmatpush1.bf16.msra.mxu0 0
        %3466 = vmatprep.subr.bf16.mxu0 0
        %3467 = vmatpush1.bf16.msra.mxu0 0
        %3468 = vmatprep.subr.bf16.mxu0 0
        %3469 = vmatpush1.bf16.msra.mxu0 0
        %3470 = vmatprep.subr.bf16.mxu0 0
        %3471 = vmatpush1.bf16.msra.mxu0 0
        %3472 = vmatprep.subr.bf16.mxu0 0
        %3473 = vmatpush1.bf16.msra.mxu0 %v3405
        %3474 = vmatprep.subr.bf16.mxu0 0
        %3475 = vmatpush1.bf16.msra.mxu0 %v3402
        %3476 = vmatprep.subr.bf16.mxu0 0
        %3477 = vmatpush1.bf16.msra.mxu0 %v3399
        %3478 = vmatprep.subr.bf16.mxu0 0
        %3479 = vmatpush1.bf16.msra.mxu0 %v3396
        %3480 = vmatprep.subr.bf16.mxu0 0
        %3481 = vmatpush2.bf16.msra.mxu0 0
        %3482 = vmatprep.subr.bf16.mxu0 0
        %3483 = vmatpush2.bf16.msra.mxu0 0
        %3484 = vmatprep.subr.bf16.mxu0 0
        %3485 = vmatpush2.bf16.msra.mxu0 0
        %3486 = vmatprep.subr.bf16.mxu0 0
        %3487 = vmatpush2.bf16.msra.mxu0 0
        %3488 = vmatprep.subr.bf16.mxu0 0
        %3489 = vmatpush2.bf16.msra.mxu0 0
        %3490 = vmatprep.subr.bf16.mxu0 0
        %3491 = vmatpush2.bf16.msra.mxu0 0
        %3492 = vmatprep.subr.bf16.mxu0 0
        %3493 = vmatpush2.bf16.msra.mxu0 0
        %3494 = vmatprep.subr.bf16.mxu0 0
        %3495 = vmatpush2.bf16.msra.mxu0 0
        %3496 = vmatprep.mubr.bf16.mxu0 0
        %3497 = vmatmul.mubr.bf16.gmra.mxu0 %v3419
        %v3498 = vpop.f32.mrf.mxu0
        %v3499 = vadd.f32 0.0, %v3498
        %v3500 = vpop.f32.mrf.mxu0
        %v3501 = vpop.f32.mrf.mxu0
        %v3502 = vadd.f32 0.0, %v3501
        %v3503 = vpop.f32.mrf.mxu0
        %3504 = vdwg.mxu0
        %v3505 = vadd.f32 %v3210, %v3456
        %v3506 = vadd.f32 %v3211, %v3458
        %v3507 = vadd.f32 %v3212, %v3499
        %v3508 = vadd.f32 %v3213, %v3460
        %v3509 = vadd.f32 %v3214, %v3462
        %v3510 = vadd.f32 %v3215, %v3502
        %3512 = vrot.lane.b32.xlu0 %v3216, 64
        %v3513 = vpop.permute.xlu0 %3512
        %3515 = vrot.lane.b32.xlu0 %v3217, 64
        %v3516 = vpop.permute.xlu0 %3515
        %v3518 = vsel %vm2034, %v3513, 0
        %v3521 = vsel %vm2034, %v3516, 0
        %3523 = vmatprep.subr.bf16.mxu0 0
        %3524 = vmatpush1.bf16.xpose.msra.mxu0 0
        %3525 = vmatprep.subr.bf16.mxu0 0
        %3526 = vmatpush1.bf16.xpose.msra.mxu0 0
        %3527 = vmatprep.subr.bf16.mxu0 0
        %3528 = vmatpush1.bf16.xpose.msra.mxu0 0
        %3529 = vmatprep.subr.bf16.mxu0 0
        %3530 = vmatpush1.bf16.xpose.msra.mxu0 0
        %3531 = vmatprep.subr.bf16.mxu0 0
        %3532 = vmatpush1.bf16.xpose.msra.mxu0 0
        %3533 = vmatprep.subr.bf16.mxu0 0
        %3534 = vmatpush1.bf16.xpose.msra.mxu0 0
        %3535 = vmatprep.subr.bf16.mxu0 0
        %3536 = vmatpush1.bf16.xpose.msra.mxu0 0
        %3537 = vmatprep.subr.bf16.mxu0 0
        %3538 = vmatpush1.bf16.xpose.msra.mxu0 %v3521
        %3539 = vmatprep.subr.bf16.mxu0 0
        %3540 = vmatpush2.bf16.xpose.msra.mxu0 0
        %3541 = vmatprep.subr.bf16.mxu0 0
        %3542 = vmatpush2.bf16.xpose.msra.mxu0 0
        %3543 = vmatprep.subr.bf16.mxu0 0
        %3544 = vmatpush2.bf16.xpose.msra.mxu0 0
        %3545 = vmatprep.subr.bf16.mxu0 0
        %3546 = vmatpush2.bf16.xpose.msra.mxu0 0
        %3547 = vmatprep.subr.bf16.mxu0 0
        %3548 = vmatpush2.bf16.xpose.msra.mxu0 0
        %3549 = vmatprep.subr.bf16.mxu0 0
        %3550 = vmatpush2.bf16.xpose.msra.mxu0 0
        %3551 = vmatprep.subr.bf16.mxu0 0
        %3552 = vmatpush2.bf16.xpose.msra.mxu0 0
        %3553 = vmatprep.subr.bf16.mxu0 0
        %3554 = vmatpush2.bf16.xpose.msra.mxu0 0
        %3555 = vmatprep.mubr.bf16.mxu0 0
        %3556 = vmatmul.mubr.bf16.gmra.mxu0 %v3518
        %v3557 = vpop.f32.mrf.mxu0
        %v3558 = vadd.f32 0.0, %v3557
        %v3559 = vpop.f32.mrf.mxu0
        %v3560 = vpop.f32.mrf.mxu0
        %v3561 = vadd.f32 0.0, %v3560
        %v3562 = vpop.f32.mrf.mxu0
        %3563 = vdwg.mxu0
        %v3564 = vmul.f32 %v3558, 0.05103104
        %v3565 = vmul.f32 %v3561, 0.05103104
        %v3566 = vsel %vm2030, %v3564, -inf
        %v3567 = vsel %vm2031, %v3565, -inf
        %v3568 = vsel %vm2086, %v3566, -inf
        %3569 = vmax.xlane.f32.xlu0 %v3568
        %v3570 = vpop.xlane.xlu0 %3569
        %v3571 = vsel %vm2086, %v3567, -inf
        %3572 = vmax.xlane.f32.xlu0 %v3571
        %v3573 = vpop.xlane.xlu0 %3572
        %v3574 = vsub.f32 %v3566, %v3570
        %v3575 = vsub.f32 %v3567, %v3573
        %v3576 = vmul.f32 %v3574, 1.442695
        %v3577 = vpow.pop %v3576
        %v3578 = vmul.f32 %v3575, 1.442695
        %v3579 = vpow.pop %v3578
        %v3580 = vsel %vm2086, %v3577, 0.0
        %3581 = vadd.xlane.f32.xlu0 %v3580
        %v3582 = vpop.xlane.xlu0 %3581
        %v3583 = vsel %vm2086, %v3579, 0.0
        %3584 = vadd.xlane.f32.xlu0 %v3583
        %v3585 = vpop.xlane.xlu0 %3584
        %v3586 = vrcp.pop %v3582
        %v3587 = vrcp.pop %v3585
        %v3588 = vmul.f32 %v3577, %v3586
        %v3589 = vmul.f32 %v3579, %v3587
        %v3590 = vpack.c.bf16 %v3589, %v3588
        %3592 = vrot.lane.b32.xlu0 %v3292, 64
        %v3593 = vpop.permute.xlu0 %3592
        %v3596 = vsel %vm2086, %v3590, 0
        %3598 = vmatprep.subr.bf16.mxu0 0
        %3599 = vmatpush1.bf16.msra.mxu0 0
        %3600 = vmatprep.subr.bf16.mxu0 0
        %3601 = vmatpush1.bf16.msra.mxu0 0
        %3602 = vmatprep.subr.bf16.mxu0 0
        %3603 = vmatpush1.bf16.msra.mxu0 0
        %3604 = vmatprep.subr.bf16.mxu0 0
        %3605 = vmatpush1.bf16.msra.mxu0 0
        %3606 = vmatprep.subr.bf16.mxu0 0
        %3607 = vmatpush1.bf16.msra.mxu0 0
        %3608 = vmatprep.subr.bf16.mxu0 0
        %3609 = vmatpush1.bf16.msra.mxu0 0
        %3610 = vmatprep.subr.bf16.mxu0 0
        %3611 = vmatpush1.bf16.msra.mxu0 0
        %3612 = vmatprep.subr.bf16.mxu0 0
        %3613 = vmatpush1.bf16.msra.mxu0 %v3593
        %3614 = vmatprep.subr.bf16.mxu0 0
        %3615 = vmatpush2.bf16.msra.mxu0 0
        %3616 = vmatprep.subr.bf16.mxu0 0
        %3617 = vmatpush2.bf16.msra.mxu0 0
        %3618 = vmatprep.subr.bf16.mxu0 0
        %3619 = vmatpush2.bf16.msra.mxu0 0
        %3620 = vmatprep.subr.bf16.mxu0 0
        %3621 = vmatpush2.bf16.msra.mxu0 0
        %3622 = vmatprep.subr.bf16.mxu0 0
        %3623 = vmatpush2.bf16.msra.mxu0 0
        %3624 = vmatprep.subr.bf16.mxu0 0
        %3625 = vmatpush2.bf16.msra.mxu0 0
        %3626 = vmatprep.subr.bf16.mxu0 0
        %3627 = vmatpush2.bf16.msra.mxu0 0
        %3628 = vmatprep.subr.bf16.mxu0 0
        %3629 = vmatpush2.bf16.msra.mxu0 0
        %3630 = vmatprep.mubr.bf16.mxu0 0
        %3631 = vmatmul.mubr.bf16.gmra.mxu0 %v3596
        %v3632 = vpop.f32.mrf.mxu0
        %v3633 = vadd.f32 0.0, %v3632
        %v3634 = vpop.f32.mrf.mxu0
        %v3635 = vpop.f32.mrf.mxu0
        %v3636 = vadd.f32 0.0, %v3635
        %v3637 = vpop.f32.mrf.mxu0
        %3638 = vdwg.mxu0
        %v3639 = vld [vmem:[#allocation7 + $0x1e0] sm:$0xff]
        %v3640 = vld [vmem:[#allocation7 + $0x1e8] sm:$0xf]
        %v3641 = vld [vmem:[#allocation7 + $0x1ec] sm:$0xff]
        %v3642 = vld [vmem:[#allocation7 + $0x1f4] sm:$0xf]
        %v3643 = vld [vmem:[#allocation7 + $0x1f8] sm:$0xff]
        %v3644 = vld [vmem:[#allocation7 + $0x200] sm:$0xf]
        %v3645 = vld [vmem:[#allocation7 + $0x204] sm:$0xff]
        %v3646 = vld [vmem:[#allocation7 + $0x20c] sm:$0xf]
        %v3647 = vld [vmem:[#allocation7 + $0x210] sm:$0xff]
        %v3648 = vld [vmem:[#allocation7 + $0x218] sm:$0xf]
        %v3649 = vld [vmem:[#allocation7 + $0x21c] sm:$0xff]
        %v3650 = vld [vmem:[#allocation7 + $0x224] sm:$0xf]
        %v3651 = vld [vmem:[#allocation7 + $0x228] sm:$0xff]
        %v3652 = vld [vmem:[#allocation7 + $0x230] sm:$0xf]
        %v3653 = vld [vmem:[#allocation7 + $0x234] sm:$0xff]
        %v3654 = vld [vmem:[#allocation7 + $0x23c] sm:$0xf]
        %v3655 = vpack.c.bf16 %v3636, %v3633
        %v3672 = vunpack.c.l.b16 %v3639
        %v3673 = vunpack.c.h.b16 %v3639
        %v3674 = vunpack.c.l.b16 %v3640
        %v3675 = vunpack.c.l.b16 %v3641
        %v3676 = vunpack.c.h.b16 %v3641
        %v3677 = vunpack.c.l.b16 %v3642
        %v3678 = vunpack.c.l.b16 %v3643
        %v3679 = vunpack.c.h.b16 %v3643
        %v3680 = vunpack.c.l.b16 %v3644
        %v3681 = vunpack.c.l.b16 %v3645
        %v3682 = vunpack.c.h.b16 %v3645
        %v3683 = vunpack.c.l.b16 %v3646
        %v3684 = vunpack.c.l.b16 %v3647
        %v3685 = vunpack.c.h.b16 %v3647
        %v3686 = vunpack.c.l.b16 %v3648
        %v3687 = vunpack.c.l.b16 %v3649
        %v3688 = vunpack.c.h.b16 %v3649
        %v3689 = vunpack.c.l.b16 %v3650
        %v3690 = vunpack.c.l.b16 %v3651
        %v3691 = vunpack.c.h.b16 %v3651
        %v3692 = vunpack.c.l.b16 %v3652
        %v3693 = vunpack.c.l.b16 %v3653
        %v3694 = vunpack.c.h.b16 %v3653
        %v3695 = vunpack.c.l.b16 %v3654
        %v3696 = vpack.c.b16 %v3675, %v3672
        %v3697 = vpack.c.b16 %v3676, %v3673
        %v3698 = vpack.c.b16 %v3677, %v3674
        %v3699 = vpack.c.b16 %v3681, %v3678
        %v3700 = vpack.c.b16 %v3682, %v3679
        %v3701 = vpack.c.b16 %v3683, %v3680
        %v3702 = vpack.c.b16 %v3687, %v3684
        %v3703 = vpack.c.b16 %v3688, %v3685
        %v3704 = vpack.c.b16 %v3689, %v3686
        %v3705 = vpack.c.b16 %v3693, %v3690
        %v3706 = vpack.c.b16 %v3694, %v3691
        %v3707 = vpack.c.b16 %v3695, %v3692
        %v3721 = vsel %vm2034, %v3655, 0
        %3723 = vmatprep.subr.bf16.mxu0 0
        %3724 = vmatpush1.bf16.msra.mxu0 0
        %3725 = vmatprep.subr.bf16.mxu0 0
        %3726 = vmatpush1.bf16.msra.mxu0 0
        %3727 = vmatprep.subr.bf16.mxu0 0
        %3728 = vmatpush1.bf16.msra.mxu0 0
        %3729 = vmatprep.subr.bf16.mxu0 0
        %3730 = vmatpush1.bf16.msra.mxu0 0
        %3731 = vmatprep.subr.bf16.mxu0 %v3706
        %3732 = vmatpush1.bf16.msra.mxu0 %v3705
        %3733 = vmatprep.subr.bf16.mxu0 %v3703
        %3734 = vmatpush1.bf16.msra.mxu0 %v3702
        %3735 = vmatprep.subr.bf16.mxu0 %v3700
        %3736 = vmatpush1.bf16.msra.mxu0 %v3699
        %3737 = vmatprep.subr.bf16.mxu0 %v3697
        %3738 = vmatpush1.bf16.msra.mxu0 %v3696
        %3739 = vmatprep.subr.bf16.mxu0 0
        %3740 = vmatpush2.bf16.msra.mxu0 0
        %3741 = vmatprep.subr.bf16.mxu0 0
        %3742 = vmatpush2.bf16.msra.mxu0 0
        %3743 = vmatprep.subr.bf16.mxu0 0
        %3744 = vmatpush2.bf16.msra.mxu0 0
        %3745 = vmatprep.subr.bf16.mxu0 0
        %3746 = vmatpush2.bf16.msra.mxu0 0
        %3747 = vmatprep.subr.bf16.mxu0 0
        %3748 = vmatpush2.bf16.msra.mxu0 0
        %3749 = vmatprep.subr.bf16.mxu0 0
        %3750 = vmatpush2.bf16.msra.mxu0 0
        %3751 = vmatprep.subr.bf16.mxu0 0
        %3752 = vmatpush2.bf16.msra.mxu0 0
        %3753 = vmatprep.subr.bf16.mxu0 0
        %3754 = vmatpush2.bf16.msra.mxu0 0
        %3755 = vmatprep.mubr.bf16.mxu0 0
        %3756 = vmatmul.mubr.bf16.gmra.mxu0 %v3721
        %v3757 = vpop.f32.mrf.mxu0
        %v3758 = vadd.f32 0.0, %v3757
        %v3759 = vpop.f32.mrf.mxu0
        %v3760 = vadd.f32 0.0, %v3759
        %v3761 = vpop.f32.mrf.mxu0
        %v3762 = vadd.f32 0.0, %v3761
        %v3763 = vpop.f32.mrf.mxu0
        %v3764 = vadd.f32 0.0, %v3763
        %3765 = vdwg.mxu0
        %3766 = vmatprep.subr.bf16.mxu0 0
        %3767 = vmatpush1.bf16.msra.mxu0 0
        %3768 = vmatprep.subr.bf16.mxu0 0
        %3769 = vmatpush1.bf16.msra.mxu0 0
        %3770 = vmatprep.subr.bf16.mxu0 0
        %3771 = vmatpush1.bf16.msra.mxu0 0
        %3772 = vmatprep.subr.bf16.mxu0 0
        %3773 = vmatpush1.bf16.msra.mxu0 0
        %3774 = vmatprep.subr.bf16.mxu0 0
        %3775 = vmatpush1.bf16.msra.mxu0 %v3707
        %3776 = vmatprep.subr.bf16.mxu0 0
        %3777 = vmatpush1.bf16.msra.mxu0 %v3704
        %3778 = vmatprep.subr.bf16.mxu0 0
        %3779 = vmatpush1.bf16.msra.mxu0 %v3701
        %3780 = vmatprep.subr.bf16.mxu0 0
        %3781 = vmatpush1.bf16.msra.mxu0 %v3698
        %3782 = vmatprep.subr.bf16.mxu0 0
        %3783 = vmatpush2.bf16.msra.mxu0 0
        %3784 = vmatprep.subr.bf16.mxu0 0
        %3785 = vmatpush2.bf16.msra.mxu0 0
        %3786 = vmatprep.subr.bf16.mxu0 0
        %3787 = vmatpush2.bf16.msra.mxu0 0
        %3788 = vmatprep.subr.bf16.mxu0 0
        %3789 = vmatpush2.bf16.msra.mxu0 0
        %3790 = vmatprep.subr.bf16.mxu0 0
        %3791 = vmatpush2.bf16.msra.mxu0 0
        %3792 = vmatprep.subr.bf16.mxu0 0
        %3793 = vmatpush2.bf16.msra.mxu0 0
        %3794 = vmatprep.subr.bf16.mxu0 0
        %3795 = vmatpush2.bf16.msra.mxu0 0
        %3796 = vmatprep.subr.bf16.mxu0 0
        %3797 = vmatpush2.bf16.msra.mxu0 0
        %3798 = vmatprep.mubr.bf16.mxu0 0
        %3799 = vmatmul.mubr.bf16.gmra.mxu0 %v3721
        %v3800 = vpop.f32.mrf.mxu0
        %v3801 = vadd.f32 0.0, %v3800
        %v3802 = vpop.f32.mrf.mxu0
        %v3803 = vpop.f32.mrf.mxu0
        %v3804 = vadd.f32 0.0, %v3803
        %v3805 = vpop.f32.mrf.mxu0
        %3806 = vdwg.mxu0
        %v3807 = vadd.f32 %v3505, %v3758
        %v3808 = vadd.f32 %v3506, %v3760
        %v3809 = vadd.f32 %v3507, %v3801
        %v3810 = vadd.f32 %v3508, %v3762
        %v3811 = vadd.f32 %v3509, %v3764
        %v3812 = vadd.f32 %v3510, %v3804
        %v3813 = vld [vmem:[%s3] sm:$0x7]
        %v3815 = vlaneseq
        %v3816 = vshrl.u32 %v3815, 7
        %v3817 = vsub.s32 0, %v3816
        %v3818 = vrot.slane %v3813, %v3817
        %v3819 = vlaneseq
        %v3820 = vshrl.u32 %v3819, 7
        %v3821 = vsub.s32 1, %v3820
        %v3822 = vrot.slane %v3813, %v3821
        %v3823 = vlaneseq
        %v3824 = vshrl.u32 %v3823, 7
        %v3825 = vsub.s32 2, %v3824
        %v3826 = vrot.slane %v3813, %v3825
        %v3830 = vadd.f32 %v3807, %v3818
        %v3831 = vadd.f32 %v3808, %v3822
        %v3832 = vadd.f32 %v3809, %v3826
        %v3833 = vadd.f32 %v3810, %v3818
        %v3834 = vadd.f32 %v3811, %v3822
        %v3835 = vadd.f32 %v3812, %v3826
        %3836 = vst [vmem:[%s244] sm:$0xff] %v3830
        %3837 = vst [vmem:[%s244 + $0x8] sm:$0xff] %v3831
        %3838 = vst [vmem:[%s244 + $0x10] sm:$0xff] %v3832
        %3839 = vst [vmem:[%s244 + $0x18] sm:$0xff] %v3833
        %3840 = vst [vmem:[%s244 + $0x20] sm:$0xff] %v3834
        %3841 = vst [vmem:[%s244 + $0x28] sm:$0xff] %v3835
        %s3842 = sand.u32 %s119, 1
        %s3843 = scalar_lea.sflag [#allocation4], %s3842
        %s3844 = sand.u32 %s119, 1
        %s3845 = smul.addr %s3844, 48
        %s3846 = scalar_lea.vmem [#allocation8], %s3845
        // Predicated region
        $region49: #{tpu_custom_call.1} parent=35 // pred_check
          %p3847 = pneg %p129
        $region50: #{tpu_custom_call.1} parent=35 // pred_check_branch
          %3849 = sbr.rel (%p3847) target = $region52
        $region51: #{tpu_custom_call.1} parent=35 // pred_region
          %s3851 = ssub.s32 768, 768
          %3852 = vsyncadd %s3843, %s3851
          %s3853 = smul.addr %s22, 6
          %s3854 = smul.addr %s3853, 128
          %s3855 = scalar_lea.hbm %s4, %s3854
          %s3856 = sshll.u32 %s3846, 4
          %s3857 = int_to_ptr.vmem [resolvable:$true] %s3856
          %3862 = dma.vmem_to_hbm [thread:$0]  %s3857, 768, %s3855, %s3843, 384, 384, 24
        $region52: #{tpu_custom_call.1} parent=35 // pred_fallthru
          _
      $region36: #{tpu_custom_call.1} parent=5 // pred_fallthru
        _
      %p3863 = scmp.le.s32.totalorder 2, %s17
      // Predicated region
      $region53: #{tpu_custom_call.1} parent=5 // pred_check
        %p3864 = pneg %p3863
      $region54: #{tpu_custom_call.1} parent=5 // pred_check_branch
        %3866 = sbr.rel (%p3864) target = $region56
      $region55: #{tpu_custom_call.1} parent=5 // pred_region
        %s3867 = ssub.s32 %s17, 2
        // Predicated region
        $region57: #{tpu_custom_call.1} parent=55 // pred_check
          %p3868 = pneg %p135
        $region58: #{tpu_custom_call.1} parent=55 // pred_check_branch
          %3870 = sbr.rel (%p3868) target = $region60
        $region59: #{tpu_custom_call.1} parent=55 // pred_region
          %s3871 = sand.u32 %s120, 1
          %s3872 = scalar_lea.sflag [#allocation4], %s3871
          %s3873 = sand.u32 %s120, 1
          %s3874 = smul.addr %s3873, 48
          %s3875 = scalar_lea.vmem [#allocation8], %s3874
          %3876 = dma.done %s3872, 768
        $region60: #{tpu_custom_call.1} parent=55 // pred_fallthru
          _
      $region56: #{tpu_custom_call.1} parent=5 // pred_fallthru
        _
    $region6: #{tpu_custom_call.1} parent=1 // loop_footer
      %s21 = sadd.s32 1, %s17
    $region7: #{tpu_custom_call.1} parent=1 // loop_footer_branch
      %16 = sbr.rel target = $region3
    $region8: #{tpu_custom_call.1} parent=1 // loop_exit
      _
    %3877 = vsyncpa [#allocation3], 1
    %s3878 = scalar_lea.sflag [#allocation3], 1
    %3879 = vsyncpa %s3878, 1
    %3880 = vsyncpa [#allocation6], 1
    %3881 = vsyncpa [#allocation4], 1
    %s3882 = scalar_lea.sflag [#allocation4], 1
    %3883 = vsyncpa %s3882, 1

</llo_original>
